<compile_context>
chip_gen: v7x
topology: tpu7x:2x2x1
jax: 0.10.0
libtpu: 0.0.40
codegen_flags: <defaults>
</compile_context>

<pallas_src>
import numpy as np
import jax
import jax.numpy as jnp
from jax.experimental import pallas as pl
from jax.experimental.pallas import tpu as pltpu

LAYER_SIZES = [128, 64, 32, 16, 8]
FC_PAD = 128      # all MLP hidden widths are <= 128 -> pad each to one lane tile


def _round_up(x, m):
    return ((x + m - 1) // m) * m


def _init_params(key, num_layers, hidden_size, alphabet_size):
    """Deterministic synthetic parameters with PyTorch-style shapes."""
    fc_dims = [hidden_size] + LAYER_SIZES + [1]
    gru_params, fc_params = [], []
    k = key
    for l in range(num_layers):
        in_dim = alphabet_size if l == 0 else hidden_size
        k, k1, k2, k3, k4 = jax.random.split(k, 5)
        s = 1.0 / np.sqrt(hidden_size)
        gru_params.append(dict(
            w_ih=jax.random.uniform(k1, (3 * hidden_size, in_dim), jnp.float32, -s, s),
            w_hh=jax.random.uniform(k2, (3 * hidden_size, hidden_size), jnp.float32, -s, s),
            b_ih=jax.random.uniform(k3, (3 * hidden_size,), jnp.float32, -s, s),
            b_hh=jax.random.uniform(k4, (3 * hidden_size,), jnp.float32, -s, s),
        ))
    for i in range(len(fc_dims) - 1):
        k, k1, k2 = jax.random.split(k, 3)
        s = 1.0 / np.sqrt(fc_dims[i])
        fc_params.append(dict(
            w=jax.random.uniform(k1, (fc_dims[i + 1], fc_dims[i]), jnp.float32, -s, s),
            b=jax.random.uniform(k2, (fc_dims[i + 1],), jnp.float32, -s, s),
        ))
    return gru_params, fc_params


def _make_kernel(num_layers, n_fc_hidden, T, B_TILE, A_pad, H_pad):
    TB = T * B_TILE
    H3 = 3 * H_pad
    unroll = True if T <= 32 else 8        # short fixed loop -> full unroll

    def kernel(*args):
        x_ref = args[0]                    # (T, B_TILE, A_pad)
        idx = 1
        gru_refs = []
        for _ in range(num_layers):
            gru_refs.append(args[idx:idx + 4]); idx += 4
        fc_refs = []
        for _ in range(n_fc_hidden):
            fc_refs.append(args[idx:idx + 2]); idx += 2
        w_last_ref = args[idx]             # (FC_PAD, 1)
        b_last_ref = args[idx + 1]         # (1, 1)
        out_ref = args[idx + 2]            # (TB, 1)
        gi_scr = args[idx + 3]             # (TB, 3*H_pad) hoisted input projection
        seq_scr = args[idx + 4]            # (TB, H_pad)   current layer hidden seq

        # ---------------- stacked GRU ----------------
        for l in range(num_layers):
            w_ih_r, w_hh_r, gib_r, hnb_r = gru_refs[l]
            if l == 0:
                src = x_ref[...].reshape(TB, A_pad)     # merge leading dims (layout no-op)
            else:
                src = seq_scr[...]
            # Hoisted input projection for the whole layer: one big MXU matmul,
            # with b_ih (+ b_hr, b_hz) already folded into the bias row.
            gi_scr[...] = (jnp.dot(src, w_ih_r[...],
                                   preferred_element_type=jnp.float32)
                           + gib_r[...])
            w_hh = w_hh_r[...]             # (H_pad, 3*H_pad)  -- hoisted out of loop
            b_hn = hnb_r[...]              # (1, H_pad) n-gate hidden bias

            def step(t, h, w_hh=w_hh, b_hn=b_hn):
                row = pl.multiple_of(t * B_TILE, B_TILE)
                gi = gi_scr[pl.ds(row, B_TILE), :]                 # (B_TILE, 3H_pad)
                gh = jnp.dot(h, w_hh, preferred_element_type=jnp.float32)
                # gates sit at lane offsets 0 / H_pad / 2*H_pad -> 128-aligned slices
                r = jax.nn.sigmoid(gi[:, 0:H_pad] + gh[:, 0:H_pad])
                z = jax.nn.sigmoid(gi[:, H_pad:2 * H_pad] + gh[:, H_pad:2 * H_pad])
                n = jnp.tanh(gi[:, 2 * H_pad:H3] + r * (gh[:, 2 * H_pad:H3] + b_hn))
                h_new = (1.0 - z) * n + z * h
                seq_scr[pl.ds(row, B_TILE), :] = h_new             # full (8k,128) store
                return h_new

            h0 = jnp.zeros((B_TILE, H_pad), jnp.float32)
            jax.lax.fori_loop(0, T, step, h0, unroll=unroll)

        # ---------------- MLP head over all T*B_TILE positions ----------------
        feat = seq_scr[...]                                        # (TB, H_pad)
        for w_r, b_r in fc_refs:           # Linear + ReLU, widths padded to 128
            feat = jnp.maximum(
                jnp.dot(feat, w_r[...], preferred_element_type=jnp.float32) + b_r[...],
                0.0)
        # final Linear(8 -> 1) + sigmoid
        last = jnp.dot(feat, w_last_ref[...],
                       preferred_element_type=jnp.float32) + b_last_ref[...]
        # TODO(synk): at production shapes, emit a lane-dense (1, T*B_TILE) output
        # slab instead of (T*B_TILE, 1) to avoid masked vst on the final store.
        out_ref[...] = jax.nn.sigmoid(last)

    return kernel


def cardinality_estimator_forward(x, gru_params, fc_params, hidden_size):
    """x: (B, T, alphabet_size) float32, batch-first like PyTorch nn.GRU."""
    B, T, A = x.shape
    H = hidden_size
    H_pad = _round_up(H, 128)
    A_pad = _round_up(A, 128)
    # batch tile: multiple of 8 sublanes; single tile if B <= 128, else 128-wide tiles
    B_TILE = min(128, _round_up(B, 8))
    B_pad = _round_up(B, B_TILE)
    nbt = B_pad // B_TILE
    H3 = 3 * H_pad
    TB = T * B_TILE

    # time-major, zero-padded input: (T, B_pad, A_pad)
    xt = jnp.transpose(x.astype(jnp.float32), (1, 0, 2))
    xt = jnp.pad(xt, ((0, 0), (0, B_pad - B), (0, A_pad - A)))

    inputs = [xt]
    in_specs = [pl.BlockSpec((T, B_TILE, A_pad), lambda i: (0, i, 0))]

    def _const_spec(shape):
        return pl.BlockSpec(shape, lambda i: (0,) * len(shape))

    # ---- GRU params: transposed, lane-padded (per-gate blocks of width H_pad),
    #      biases pre-folded where algebraically safe ----
    for l, p in enumerate(gru_params):
        in_dim = A if l == 0 else H
        in_pad = A_pad if l == 0 else H_pad
        w_ih = np.asarray(p["w_ih"], np.float32)       # (3H, in_dim)
        w_hh = np.asarray(p["w_hh"], np.float32)       # (3H, H)
        b_ih = np.asarray(p["b_ih"], np.float32)       # (3H,)
        b_hh = np.asarray(p["b_hh"], np.float32)       # (3H,)
        w_ih_T = np.zeros((in_pad, H3), np.float32)
        w_hh_T = np.zeros((H_pad, H3), np.float32)
        gi_bias = np.zeros((1, H3), np.float32)
        hn_bias = np.zeros((1, H_pad), np.float32)
        for g in range(3):                             # r, z, n gates
            w_ih_T[:in_dim, g * H_pad:g * H_pad + H] = w_ih[g * H:(g + 1) * H, :].T
            w_hh_T[:H, g * H_pad:g * H_pad + H] = w_hh[g * H:(g + 1) * H, :].T
            gi_bias[0, g * H_pad:g * H_pad + H] = b_ih[g * H:(g + 1) * H]
            if g < 2:                                  # b_hr, b_hz fold into gi
                gi_bias[0, g * H_pad:g * H_pad + H] += b_hh[g * H:(g + 1) * H]
        hn_bias[0, :H] = b_hh[2 * H:3 * H]             # b_hn must stay inside r*(.)
        for arr in (w_ih_T, w_hh_T, gi_bias, hn_bias):
            inputs.append(jnp.asarray(arr))
            in_specs.append(_const_spec(arr.shape))

    # ---- MLP params: transposed, zero-padded to 128-wide lane tiles ----
    n_fc = len(fc_params)
    for i in range(n_fc - 1):                          # layers followed by ReLU
        w = np.asarray(fc_params[i]["w"], np.float32)  # (out, in)
        b = np.asarray(fc_params[i]["b"], np.float32)
        in_pad = H_pad if i == 0 else FC_PAD
        wT = np.zeros((in_pad, FC_PAD), np.float32)
        wT[:w.shape[1], :w.shape[0]] = w.T
        bb = np.zeros((1, FC_PAD), np.float32)
        bb[0, :b.shape[0]] = b
        inputs += [jnp.asarray(wT), jnp.asarray(bb)]
        in_specs += [_const_spec(wT.shape), _const_spec(bb.shape)]
    w_last = np.asarray(fc_params[-1]["w"], np.float32)   # (1, 8)
    b_last = np.asarray(fc_params[-1]["b"], np.float32)   # (1,)
    wl = np.zeros((FC_PAD, 1), np.float32)
    wl[:w_last.shape[1], 0] = w_last[0]
    bl = np.full((1, 1), float(b_last[0]), np.float32)
    inputs += [jnp.asarray(wl), jnp.asarray(bl)]
    in_specs += [_const_spec(wl.shape), _const_spec(bl.shape)]

    # VMEM budget: scratch + resident weights + double-buffered x/out blocks,
    # kept below v7x's 64 MiB per-core VMEM.
    param_bytes = sum(int(np.prod(a.shape)) * 4 for a in inputs[1:])
    vmem_est = 4 * (TB * (H3 + H_pad) + 2 * TB * A_pad + 2 * TB) + 2 * param_bytes
    vmem_limit = int(min(64 * 1024 * 1024, max(16 * 1024 * 1024, 2 * vmem_est)))

    kernel = _make_kernel(len(gru_params), n_fc - 1, T, B_TILE, A_pad, H_pad)
    out_flat = pl.pallas_call(
        kernel,
        out_shape=jax.ShapeDtypeStruct((nbt * TB, 1), jnp.float32),
        grid=(nbt,),
        in_specs=in_specs,
        out_specs=pl.BlockSpec((TB, 1), lambda i: (i, 0)),
        scratch_shapes=[
            pltpu.VMEM((TB, H3), jnp.float32),     # hoisted input-projection slab
            pltpu.VMEM((TB, H_pad), jnp.float32),  # current layer hidden sequence
        ],
        compiler_params=pltpu.CompilerParams(
            dimension_semantics=("parallel",),     # batch tiles shard across cores
            vmem_limit_bytes=vmem_limit),
    )(*inputs)

    # (nbt*T*B_TILE, 1) -> (B, T), dropping batch padding
    out = out_flat.reshape(nbt, T, B_TILE)
    out = jnp.transpose(out, (1, 0, 2)).reshape(T, B_pad)[:, :B].T
    return jnp.squeeze(out)


def reference_forward(x, gru_params, fc_params, hidden_size):
    """Pure-JAX reference mirroring PyTorch nn.GRU + nn.Sequential semantics."""
    B, T, _ = x.shape
    H = hidden_size
    layer_in = x.astype(jnp.float32)
    for p in gru_params:
        h = jnp.zeros((B, H), jnp.float32)
        outs = []
        for t in range(T):
            x_t = layer_in[:, t, :]
            gi = x_t @ p["w_ih"].T + p["b_ih"]
            gh = h @ p["w_hh"].T + p["b_hh"]
            r = jax.nn.sigmoid(gi[:, :H] + gh[:, :H])
            z = jax.nn.sigmoid(gi[:, H:2 * H] + gh[:, H:2 * H])
            n = jnp.tanh(gi[:, 2 * H:] + r * gh[:, 2 * H:])
            h = (1.0 - z) * n + z * h
            outs.append(h)
        layer_in = jnp.stack(outs, axis=1)
    feat = layer_in
    for i, p in enumerate(fc_params):
        feat = feat @ p["w"].T + p["b"]
        if i < len(fc_params) - 1:
            feat = jnp.maximum(feat, 0.0)
    return jnp.squeeze(jax.nn.sigmoid(feat))


if __name__ == "__main__":
    num_layers = 2
    hidden_size = 32
    alphabet_size = 16
    B, T = 2, 8

    key = jax.random.PRNGKey(0)
    kp, kx = jax.random.split(key)
    gru_params, fc_params = _init_params(kp, num_layers, hidden_size, alphabet_size)
    x = jax.random.uniform(kx, (B, T, alphabet_size), jnp.float32)

    out = cardinality_estimator_forward(x, gru_params, fc_params, hidden_size)
    out = jax.block_until_ready(out)

    ref = reference_forward(x, gru_params, fc_params, hidden_size)
    np.testing.assert_allclose(np.asarray(out), np.asarray(ref), rtol=1e-5, atol=1e-5)
    print("KERNEL_OK")
</pallas_src>

<mosaic_0001>
module attributes {stable_mosaic.version = 11 : i64} {
  func.func @kernel(%arg0: i32, %arg1: memref<8x8x128xf32, #tpu.memory_space<vmem>>, %arg2: memref<128x384xf32, #tpu.memory_space<vmem>>, %arg3: memref<128x384xf32, #tpu.memory_space<vmem>>, %arg4: memref<1x384xf32, #tpu.memory_space<vmem>>, %arg5: memref<1x128xf32, #tpu.memory_space<vmem>>, %arg6: memref<128x384xf32, #tpu.memory_space<vmem>>, %arg7: memref<128x384xf32, #tpu.memory_space<vmem>>, %arg8: memref<1x384xf32, #tpu.memory_space<vmem>>, %arg9: memref<1x128xf32, #tpu.memory_space<vmem>>, %arg10: memref<128x128xf32, #tpu.memory_space<vmem>>, %arg11: memref<1x128xf32, #tpu.memory_space<vmem>>, %arg12: memref<128x128xf32, #tpu.memory_space<vmem>>, %arg13: memref<1x128xf32, #tpu.memory_space<vmem>>, %arg14: memref<128x128xf32, #tpu.memory_space<vmem>>, %arg15: memref<1x128xf32, #tpu.memory_space<vmem>>, %arg16: memref<128x128xf32, #tpu.memory_space<vmem>>, %arg17: memref<1x128xf32, #tpu.memory_space<vmem>>, %arg18: memref<128x128xf32, #tpu.memory_space<vmem>>, %arg19: memref<1x128xf32, #tpu.memory_space<vmem>>, %arg20: memref<128x1xf32, #tpu.memory_space<vmem>>, %arg21: memref<1x1xf32, #tpu.memory_space<vmem>>, %arg22: memref<64x1xf32, #tpu.memory_space<vmem>>, %arg23: memref<64x384xf32, #tpu.memory_space<vmem>>, %arg24: memref<64x128xf32, #tpu.memory_space<vmem>>) attributes {dimension_semantics = [#tpu.dimension_semantics<parallel>], iteration_bounds = array<i64: 1>, scalar_prefetch = 0 : i64, scratch_operands = 2 : i64, tpu.core_type = #tpu.core_type<tc>, window_params = [{transform_indices = @transform_0, window_bounds = array<i64: 8, 8, 128>}, {pipeline_mode = #tpu.pipeline_mode<synchronous>, transform_indices = @transform_1, window_bounds = array<i64: 128, 384>}, {pipeline_mode = #tpu.pipeline_mode<synchronous>, transform_indices = @transform_2, window_bounds = array<i64: 128, 384>}, {pipeline_mode = #tpu.pipeline_mode<synchronous>, transform_indices = @transform_3, window_bounds = array<i64: 1, 384>}, {pipeline_mode = #tpu.pipeline_mode<synchronous>, transform_indices = @transform_4, window_bounds = array<i64: 1, 128>}, {pipeline_mode = #tpu.pipeline_mode<synchronous>, transform_indices = @transform_5, window_bounds = array<i64: 128, 384>}, {pipeline_mode = #tpu.pipeline_mode<synchronous>, transform_indices = @transform_6, window_bounds = array<i64: 128, 384>}, {pipeline_mode = #tpu.pipeline_mode<synchronous>, transform_indices = @transform_7, window_bounds = array<i64: 1, 384>}, {pipeline_mode = #tpu.pipeline_mode<synchronous>, transform_indices = @transform_8, window_bounds = array<i64: 1, 128>}, {pipeline_mode = #tpu.pipeline_mode<synchronous>, transform_indices = @transform_9, window_bounds = array<i64: 128, 128>}, {pipeline_mode = #tpu.pipeline_mode<synchronous>, transform_indices = @transform_10, window_bounds = array<i64: 1, 128>}, {pipeline_mode = #tpu.pipeline_mode<synchronous>, transform_indices = @transform_11, window_bounds = array<i64: 128, 128>}, {pipeline_mode = #tpu.pipeline_mode<synchronous>, transform_indices = @transform_12, window_bounds = array<i64: 1, 128>}, {pipeline_mode = #tpu.pipeline_mode<synchronous>, transform_indices = @transform_13, window_bounds = array<i64: 128, 128>}, {pipeline_mode = #tpu.pipeline_mode<synchronous>, transform_indices = @transform_14, window_bounds = array<i64: 1, 128>}, {pipeline_mode = #tpu.pipeline_mode<synchronous>, transform_indices = @transform_15, window_bounds = array<i64: 128, 128>}, {pipeline_mode = #tpu.pipeline_mode<synchronous>, transform_indices = @transform_16, window_bounds = array<i64: 1, 128>}, {pipeline_mode = #tpu.pipeline_mode<synchronous>, transform_indices = @transform_17, window_bounds = array<i64: 128, 128>}, {pipeline_mode = #tpu.pipeline_mode<synchronous>, transform_indices = @transform_18, window_bounds = array<i64: 1, 128>}, {pipeline_mode = #tpu.pipeline_mode<synchronous>, transform_indices = @transform_19, window_bounds = array<i64: 128, 1>}, {pipeline_mode = #tpu.pipeline_mode<synchronous>, transform_indices = @transform_20, window_bounds = array<i64: 1, 1>}, {transform_indices = @transform_21, window_bounds = array<i64: 64, 1>}]} {
    %c0 = arith.constant 0 : index
    %c0_0 = arith.constant 0 : index
    %c0_1 = arith.constant 0 : index
    %0 = vector.load %arg1[%c0, %c0_0, %c0_1] : memref<8x8x128xf32, #tpu.memory_space<vmem>>, vector<8x8x128xf32>
    %1 = vector.shape_cast %0 : vector<8x8x128xf32> to vector<64x128xf32>
    %c0_2 = arith.constant 0 : index
    %c0_3 = arith.constant 0 : index
    %2 = vector.load %arg2[%c0_2, %c0_3] : memref<128x384xf32, #tpu.memory_space<vmem>>, vector<128x384xf32>
    %cst = arith.constant dense<0.000000e+00> : vector<64x384xf32>
    %3 = tpu.matmul %1, %2, %cst {dimension_numbers = #tpu.dot_dimension_numbers<[1], [0], [0], [1], [0, 0, 1, 1], [], []>} : vector<64x128xf32>, vector<128x384xf32>, vector<64x384xf32> -> vector<64x384xf32>
    %c0_4 = arith.constant 0 : index
    %c0_5 = arith.constant 0 : index
    %4 = vector.load %arg4[%c0_4, %c0_5] : memref<1x384xf32, #tpu.memory_space<vmem>>, vector<1x384xf32>
    %5 = vector.broadcast %4 : vector<1x384xf32> to vector<64x384xf32>
    %6 = arith.addf %3, %5 : vector<64x384xf32>
    %c0_6 = arith.constant 0 : index
    %c0_7 = arith.constant 0 : index
    %7 = vector.load %arg23[%c0_6, %c0_7] : memref<64x384xf32, #tpu.memory_space<vmem>>, vector<64x384xf32>
    tpu.vector_store %arg23[%c0_6, %c0_7], %6 {strides = array<i32>} : memref<64x384xf32, #tpu.memory_space<vmem>>, vector<64x384xf32>,
    %c0_8 = arith.constant 0 : index
    %c0_9 = arith.constant 0 : index
    %8 = vector.load %arg3[%c0_8, %c0_9] : memref<128x384xf32, #tpu.memory_space<vmem>>, vector<128x384xf32>
    %c0_10 = arith.constant 0 : index
    %c0_11 = arith.constant 0 : index
    %9 = vector.load %arg5[%c0_10, %c0_11] : memref<1x128xf32, #tpu.memory_space<vmem>>, vector<1x128xf32>
    %cst_12 = arith.constant 0.000000e+00 : f32
    %10 = vector.broadcast %cst_12 : f32 to vector<8x128xf32>
    %c0_i32 = arith.constant 0 : i32
    %c8_i32 = arith.constant 8 : i32
    %11 = arith.muli %c0_i32, %c8_i32 : i32
    %12 = tpu.assume_multiple %11, 8 : i32
    %13 = arith.index_cast %12 : i32 to index
    %c0_13 = arith.constant 0 : index
    %14 = vector.load %arg23[%13, %c0_13] : memref<64x384xf32, #tpu.memory_space<vmem>>, vector<8x384xf32>
    %cst_14 = arith.constant dense<0.000000e+00> : vector<8x384xf32>
    %15 = tpu.matmul %10, %8, %cst_14 {dimension_numbers = #tpu.dot_dimension_numbers<[1], [0], [0], [1], [0, 0, 1, 1], [], []>} : vector<8x128xf32>, vector<128x384xf32>, vector<8x384xf32> -> vector<8x384xf32>
    %16 = vector.extract_strided_slice %14 {offsets = [0, 0], sizes = [8, 128], strides = [1, 1]} : vector<8x384xf32> to vector<8x128xf32>
    %17 = vector.extract_strided_slice %15 {offsets = [0, 0], sizes = [8, 128], strides = [1, 1]} : vector<8x384xf32> to vector<8x128xf32>
    %18 = arith.addf %16, %17 : vector<8x128xf32>
    %19 = arith.negf %18 : vector<8x128xf32>
    %20 = math.exp %19 : vector<8x128xf32>
    %cst_15 = arith.constant 1.000000e+00 : f32
    %21 = vector.broadcast %cst_15 : f32 to vector<8x128xf32>
    %22 = arith.addf %21, %20 : vector<8x128xf32>
    %23 = arith.divf %21, %22 : vector<8x128xf32>
    %24 = vector.extract_strided_slice %14 {offsets = [0, 128], sizes = [8, 128], strides = [1, 1]} : vector<8x384xf32> to vector<8x128xf32>
    %25 = vector.extract_strided_slice %15 {offsets = [0, 128], sizes = [8, 128], strides = [1, 1]} : vector<8x384xf32> to vector<8x128xf32>
    %26 = arith.addf %24, %25 : vector<8x128xf32>
    %27 = arith.negf %26 : vector<8x128xf32>
    %28 = math.exp %27 : vector<8x128xf32>
    %cst_16 = arith.constant 1.000000e+00 : f32
    %29 = vector.broadcast %cst_16 : f32 to vector<8x128xf32>
    %30 = arith.addf %29, %28 : vector<8x128xf32>
    %31 = arith.divf %29, %30 : vector<8x128xf32>
    %32 = vector.extract_strided_slice %14 {offsets = [0, 256], sizes = [8, 128], strides = [1, 1]} : vector<8x384xf32> to vector<8x128xf32>
    %33 = vector.extract_strided_slice %15 {offsets = [0, 256], sizes = [8, 128], strides = [1, 1]} : vector<8x384xf32> to vector<8x128xf32>
    %34 = vector.broadcast %9 : vector<1x128xf32> to vector<8x128xf32>
    %35 = arith.addf %33, %34 : vector<8x128xf32>
    %36 = arith.mulf %23, %35 : vector<8x128xf32>
    %37 = arith.addf %32, %36 : vector<8x128xf32>
    %38 = math.tanh %37 : vector<8x128xf32>
    %cst_17 = arith.constant 1.000000e+00 : f32
    %39 = vector.broadcast %cst_17 : f32 to vector<8x128xf32>
    %40 = arith.subf %39, %31 : vector<8x128xf32>
    %41 = arith.mulf %40, %38 : vector<8x128xf32>
    %42 = arith.mulf %31, %10 : vector<8x128xf32>
    %43 = arith.addf %41, %42 : vector<8x128xf32>
    %44 = arith.index_cast %12 : i32 to index
    %c0_18 = arith.constant 0 : index
    %45 = vector.load %arg24[%44, %c0_18] : memref<64x128xf32, #tpu.memory_space<vmem>>, vector<8x128xf32>
    tpu.vector_store %arg24[%44, %c0_18], %43 {strides = array<i32>} : memref<64x128xf32, #tpu.memory_space<vmem>>, vector<8x128xf32>,
    %c1_i32 = arith.constant 1 : i32
    %c8_i32_19 = arith.constant 8 : i32
    %46 = arith.muli %c1_i32, %c8_i32_19 : i32
    %47 = tpu.assume_multiple %46, 8 : i32
    %48 = arith.index_cast %47 : i32 to index
    %c0_20 = arith.constant 0 : index
    %49 = vector.load %arg23[%48, %c0_20] : memref<64x384xf32, #tpu.memory_space<vmem>>, vector<8x384xf32>
    %cst_21 = arith.constant dense<0.000000e+00> : vector<8x384xf32>
    %50 = tpu.matmul %43, %8, %cst_21 {dimension_numbers = #tpu.dot_dimension_numbers<[1], [0], [0], [1], [0, 0, 1, 1], [], []>} : vector<8x128xf32>, vector<128x384xf32>, vector<8x384xf32> -> vector<8x384xf32>
    %51 = vector.extract_strided_slice %49 {offsets = [0, 0], sizes = [8, 128], strides = [1, 1]} : vector<8x384xf32> to vector<8x128xf32>
    %52 = vector.extract_strided_slice %50 {offsets = [0, 0], sizes = [8, 128], strides = [1, 1]} : vector<8x384xf32> to vector<8x128xf32>
    %53 = arith.addf %51, %52 : vector<8x128xf32>
    %54 = arith.negf %53 : vector<8x128xf32>
    %55 = math.exp %54 : vector<8x128xf32>
    %cst_22 = arith.constant 1.000000e+00 : f32
    %56 = vector.broadcast %cst_22 : f32 to vector<8x128xf32>
    %57 = arith.addf %56, %55 : vector<8x128xf32>
    %58 = arith.divf %56, %57 : vector<8x128xf32>
    %59 = vector.extract_strided_slice %49 {offsets = [0, 128], sizes = [8, 128], strides = [1, 1]} : vector<8x384xf32> to vector<8x128xf32>
    %60 = vector.extract_strided_slice %50 {offsets = [0, 128], sizes = [8, 128], strides = [1, 1]} : vector<8x384xf32> to vector<8x128xf32>
    %61 = arith.addf %59, %60 : vector<8x128xf32>
    %62 = arith.negf %61 : vector<8x128xf32>
    %63 = math.exp %62 : vector<8x128xf32>
    %cst_23 = arith.constant 1.000000e+00 : f32
    %64 = vector.broadcast %cst_23 : f32 to vector<8x128xf32>
    %65 = arith.addf %64, %63 : vector<8x128xf32>
    %66 = arith.divf %64, %65 : vector<8x128xf32>
    %67 = vector.extract_strided_slice %49 {offsets = [0, 256], sizes = [8, 128], strides = [1, 1]} : vector<8x384xf32> to vector<8x128xf32>
    %68 = vector.extract_strided_slice %50 {offsets = [0, 256], sizes = [8, 128], strides = [1, 1]} : vector<8x384xf32> to vector<8x128xf32>
    %69 = vector.broadcast %9 : vector<1x128xf32> to vector<8x128xf32>
    %70 = arith.addf %68, %69 : vector<8x128xf32>
    %71 = arith.mulf %58, %70 : vector<8x128xf32>
    %72 = arith.addf %67, %71 : vector<8x128xf32>
    %73 = math.tanh %72 : vector<8x128xf32>
    %cst_24 = arith.constant 1.000000e+00 : f32
    %74 = vector.broadcast %cst_24 : f32 to vector<8x128xf32>
    %75 = arith.subf %74, %66 : vector<8x128xf32>
    %76 = arith.mulf %75, %73 : vector<8x128xf32>
    %77 = arith.mulf %66, %43 : vector<8x128xf32>
    %78 = arith.addf %76, %77 : vector<8x128xf32>
    %79 = arith.index_cast %47 : i32 to index
    %c0_25 = arith.constant 0 : index
    %80 = vector.load %arg24[%79, %c0_25] : memref<64x128xf32, #tpu.memory_space<vmem>>, vector<8x128xf32>
    tpu.vector_store %arg24[%79, %c0_25], %78 {strides = array<i32>} : memref<64x128xf32, #tpu.memory_space<vmem>>, vector<8x128xf32>,
    %c2_i32 = arith.constant 2 : i32
    %c8_i32_26 = arith.constant 8 : i32
    %81 = arith.muli %c2_i32, %c8_i32_26 : i32
    %82 = tpu.assume_multiple %81, 8 : i32
    %83 = arith.index_cast %82 : i32 to index
    %c0_27 = arith.constant 0 : index
    %84 = vector.load %arg23[%83, %c0_27] : memref<64x384xf32, #tpu.memory_space<vmem>>, vector<8x384xf32>
    %cst_28 = arith.constant dense<0.000000e+00> : vector<8x384xf32>
    %85 = tpu.matmul %78, %8, %cst_28 {dimension_numbers = #tpu.dot_dimension_numbers<[1], [0], [0], [1], [0, 0, 1, 1], [], []>} : vector<8x128xf32>, vector<128x384xf32>, vector<8x384xf32> -> vector<8x384xf32>
    %86 = vector.extract_strided_slice %84 {offsets = [0, 0], sizes = [8, 128], strides = [1, 1]} : vector<8x384xf32> to vector<8x128xf32>
    %87 = vector.extract_strided_slice %85 {offsets = [0, 0], sizes = [8, 128], strides = [1, 1]} : vector<8x384xf32> to vector<8x128xf32>
    %88 = arith.addf %86, %87 : vector<8x128xf32>
    %89 = arith.negf %88 : vector<8x128xf32>
    %90 = math.exp %89 : vector<8x128xf32>
    %cst_29 = arith.constant 1.000000e+00 : f32
    %91 = vector.broadcast %cst_29 : f32 to vector<8x128xf32>
    %92 = arith.addf %91, %90 : vector<8x128xf32>
    %93 = arith.divf %91, %92 : vector<8x128xf32>
    %94 = vector.extract_strided_slice %84 {offsets = [0, 128], sizes = [8, 128], strides = [1, 1]} : vector<8x384xf32> to vector<8x128xf32>
    %95 = vector.extract_strided_slice %85 {offsets = [0, 128], sizes = [8, 128], strides = [1, 1]} : vector<8x384xf32> to vector<8x128xf32>
    %96 = arith.addf %94, %95 : vector<8x128xf32>
    %97 = arith.negf %96 : vector<8x128xf32>
    %98 = math.exp %97 : vector<8x128xf32>
    %cst_30 = arith.constant 1.000000e+00 : f32
    %99 = vector.broadcast %cst_30 : f32 to vector<8x128xf32>
    %100 = arith.addf %99, %98 : vector<8x128xf32>
    %101 = arith.divf %99, %100 : vector<8x128xf32>
    %102 = vector.extract_strided_slice %84 {offsets = [0, 256], sizes = [8, 128], strides = [1, 1]} : vector<8x384xf32> to vector<8x128xf32>
    %103 = vector.extract_strided_slice %85 {offsets = [0, 256], sizes = [8, 128], strides = [1, 1]} : vector<8x384xf32> to vector<8x128xf32>
    %104 = vector.broadcast %9 : vector<1x128xf32> to vector<8x128xf32>
    %105 = arith.addf %103, %104 : vector<8x128xf32>
    %106 = arith.mulf %93, %105 : vector<8x128xf32>
    %107 = arith.addf %102, %106 : vector<8x128xf32>
    %108 = math.tanh %107 : vector<8x128xf32>
    %cst_31 = arith.constant 1.000000e+00 : f32
    %109 = vector.broadcast %cst_31 : f32 to vector<8x128xf32>
    %110 = arith.subf %109, %101 : vector<8x128xf32>
    %111 = arith.mulf %110, %108 : vector<8x128xf32>
    %112 = arith.mulf %101, %78 : vector<8x128xf32>
    %113 = arith.addf %111, %112 : vector<8x128xf32>
    %114 = arith.index_cast %82 : i32 to index
    %c0_32 = arith.constant 0 : index
    %115 = vector.load %arg24[%114, %c0_32] : memref<64x128xf32, #tpu.memory_space<vmem>>, vector<8x128xf32>
    tpu.vector_store %arg24[%114, %c0_32], %113 {strides = array<i32>} : memref<64x128xf32, #tpu.memory_space<vmem>>, vector<8x128xf32>,
    %c3_i32 = arith.constant 3 : i32
    %c8_i32_33 = arith.constant 8 : i32
    %116 = arith.muli %c3_i32, %c8_i32_33 : i32
    %117 = tpu.assume_multiple %116, 8 : i32
    %118 = arith.index_cast %117 : i32 to index
    %c0_34 = arith.constant 0 : index
    %119 = vector.load %arg23[%118, %c0_34] : memref<64x384xf32, #tpu.memory_space<vmem>>, vector<8x384xf32>
    %cst_35 = arith.constant dense<0.000000e+00> : vector<8x384xf32>
    %120 = tpu.matmul %113, %8, %cst_35 {dimension_numbers = #tpu.dot_dimension_numbers<[1], [0], [0], [1], [0, 0, 1, 1], [], []>} : vector<8x128xf32>, vector<128x384xf32>, vector<8x384xf32> -> vector<8x384xf32>
    %121 = vector.extract_strided_slice %119 {offsets = [0, 0], sizes = [8, 128], strides = [1, 1]} : vector<8x384xf32> to vector<8x128xf32>
    %122 = vector.extract_strided_slice %120 {offsets = [0, 0], sizes = [8, 128], strides = [1, 1]} : vector<8x384xf32> to vector<8x128xf32>
    %123 = arith.addf %121, %122 : vector<8x128xf32>
    %124 = arith.negf %123 : vector<8x128xf32>
    %125 = math.exp %124 : vector<8x128xf32>
    %cst_36 = arith.constant 1.000000e+00 : f32
    %126 = vector.broadcast %cst_36 : f32 to vector<8x128xf32>
    %127 = arith.addf %126, %125 : vector<8x128xf32>
    %128 = arith.divf %126, %127 : vector<8x128xf32>
    %129 = vector.extract_strided_slice %119 {offsets = [0, 128], sizes = [8, 128], strides = [1, 1]} : vector<8x384xf32> to vector<8x128xf32>
    %130 = vector.extract_strided_slice %120 {offsets = [0, 128], sizes = [8, 128], strides = [1, 1]} : vector<8x384xf32> to vector<8x128xf32>
    %131 = arith.addf %129, %130 : vector<8x128xf32>
    %132 = arith.negf %131 : vector<8x128xf32>
    %133 = math.exp %132 : vector<8x128xf32>
    %cst_37 = arith.constant 1.000000e+00 : f32
    %134 = vector.broadcast %cst_37 : f32 to vector<8x128xf32>
    %135 = arith.addf %134, %133 : vector<8x128xf32>
    %136 = arith.divf %134, %135 : vector<8x128xf32>
    %137 = vector.extract_strided_slice %119 {offsets = [0, 256], sizes = [8, 128], strides = [1, 1]} : vector<8x384xf32> to vector<8x128xf32>
    %138 = vector.extract_strided_slice %120 {offsets = [0, 256], sizes = [8, 128], strides = [1, 1]} : vector<8x384xf32> to vector<8x128xf32>
    %139 = vector.broadcast %9 : vector<1x128xf32> to vector<8x128xf32>
    %140 = arith.addf %138, %139 : vector<8x128xf32>
    %141 = arith.mulf %128, %140 : vector<8x128xf32>
    %142 = arith.addf %137, %141 : vector<8x128xf32>
    %143 = math.tanh %142 : vector<8x128xf32>
    %cst_38 = arith.constant 1.000000e+00 : f32
    %144 = vector.broadcast %cst_38 : f32 to vector<8x128xf32>
    %145 = arith.subf %144, %136 : vector<8x128xf32>
    %146 = arith.mulf %145, %143 : vector<8x128xf32>
    %147 = arith.mulf %136, %113 : vector<8x128xf32>
    %148 = arith.addf %146, %147 : vector<8x128xf32>
    %149 = arith.index_cast %117 : i32 to index
    %c0_39 = arith.constant 0 : index
    %150 = vector.load %arg24[%149, %c0_39] : memref<64x128xf32, #tpu.memory_space<vmem>>, vector<8x128xf32>
    tpu.vector_store %arg24[%149, %c0_39], %148 {strides = array<i32>} : memref<64x128xf32, #tpu.memory_space<vmem>>, vector<8x128xf32>,
    %c4_i32 = arith.constant 4 : i32
    %c8_i32_40 = arith.constant 8 : i32
    %151 = arith.muli %c4_i32, %c8_i32_40 : i32
    %152 = tpu.assume_multiple %151, 8 : i32
    %153 = arith.index_cast %152 : i32 to index
    %c0_41 = arith.constant 0 : index
    %154 = vector.load %arg23[%153, %c0_41] : memref<64x384xf32, #tpu.memory_space<vmem>>, vector<8x384xf32>
    %cst_42 = arith.constant dense<0.000000e+00> : vector<8x384xf32>
    %155 = tpu.matmul %148, %8, %cst_42 {dimension_numbers = #tpu.dot_dimension_numbers<[1], [0], [0], [1], [0, 0, 1, 1], [], []>} : vector<8x128xf32>, vector<128x384xf32>, vector<8x384xf32> -> vector<8x384xf32>
    %156 = vector.extract_strided_slice %154 {offsets = [0, 0], sizes = [8, 128], strides = [1, 1]} : vector<8x384xf32> to vector<8x128xf32>
    %157 = vector.extract_strided_slice %155 {offsets = [0, 0], sizes = [8, 128], strides = [1, 1]} : vector<8x384xf32> to vector<8x128xf32>
    %158 = arith.addf %156, %157 : vector<8x128xf32>
    %159 = arith.negf %158 : vector<8x128xf32>
    %160 = math.exp %159 : vector<8x128xf32>
    %cst_43 = arith.constant 1.000000e+00 : f32
    %161 = vector.broadcast %cst_43 : f32 to vector<8x128xf32>
    %162 = arith.addf %161, %160 : vector<8x128xf32>
    %163 = arith.divf %161, %162 : vector<8x128xf32>
    %164 = vector.extract_strided_slice %154 {offsets = [0, 128], sizes = [8, 128], strides = [1, 1]} : vector<8x384xf32> to vector<8x128xf32>
    %165 = vector.extract_strided_slice %155 {offsets = [0, 128], sizes = [8, 128], strides = [1, 1]} : vector<8x384xf32> to vector<8x128xf32>
    %166 = arith.addf %164, %165 : vector<8x128xf32>
    %167 = arith.negf %166 : vector<8x128xf32>
    %168 = math.exp %167 : vector<8x128xf32>
    %cst_44 = arith.constant 1.000000e+00 : f32
    %169 = vector.broadcast %cst_44 : f32 to vector<8x128xf32>
    %170 = arith.addf %169, %168 : vector<8x128xf32>
    %171 = arith.divf %169, %170 : vector<8x128xf32>
    %172 = vector.extract_strided_slice %154 {offsets = [0, 256], sizes = [8, 128], strides = [1, 1]} : vector<8x384xf32> to vector<8x128xf32>
    %173 = vector.extract_strided_slice %155 {offsets = [0, 256], sizes = [8, 128], strides = [1, 1]} : vector<8x384xf32> to vector<8x128xf32>
    %174 = vector.broadcast %9 : vector<1x128xf32> to vector<8x128xf32>
    %175 = arith.addf %173, %174 : vector<8x128xf32>
    %176 = arith.mulf %163, %175 : vector<8x128xf32>
    %177 = arith.addf %172, %176 : vector<8x128xf32>
    %178 = math.tanh %177 : vector<8x128xf32>
    %cst_45 = arith.constant 1.000000e+00 : f32
    %179 = vector.broadcast %cst_45 : f32 to vector<8x128xf32>
    %180 = arith.subf %179, %171 : vector<8x128xf32>
    %181 = arith.mulf %180, %178 : vector<8x128xf32>
    %182 = arith.mulf %171, %148 : vector<8x128xf32>
    %183 = arith.addf %181, %182 : vector<8x128xf32>
    %184 = arith.index_cast %152 : i32 to index
    %c0_46 = arith.constant 0 : index
    %185 = vector.load %arg24[%184, %c0_46] : memref<64x128xf32, #tpu.memory_space<vmem>>, vector<8x128xf32>
    tpu.vector_store %arg24[%184, %c0_46], %183 {strides = array<i32>} : memref<64x128xf32, #tpu.memory_space<vmem>>, vector<8x128xf32>,
    %c5_i32 = arith.constant 5 : i32
    %c8_i32_47 = arith.constant 8 : i32
    %186 = arith.muli %c5_i32, %c8_i32_47 : i32
    %187 = tpu.assume_multiple %186, 8 : i32
    %188 = arith.index_cast %187 : i32 to index
    %c0_48 = arith.constant 0 : index
    %189 = vector.load %arg23[%188, %c0_48] : memref<64x384xf32, #tpu.memory_space<vmem>>, vector<8x384xf32>
    %cst_49 = arith.constant dense<0.000000e+00> : vector<8x384xf32>
    %190 = tpu.matmul %183, %8, %cst_49 {dimension_numbers = #tpu.dot_dimension_numbers<[1], [0], [0], [1], [0, 0, 1, 1], [], []>} : vector<8x128xf32>, vector<128x384xf32>, vector<8x384xf32> -> vector<8x384xf32>
    %191 = vector.extract_strided_slice %189 {offsets = [0, 0], sizes = [8, 128], strides = [1, 1]} : vector<8x384xf32> to vector<8x128xf32>
    %192 = vector.extract_strided_slice %190 {offsets = [0, 0], sizes = [8, 128], strides = [1, 1]} : vector<8x384xf32> to vector<8x128xf32>
    %193 = arith.addf %191, %192 : vector<8x128xf32>
    %194 = arith.negf %193 : vector<8x128xf32>
    %195 = math.exp %194 : vector<8x128xf32>
    %cst_50 = arith.constant 1.000000e+00 : f32
    %196 = vector.broadcast %cst_50 : f32 to vector<8x128xf32>
    %197 = arith.addf %196, %195 : vector<8x128xf32>
    %198 = arith.divf %196, %197 : vector<8x128xf32>
    %199 = vector.extract_strided_slice %189 {offsets = [0, 128], sizes = [8, 128], strides = [1, 1]} : vector<8x384xf32> to vector<8x128xf32>
    %200 = vector.extract_strided_slice %190 {offsets = [0, 128], sizes = [8, 128], strides = [1, 1]} : vector<8x384xf32> to vector<8x128xf32>
    %201 = arith.addf %199, %200 : vector<8x128xf32>
    %202 = arith.negf %201 : vector<8x128xf32>
    %203 = math.exp %202 : vector<8x128xf32>
    %cst_51 = arith.constant 1.000000e+00 : f32
    %204 = vector.broadcast %cst_51 : f32 to vector<8x128xf32>
    %205 = arith.addf %204, %203 : vector<8x128xf32>
    %206 = arith.divf %204, %205 : vector<8x128xf32>
    %207 = vector.extract_strided_slice %189 {offsets = [0, 256], sizes = [8, 128], strides = [1, 1]} : vector<8x384xf32> to vector<8x128xf32>
    %208 = vector.extract_strided_slice %190 {offsets = [0, 256], sizes = [8, 128], strides = [1, 1]} : vector<8x384xf32> to vector<8x128xf32>
    %209 = vector.broadcast %9 : vector<1x128xf32> to vector<8x128xf32>
    %210 = arith.addf %208, %209 : vector<8x128xf32>
    %211 = arith.mulf %198, %210 : vector<8x128xf32>
    %212 = arith.addf %207, %211 : vector<8x128xf32>
    %213 = math.tanh %212 : vector<8x128xf32>
    %cst_52 = arith.constant 1.000000e+00 : f32
    %214 = vector.broadcast %cst_52 : f32 to vector<8x128xf32>
    %215 = arith.subf %214, %206 : vector<8x128xf32>
    %216 = arith.mulf %215, %213 : vector<8x128xf32>
    %217 = arith.mulf %206, %183 : vector<8x128xf32>
    %218 = arith.addf %216, %217 : vector<8x128xf32>
    %219 = arith.index_cast %187 : i32 to index
    %c0_53 = arith.constant 0 : index
    %220 = vector.load %arg24[%219, %c0_53] : memref<64x128xf32, #tpu.memory_space<vmem>>, vector<8x128xf32>
    tpu.vector_store %arg24[%219, %c0_53], %218 {strides = array<i32>} : memref<64x128xf32, #tpu.memory_space<vmem>>, vector<8x128xf32>,
    %c6_i32 = arith.constant 6 : i32
    %c8_i32_54 = arith.constant 8 : i32
    %221 = arith.muli %c6_i32, %c8_i32_54 : i32
    %222 = tpu.assume_multiple %221, 8 : i32
    %223 = arith.index_cast %222 : i32 to index
    %c0_55 = arith.constant 0 : index
    %224 = vector.load %arg23[%223, %c0_55] : memref<64x384xf32, #tpu.memory_space<vmem>>, vector<8x384xf32>
    %cst_56 = arith.constant dense<0.000000e+00> : vector<8x384xf32>
    %225 = tpu.matmul %218, %8, %cst_56 {dimension_numbers = #tpu.dot_dimension_numbers<[1], [0], [0], [1], [0, 0, 1, 1], [], []>} : vector<8x128xf32>, vector<128x384xf32>, vector<8x384xf32> -> vector<8x384xf32>
    %226 = vector.extract_strided_slice %224 {offsets = [0, 0], sizes = [8, 128], strides = [1, 1]} : vector<8x384xf32> to vector<8x128xf32>
    %227 = vector.extract_strided_slice %225 {offsets = [0, 0], sizes = [8, 128], strides = [1, 1]} : vector<8x384xf32> to vector<8x128xf32>
    %228 = arith.addf %226, %227 : vector<8x128xf32>
    %229 = arith.negf %228 : vector<8x128xf32>
    %230 = math.exp %229 : vector<8x128xf32>
    %cst_57 = arith.constant 1.000000e+00 : f32
    %231 = vector.broadcast %cst_57 : f32 to vector<8x128xf32>
    %232 = arith.addf %231, %230 : vector<8x128xf32>
    %233 = arith.divf %231, %232 : vector<8x128xf32>
    %234 = vector.extract_strided_slice %224 {offsets = [0, 128], sizes = [8, 128], strides = [1, 1]} : vector<8x384xf32> to vector<8x128xf32>
    %235 = vector.extract_strided_slice %225 {offsets = [0, 128], sizes = [8, 128], strides = [1, 1]} : vector<8x384xf32> to vector<8x128xf32>
    %236 = arith.addf %234, %235 : vector<8x128xf32>
    %237 = arith.negf %236 : vector<8x128xf32>
    %238 = math.exp %237 : vector<8x128xf32>
    %cst_58 = arith.constant 1.000000e+00 : f32
    %239 = vector.broadcast %cst_58 : f32 to vector<8x128xf32>
    %240 = arith.addf %239, %238 : vector<8x128xf32>
    %241 = arith.divf %239, %240 : vector<8x128xf32>
    %242 = vector.extract_strided_slice %224 {offsets = [0, 256], sizes = [8, 128], strides = [1, 1]} : vector<8x384xf32> to vector<8x128xf32>
    %243 = vector.extract_strided_slice %225 {offsets = [0, 256], sizes = [8, 128], strides = [1, 1]} : vector<8x384xf32> to vector<8x128xf32>
    %244 = vector.broadcast %9 : vector<1x128xf32> to vector<8x128xf32>
    %245 = arith.addf %243, %244 : vector<8x128xf32>
    %246 = arith.mulf %233, %245 : vector<8x128xf32>
    %247 = arith.addf %242, %246 : vector<8x128xf32>
    %248 = math.tanh %247 : vector<8x128xf32>
    %cst_59 = arith.constant 1.000000e+00 : f32
    %249 = vector.broadcast %cst_59 : f32 to vector<8x128xf32>
    %250 = arith.subf %249, %241 : vector<8x128xf32>
    %251 = arith.mulf %250, %248 : vector<8x128xf32>
    %252 = arith.mulf %241, %218 : vector<8x128xf32>
    %253 = arith.addf %251, %252 : vector<8x128xf32>
    %254 = arith.index_cast %222 : i32 to index
    %c0_60 = arith.constant 0 : index
    %255 = vector.load %arg24[%254, %c0_60] : memref<64x128xf32, #tpu.memory_space<vmem>>, vector<8x128xf32>
    tpu.vector_store %arg24[%254, %c0_60], %253 {strides = array<i32>} : memref<64x128xf32, #tpu.memory_space<vmem>>, vector<8x128xf32>,
    %c7_i32 = arith.constant 7 : i32
    %c8_i32_61 = arith.constant 8 : i32
    %256 = arith.muli %c7_i32, %c8_i32_61 : i32
    %257 = tpu.assume_multiple %256, 8 : i32
    %258 = arith.index_cast %257 : i32 to index
    %c0_62 = arith.constant 0 : index
    %259 = vector.load %arg23[%258, %c0_62] : memref<64x384xf32, #tpu.memory_space<vmem>>, vector<8x384xf32>
    %cst_63 = arith.constant dense<0.000000e+00> : vector<8x384xf32>
    %260 = tpu.matmul %253, %8, %cst_63 {dimension_numbers = #tpu.dot_dimension_numbers<[1], [0], [0], [1], [0, 0, 1, 1], [], []>} : vector<8x128xf32>, vector<128x384xf32>, vector<8x384xf32> -> vector<8x384xf32>
    %261 = vector.extract_strided_slice %259 {offsets = [0, 0], sizes = [8, 128], strides = [1, 1]} : vector<8x384xf32> to vector<8x128xf32>
    %262 = vector.extract_strided_slice %260 {offsets = [0, 0], sizes = [8, 128], strides = [1, 1]} : vector<8x384xf32> to vector<8x128xf32>
    %263 = arith.addf %261, %262 : vector<8x128xf32>
    %264 = arith.negf %263 : vector<8x128xf32>
    %265 = math.exp %264 : vector<8x128xf32>
    %cst_64 = arith.constant 1.000000e+00 : f32
    %266 = vector.broadcast %cst_64 : f32 to vector<8x128xf32>
    %267 = arith.addf %266, %265 : vector<8x128xf32>
    %268 = arith.divf %266, %267 : vector<8x128xf32>
    %269 = vector.extract_strided_slice %259 {offsets = [0, 128], sizes = [8, 128], strides = [1, 1]} : vector<8x384xf32> to vector<8x128xf32>
    %270 = vector.extract_strided_slice %260 {offsets = [0, 128], sizes = [8, 128], strides = [1, 1]} : vector<8x384xf32> to vector<8x128xf32>
    %271 = arith.addf %269, %270 : vector<8x128xf32>
    %272 = arith.negf %271 : vector<8x128xf32>
    %273 = math.exp %272 : vector<8x128xf32>
    %cst_65 = arith.constant 1.000000e+00 : f32
    %274 = vector.broadcast %cst_65 : f32 to vector<8x128xf32>
    %275 = arith.addf %274, %273 : vector<8x128xf32>
    %276 = arith.divf %274, %275 : vector<8x128xf32>
    %277 = vector.extract_strided_slice %259 {offsets = [0, 256], sizes = [8, 128], strides = [1, 1]} : vector<8x384xf32> to vector<8x128xf32>
    %278 = vector.extract_strided_slice %260 {offsets = [0, 256], sizes = [8, 128], strides = [1, 1]} : vector<8x384xf32> to vector<8x128xf32>
    %279 = vector.broadcast %9 : vector<1x128xf32> to vector<8x128xf32>
    %280 = arith.addf %278, %279 : vector<8x128xf32>
    %281 = arith.mulf %268, %280 : vector<8x128xf32>
    %282 = arith.addf %277, %281 : vector<8x128xf32>
    %283 = math.tanh %282 : vector<8x128xf32>
    %cst_66 = arith.constant 1.000000e+00 : f32
    %284 = vector.broadcast %cst_66 : f32 to vector<8x128xf32>
    %285 = arith.subf %284, %276 : vector<8x128xf32>
    %286 = arith.mulf %285, %283 : vector<8x128xf32>
    %287 = arith.mulf %276, %253 : vector<8x128xf32>
    %288 = arith.addf %286, %287 : vector<8x128xf32>
    %289 = arith.index_cast %257 : i32 to index
    %c0_67 = arith.constant 0 : index
    %290 = vector.load %arg24[%289, %c0_67] : memref<64x128xf32, #tpu.memory_space<vmem>>, vector<8x128xf32>
    tpu.vector_store %arg24[%289, %c0_67], %288 {strides = array<i32>} : memref<64x128xf32, #tpu.memory_space<vmem>>, vector<8x128xf32>,
    %c8_i32_68 = arith.constant 8 : i32
    %c0_69 = arith.constant 0 : index
    %c0_70 = arith.constant 0 : index
    %291 = vector.load %arg24[%c0_69, %c0_70] : memref<64x128xf32, #tpu.memory_space<vmem>>, vector<64x128xf32>
    %c0_71 = arith.constant 0 : index
    %c0_72 = arith.constant 0 : index
    %292 = vector.load %arg6[%c0_71, %c0_72] : memref<128x384xf32, #tpu.memory_space<vmem>>, vector<128x384xf32>
    %cst_73 = arith.constant dense<0.000000e+00> : vector<64x384xf32>
    %293 = tpu.matmul %291, %292, %cst_73 {dimension_numbers = #tpu.dot_dimension_numbers<[1], [0], [0], [1], [0, 0, 1, 1], [], []>} : vector<64x128xf32>, vector<128x384xf32>, vector<64x384xf32> -> vector<64x384xf32>
    %c0_74 = arith.constant 0 : index
    %c0_75 = arith.constant 0 : index
    %294 = vector.load %arg8[%c0_74, %c0_75] : memref<1x384xf32, #tpu.memory_space<vmem>>, vector<1x384xf32>
    %295 = vector.broadcast %294 : vector<1x384xf32> to vector<64x384xf32>
    %296 = arith.addf %293, %295 : vector<64x384xf32>
    %c0_76 = arith.constant 0 : index
    %c0_77 = arith.constant 0 : index
    %297 = vector.load %arg23[%c0_76, %c0_77] : memref<64x384xf32, #tpu.memory_space<vmem>>, vector<64x384xf32>
    tpu.vector_store %arg23[%c0_76, %c0_77], %296 {strides = array<i32>} : memref<64x384xf32, #tpu.memory_space<vmem>>, vector<64x384xf32>,
    %c0_78 = arith.constant 0 : index
    %c0_79 = arith.constant 0 : index
    %298 = vector.load %arg7[%c0_78, %c0_79] : memref<128x384xf32, #tpu.memory_space<vmem>>, vector<128x384xf32>
    %c0_80 = arith.constant 0 : index
    %c0_81 = arith.constant 0 : index
    %299 = vector.load %arg9[%c0_80, %c0_81] : memref<1x128xf32, #tpu.memory_space<vmem>>, vector<1x128xf32>
    %cst_82 = arith.constant 0.000000e+00 : f32
    %300 = vector.broadcast %cst_82 : f32 to vector<8x128xf32>
    %c0_i32_83 = arith.constant 0 : i32
    %c8_i32_84 = arith.constant 8 : i32
    %301 = arith.muli %c0_i32_83, %c8_i32_84 : i32
    %302 = tpu.assume_multiple %301, 8 : i32
    %303 = arith.index_cast %302 : i32 to index
    %c0_85 = arith.constant 0 : index
    %304 = vector.load %arg23[%303, %c0_85] : memref<64x384xf32, #tpu.memory_space<vmem>>, vector<8x384xf32>
    %cst_86 = arith.constant dense<0.000000e+00> : vector<8x384xf32>
    %305 = tpu.matmul %300, %298, %cst_86 {dimension_numbers = #tpu.dot_dimension_numbers<[1], [0], [0], [1], [0, 0, 1, 1], [], []>} : vector<8x128xf32>, vector<128x384xf32>, vector<8x384xf32> -> vector<8x384xf32>
    %306 = vector.extract_strided_slice %304 {offsets = [0, 0], sizes = [8, 128], strides = [1, 1]} : vector<8x384xf32> to vector<8x128xf32>
    %307 = vector.extract_strided_slice %305 {offsets = [0, 0], sizes = [8, 128], strides = [1, 1]} : vector<8x384xf32> to vector<8x128xf32>
    %308 = arith.addf %306, %307 : vector<8x128xf32>
    %309 = arith.negf %308 : vector<8x128xf32>
    %310 = math.exp %309 : vector<8x128xf32>
    %cst_87 = arith.constant 1.000000e+00 : f32
    %311 = vector.broadcast %cst_87 : f32 to vector<8x128xf32>
    %312 = arith.addf %311, %310 : vector<8x128xf32>
    %313 = arith.divf %311, %312 : vector<8x128xf32>
    %314 = vector.extract_strided_slice %304 {offsets = [0, 128], sizes = [8, 128], strides = [1, 1]} : vector<8x384xf32> to vector<8x128xf32>
    %315 = vector.extract_strided_slice %305 {offsets = [0, 128], sizes = [8, 128], strides = [1, 1]} : vector<8x384xf32> to vector<8x128xf32>
    %316 = arith.addf %314, %315 : vector<8x128xf32>
    %317 = arith.negf %316 : vector<8x128xf32>
    %318 = math.exp %317 : vector<8x128xf32>
    %cst_88 = arith.constant 1.000000e+00 : f32
    %319 = vector.broadcast %cst_88 : f32 to vector<8x128xf32>
    %320 = arith.addf %319, %318 : vector<8x128xf32>
    %321 = arith.divf %319, %320 : vector<8x128xf32>
    %322 = vector.extract_strided_slice %304 {offsets = [0, 256], sizes = [8, 128], strides = [1, 1]} : vector<8x384xf32> to vector<8x128xf32>
    %323 = vector.extract_strided_slice %305 {offsets = [0, 256], sizes = [8, 128], strides = [1, 1]} : vector<8x384xf32> to vector<8x128xf32>
    %324 = vector.broadcast %299 : vector<1x128xf32> to vector<8x128xf32>
    %325 = arith.addf %323, %324 : vector<8x128xf32>
    %326 = arith.mulf %313, %325 : vector<8x128xf32>
    %327 = arith.addf %322, %326 : vector<8x128xf32>
    %328 = math.tanh %327 : vector<8x128xf32>
    %cst_89 = arith.constant 1.000000e+00 : f32
    %329 = vector.broadcast %cst_89 : f32 to vector<8x128xf32>
    %330 = arith.subf %329, %321 : vector<8x128xf32>
    %331 = arith.mulf %330, %328 : vector<8x128xf32>
    %332 = arith.mulf %321, %300 : vector<8x128xf32>
    %333 = arith.addf %331, %332 : vector<8x128xf32>
    %334 = arith.index_cast %302 : i32 to index
    %c0_90 = arith.constant 0 : index
    %335 = vector.load %arg24[%334, %c0_90] : memref<64x128xf32, #tpu.memory_space<vmem>>, vector<8x128xf32>
    tpu.vector_store %arg24[%334, %c0_90], %333 {strides = array<i32>} : memref<64x128xf32, #tpu.memory_space<vmem>>, vector<8x128xf32>,
    %c1_i32_91 = arith.constant 1 : i32
    %c8_i32_92 = arith.constant 8 : i32
    %336 = arith.muli %c1_i32_91, %c8_i32_92 : i32
    %337 = tpu.assume_multiple %336, 8 : i32
    %338 = arith.index_cast %337 : i32 to index
    %c0_93 = arith.constant 0 : index
    %339 = vector.load %arg23[%338, %c0_93] : memref<64x384xf32, #tpu.memory_space<vmem>>, vector<8x384xf32>
    %cst_94 = arith.constant dense<0.000000e+00> : vector<8x384xf32>
    %340 = tpu.matmul %333, %298, %cst_94 {dimension_numbers = #tpu.dot_dimension_numbers<[1], [0], [0], [1], [0, 0, 1, 1], [], []>} : vector<8x128xf32>, vector<128x384xf32>, vector<8x384xf32> -> vector<8x384xf32>
    %341 = vector.extract_strided_slice %339 {offsets = [0, 0], sizes = [8, 128], strides = [1, 1]} : vector<8x384xf32> to vector<8x128xf32>
    %342 = vector.extract_strided_slice %340 {offsets = [0, 0], sizes = [8, 128], strides = [1, 1]} : vector<8x384xf32> to vector<8x128xf32>
    %343 = arith.addf %341, %342 : vector<8x128xf32>
    %344 = arith.negf %343 : vector<8x128xf32>
    %345 = math.exp %344 : vector<8x128xf32>
    %cst_95 = arith.constant 1.000000e+00 : f32
    %346 = vector.broadcast %cst_95 : f32 to vector<8x128xf32>
    %347 = arith.addf %346, %345 : vector<8x128xf32>
    %348 = arith.divf %346, %347 : vector<8x128xf32>
    %349 = vector.extract_strided_slice %339 {offsets = [0, 128], sizes = [8, 128], strides = [1, 1]} : vector<8x384xf32> to vector<8x128xf32>
    %350 = vector.extract_strided_slice %340 {offsets = [0, 128], sizes = [8, 128], strides = [1, 1]} : vector<8x384xf32> to vector<8x128xf32>
    %351 = arith.addf %349, %350 : vector<8x128xf32>
    %352 = arith.negf %351 : vector<8x128xf32>
    %353 = math.exp %352 : vector<8x128xf32>
    %cst_96 = arith.constant 1.000000e+00 : f32
    %354 = vector.broadcast %cst_96 : f32 to vector<8x128xf32>
    %355 = arith.addf %354, %353 : vector<8x128xf32>
    %356 = arith.divf %354, %355 : vector<8x128xf32>
    %357 = vector.extract_strided_slice %339 {offsets = [0, 256], sizes = [8, 128], strides = [1, 1]} : vector<8x384xf32> to vector<8x128xf32>
    %358 = vector.extract_strided_slice %340 {offsets = [0, 256], sizes = [8, 128], strides = [1, 1]} : vector<8x384xf32> to vector<8x128xf32>
    %359 = vector.broadcast %299 : vector<1x128xf32> to vector<8x128xf32>
    %360 = arith.addf %358, %359 : vector<8x128xf32>
    %361 = arith.mulf %348, %360 : vector<8x128xf32>
    %362 = arith.addf %357, %361 : vector<8x128xf32>
    %363 = math.tanh %362 : vector<8x128xf32>
    %cst_97 = arith.constant 1.000000e+00 : f32
    %364 = vector.broadcast %cst_97 : f32 to vector<8x128xf32>
    %365 = arith.subf %364, %356 : vector<8x128xf32>
    %366 = arith.mulf %365, %363 : vector<8x128xf32>
    %367 = arith.mulf %356, %333 : vector<8x128xf32>
    %368 = arith.addf %366, %367 : vector<8x128xf32>
    %369 = arith.index_cast %337 : i32 to index
    %c0_98 = arith.constant 0 : index
    %370 = vector.load %arg24[%369, %c0_98] : memref<64x128xf32, #tpu.memory_space<vmem>>, vector<8x128xf32>
    tpu.vector_store %arg24[%369, %c0_98], %368 {strides = array<i32>} : memref<64x128xf32, #tpu.memory_space<vmem>>, vector<8x128xf32>,
    %c2_i32_99 = arith.constant 2 : i32
    %c8_i32_100 = arith.constant 8 : i32
    %371 = arith.muli %c2_i32_99, %c8_i32_100 : i32
    %372 = tpu.assume_multiple %371, 8 : i32
    %373 = arith.index_cast %372 : i32 to index
    %c0_101 = arith.constant 0 : index
    %374 = vector.load %arg23[%373, %c0_101] : memref<64x384xf32, #tpu.memory_space<vmem>>, vector<8x384xf32>
    %cst_102 = arith.constant dense<0.000000e+00> : vector<8x384xf32>
    %375 = tpu.matmul %368, %298, %cst_102 {dimension_numbers = #tpu.dot_dimension_numbers<[1], [0], [0], [1], [0, 0, 1, 1], [], []>} : vector<8x128xf32>, vector<128x384xf32>, vector<8x384xf32> -> vector<8x384xf32>
    %376 = vector.extract_strided_slice %374 {offsets = [0, 0], sizes = [8, 128], strides = [1, 1]} : vector<8x384xf32> to vector<8x128xf32>
    %377 = vector.extract_strided_slice %375 {offsets = [0, 0], sizes = [8, 128], strides = [1, 1]} : vector<8x384xf32> to vector<8x128xf32>
    %378 = arith.addf %376, %377 : vector<8x128xf32>
    %379 = arith.negf %378 : vector<8x128xf32>
    %380 = math.exp %379 : vector<8x128xf32>
    %cst_103 = arith.constant 1.000000e+00 : f32
    %381 = vector.broadcast %cst_103 : f32 to vector<8x128xf32>
    %382 = arith.addf %381, %380 : vector<8x128xf32>
    %383 = arith.divf %381, %382 : vector<8x128xf32>
    %384 = vector.extract_strided_slice %374 {offsets = [0, 128], sizes = [8, 128], strides = [1, 1]} : vector<8x384xf32> to vector<8x128xf32>
    %385 = vector.extract_strided_slice %375 {offsets = [0, 128], sizes = [8, 128], strides = [1, 1]} : vector<8x384xf32> to vector<8x128xf32>
    %386 = arith.addf %384, %385 : vector<8x128xf32>
    %387 = arith.negf %386 : vector<8x128xf32>
    %388 = math.exp %387 : vector<8x128xf32>
    %cst_104 = arith.constant 1.000000e+00 : f32
    %389 = vector.broadcast %cst_104 : f32 to vector<8x128xf32>
    %390 = arith.addf %389, %388 : vector<8x128xf32>
    %391 = arith.divf %389, %390 : vector<8x128xf32>
    %392 = vector.extract_strided_slice %374 {offsets = [0, 256], sizes = [8, 128], strides = [1, 1]} : vector<8x384xf32> to vector<8x128xf32>
    %393 = vector.extract_strided_slice %375 {offsets = [0, 256], sizes = [8, 128], strides = [1, 1]} : vector<8x384xf32> to vector<8x128xf32>
    %394 = vector.broadcast %299 : vector<1x128xf32> to vector<8x128xf32>
    %395 = arith.addf %393, %394 : vector<8x128xf32>
    %396 = arith.mulf %383, %395 : vector<8x128xf32>
    %397 = arith.addf %392, %396 : vector<8x128xf32>
    %398 = math.tanh %397 : vector<8x128xf32>
    %cst_105 = arith.constant 1.000000e+00 : f32
    %399 = vector.broadcast %cst_105 : f32 to vector<8x128xf32>
    %400 = arith.subf %399, %391 : vector<8x128xf32>
    %401 = arith.mulf %400, %398 : vector<8x128xf32>
    %402 = arith.mulf %391, %368 : vector<8x128xf32>
    %403 = arith.addf %401, %402 : vector<8x128xf32>
    %404 = arith.index_cast %372 : i32 to index
    %c0_106 = arith.constant 0 : index
    %405 = vector.load %arg24[%404, %c0_106] : memref<64x128xf32, #tpu.memory_space<vmem>>, vector<8x128xf32>
    tpu.vector_store %arg24[%404, %c0_106], %403 {strides = array<i32>} : memref<64x128xf32, #tpu.memory_space<vmem>>, vector<8x128xf32>,
    %c3_i32_107 = arith.constant 3 : i32
    %c8_i32_108 = arith.constant 8 : i32
    %406 = arith.muli %c3_i32_107, %c8_i32_108 : i32
    %407 = tpu.assume_multiple %406, 8 : i32
    %408 = arith.index_cast %407 : i32 to index
    %c0_109 = arith.constant 0 : index
    %409 = vector.load %arg23[%408, %c0_109] : memref<64x384xf32, #tpu.memory_space<vmem>>, vector<8x384xf32>
    %cst_110 = arith.constant dense<0.000000e+00> : vector<8x384xf32>
    %410 = tpu.matmul %403, %298, %cst_110 {dimension_numbers = #tpu.dot_dimension_numbers<[1], [0], [0], [1], [0, 0, 1, 1], [], []>} : vector<8x128xf32>, vector<128x384xf32>, vector<8x384xf32> -> vector<8x384xf32>
    %411 = vector.extract_strided_slice %409 {offsets = [0, 0], sizes = [8, 128], strides = [1, 1]} : vector<8x384xf32> to vector<8x128xf32>
    %412 = vector.extract_strided_slice %410 {offsets = [0, 0], sizes = [8, 128], strides = [1, 1]} : vector<8x384xf32> to vector<8x128xf32>
    %413 = arith.addf %411, %412 : vector<8x128xf32>
    %414 = arith.negf %413 : vector<8x128xf32>
    %415 = math.exp %414 : vector<8x128xf32>
    %cst_111 = arith.constant 1.000000e+00 : f32
    %416 = vector.broadcast %cst_111 : f32 to vector<8x128xf32>
    %417 = arith.addf %416, %415 : vector<8x128xf32>
    %418 = arith.divf %416, %417 : vector<8x128xf32>
    %419 = vector.extract_strided_slice %409 {offsets = [0, 128], sizes = [8, 128], strides = [1, 1]} : vector<8x384xf32> to vector<8x128xf32>
    %420 = vector.extract_strided_slice %410 {offsets = [0, 128], sizes = [8, 128], strides = [1, 1]} : vector<8x384xf32> to vector<8x128xf32>
    %421 = arith.addf %419, %420 : vector<8x128xf32>
    %422 = arith.negf %421 : vector<8x128xf32>
    %423 = math.exp %422 : vector<8x128xf32>
    %cst_112 = arith.constant 1.000000e+00 : f32
    %424 = vector.broadcast %cst_112 : f32 to vector<8x128xf32>
    %425 = arith.addf %424, %423 : vector<8x128xf32>
    %426 = arith.divf %424, %425 : vector<8x128xf32>
    %427 = vector.extract_strided_slice %409 {offsets = [0, 256], sizes = [8, 128], strides = [1, 1]} : vector<8x384xf32> to vector<8x128xf32>
    %428 = vector.extract_strided_slice %410 {offsets = [0, 256], sizes = [8, 128], strides = [1, 1]} : vector<8x384xf32> to vector<8x128xf32>
    %429 = vector.broadcast %299 : vector<1x128xf32> to vector<8x128xf32>
    %430 = arith.addf %428, %429 : vector<8x128xf32>
    %431 = arith.mulf %418, %430 : vector<8x128xf32>
    %432 = arith.addf %427, %431 : vector<8x128xf32>
    %433 = math.tanh %432 : vector<8x128xf32>
    %cst_113 = arith.constant 1.000000e+00 : f32
    %434 = vector.broadcast %cst_113 : f32 to vector<8x128xf32>
    %435 = arith.subf %434, %426 : vector<8x128xf32>
    %436 = arith.mulf %435, %433 : vector<8x128xf32>
    %437 = arith.mulf %426, %403 : vector<8x128xf32>
    %438 = arith.addf %436, %437 : vector<8x128xf32>
    %439 = arith.index_cast %407 : i32 to index
    %c0_114 = arith.constant 0 : index
    %440 = vector.load %arg24[%439, %c0_114] : memref<64x128xf32, #tpu.memory_space<vmem>>, vector<8x128xf32>
    tpu.vector_store %arg24[%439, %c0_114], %438 {strides = array<i32>} : memref<64x128xf32, #tpu.memory_space<vmem>>, vector<8x128xf32>,
    %c4_i32_115 = arith.constant 4 : i32
    %c8_i32_116 = arith.constant 8 : i32
    %441 = arith.muli %c4_i32_115, %c8_i32_116 : i32
    %442 = tpu.assume_multiple %441, 8 : i32
    %443 = arith.index_cast %442 : i32 to index
    %c0_117 = arith.constant 0 : index
    %444 = vector.load %arg23[%443, %c0_117] : memref<64x384xf32, #tpu.memory_space<vmem>>, vector<8x384xf32>
    %cst_118 = arith.constant dense<0.000000e+00> : vector<8x384xf32>
    %445 = tpu.matmul %438, %298, %cst_118 {dimension_numbers = #tpu.dot_dimension_numbers<[1], [0], [0], [1], [0, 0, 1, 1], [], []>} : vector<8x128xf32>, vector<128x384xf32>, vector<8x384xf32> -> vector<8x384xf32>
    %446 = vector.extract_strided_slice %444 {offsets = [0, 0], sizes = [8, 128], strides = [1, 1]} : vector<8x384xf32> to vector<8x128xf32>
    %447 = vector.extract_strided_slice %445 {offsets = [0, 0], sizes = [8, 128], strides = [1, 1]} : vector<8x384xf32> to vector<8x128xf32>
    %448 = arith.addf %446, %447 : vector<8x128xf32>
    %449 = arith.negf %448 : vector<8x128xf32>
    %450 = math.exp %449 : vector<8x128xf32>
    %cst_119 = arith.constant 1.000000e+00 : f32
    %451 = vector.broadcast %cst_119 : f32 to vector<8x128xf32>
    %452 = arith.addf %451, %450 : vector<8x128xf32>
    %453 = arith.divf %451, %452 : vector<8x128xf32>
    %454 = vector.extract_strided_slice %444 {offsets = [0, 128], sizes = [8, 128], strides = [1, 1]} : vector<8x384xf32> to vector<8x128xf32>
    %455 = vector.extract_strided_slice %445 {offsets = [0, 128], sizes = [8, 128], strides = [1, 1]} : vector<8x384xf32> to vector<8x128xf32>
    %456 = arith.addf %454, %455 : vector<8x128xf32>
    %457 = arith.negf %456 : vector<8x128xf32>
    %458 = math.exp %457 : vector<8x128xf32>
    %cst_120 = arith.constant 1.000000e+00 : f32
    %459 = vector.broadcast %cst_120 : f32 to vector<8x128xf32>
    %460 = arith.addf %459, %458 : vector<8x128xf32>
    %461 = arith.divf %459, %460 : vector<8x128xf32>
    %462 = vector.extract_strided_slice %444 {offsets = [0, 256], sizes = [8, 128], strides = [1, 1]} : vector<8x384xf32> to vector<8x128xf32>
    %463 = vector.extract_strided_slice %445 {offsets = [0, 256], sizes = [8, 128], strides = [1, 1]} : vector<8x384xf32> to vector<8x128xf32>
    %464 = vector.broadcast %299 : vector<1x128xf32> to vector<8x128xf32>
    %465 = arith.addf %463, %464 : vector<8x128xf32>
    %466 = arith.mulf %453, %465 : vector<8x128xf32>
    %467 = arith.addf %462, %466 : vector<8x128xf32>
    %468 = math.tanh %467 : vector<8x128xf32>
    %cst_121 = arith.constant 1.000000e+00 : f32
    %469 = vector.broadcast %cst_121 : f32 to vector<8x128xf32>
    %470 = arith.subf %469, %461 : vector<8x128xf32>
    %471 = arith.mulf %470, %468 : vector<8x128xf32>
    %472 = arith.mulf %461, %438 : vector<8x128xf32>
    %473 = arith.addf %471, %472 : vector<8x128xf32>
    %474 = arith.index_cast %442 : i32 to index
    %c0_122 = arith.constant 0 : index
    %475 = vector.load %arg24[%474, %c0_122] : memref<64x128xf32, #tpu.memory_space<vmem>>, vector<8x128xf32>
    tpu.vector_store %arg24[%474, %c0_122], %473 {strides = array<i32>} : memref<64x128xf32, #tpu.memory_space<vmem>>, vector<8x128xf32>,
    %c5_i32_123 = arith.constant 5 : i32
    %c8_i32_124 = arith.constant 8 : i32
    %476 = arith.muli %c5_i32_123, %c8_i32_124 : i32
    %477 = tpu.assume_multiple %476, 8 : i32
    %478 = arith.index_cast %477 : i32 to index
    %c0_125 = arith.constant 0 : index
    %479 = vector.load %arg23[%478, %c0_125] : memref<64x384xf32, #tpu.memory_space<vmem>>, vector<8x384xf32>
    %cst_126 = arith.constant dense<0.000000e+00> : vector<8x384xf32>
    %480 = tpu.matmul %473, %298, %cst_126 {dimension_numbers = #tpu.dot_dimension_numbers<[1], [0], [0], [1], [0, 0, 1, 1], [], []>} : vector<8x128xf32>, vector<128x384xf32>, vector<8x384xf32> -> vector<8x384xf32>
    %481 = vector.extract_strided_slice %479 {offsets = [0, 0], sizes = [8, 128], strides = [1, 1]} : vector<8x384xf32> to vector<8x128xf32>
    %482 = vector.extract_strided_slice %480 {offsets = [0, 0], sizes = [8, 128], strides = [1, 1]} : vector<8x384xf32> to vector<8x128xf32>
    %483 = arith.addf %481, %482 : vector<8x128xf32>
    %484 = arith.negf %483 : vector<8x128xf32>
    %485 = math.exp %484 : vector<8x128xf32>
    %cst_127 = arith.constant 1.000000e+00 : f32
    %486 = vector.broadcast %cst_127 : f32 to vector<8x128xf32>
    %487 = arith.addf %486, %485 : vector<8x128xf32>
    %488 = arith.divf %486, %487 : vector<8x128xf32>
    %489 = vector.extract_strided_slice %479 {offsets = [0, 128], sizes = [8, 128], strides = [1, 1]} : vector<8x384xf32> to vector<8x128xf32>
    %490 = vector.extract_strided_slice %480 {offsets = [0, 128], sizes = [8, 128], strides = [1, 1]} : vector<8x384xf32> to vector<8x128xf32>
    %491 = arith.addf %489, %490 : vector<8x128xf32>
    %492 = arith.negf %491 : vector<8x128xf32>
    %493 = math.exp %492 : vector<8x128xf32>
    %cst_128 = arith.constant 1.000000e+00 : f32
    %494 = vector.broadcast %cst_128 : f32 to vector<8x128xf32>
    %495 = arith.addf %494, %493 : vector<8x128xf32>
    %496 = arith.divf %494, %495 : vector<8x128xf32>
    %497 = vector.extract_strided_slice %479 {offsets = [0, 256], sizes = [8, 128], strides = [1, 1]} : vector<8x384xf32> to vector<8x128xf32>
    %498 = vector.extract_strided_slice %480 {offsets = [0, 256], sizes = [8, 128], strides = [1, 1]} : vector<8x384xf32> to vector<8x128xf32>
    %499 = vector.broadcast %299 : vector<1x128xf32> to vector<8x128xf32>
    %500 = arith.addf %498, %499 : vector<8x128xf32>
    %501 = arith.mulf %488, %500 : vector<8x128xf32>
    %502 = arith.addf %497, %501 : vector<8x128xf32>
    %503 = math.tanh %502 : vector<8x128xf32>
    %cst_129 = arith.constant 1.000000e+00 : f32
    %504 = vector.broadcast %cst_129 : f32 to vector<8x128xf32>
    %505 = arith.subf %504, %496 : vector<8x128xf32>
    %506 = arith.mulf %505, %503 : vector<8x128xf32>
    %507 = arith.mulf %496, %473 : vector<8x128xf32>
    %508 = arith.addf %506, %507 : vector<8x128xf32>
    %509 = arith.index_cast %477 : i32 to index
    %c0_130 = arith.constant 0 : index
    %510 = vector.load %arg24[%509, %c0_130] : memref<64x128xf32, #tpu.memory_space<vmem>>, vector<8x128xf32>
    tpu.vector_store %arg24[%509, %c0_130], %508 {strides = array<i32>} : memref<64x128xf32, #tpu.memory_space<vmem>>, vector<8x128xf32>,
    %c6_i32_131 = arith.constant 6 : i32
    %c8_i32_132 = arith.constant 8 : i32
    %511 = arith.muli %c6_i32_131, %c8_i32_132 : i32
    %512 = tpu.assume_multiple %511, 8 : i32
    %513 = arith.index_cast %512 : i32 to index
    %c0_133 = arith.constant 0 : index
    %514 = vector.load %arg23[%513, %c0_133] : memref<64x384xf32, #tpu.memory_space<vmem>>, vector<8x384xf32>
    %cst_134 = arith.constant dense<0.000000e+00> : vector<8x384xf32>
    %515 = tpu.matmul %508, %298, %cst_134 {dimension_numbers = #tpu.dot_dimension_numbers<[1], [0], [0], [1], [0, 0, 1, 1], [], []>} : vector<8x128xf32>, vector<128x384xf32>, vector<8x384xf32> -> vector<8x384xf32>
    %516 = vector.extract_strided_slice %514 {offsets = [0, 0], sizes = [8, 128], strides = [1, 1]} : vector<8x384xf32> to vector<8x128xf32>
    %517 = vector.extract_strided_slice %515 {offsets = [0, 0], sizes = [8, 128], strides = [1, 1]} : vector<8x384xf32> to vector<8x128xf32>
    %518 = arith.addf %516, %517 : vector<8x128xf32>
    %519 = arith.negf %518 : vector<8x128xf32>
    %520 = math.exp %519 : vector<8x128xf32>
    %cst_135 = arith.constant 1.000000e+00 : f32
    %521 = vector.broadcast %cst_135 : f32 to vector<8x128xf32>
    %522 = arith.addf %521, %520 : vector<8x128xf32>
    %523 = arith.divf %521, %522 : vector<8x128xf32>
    %524 = vector.extract_strided_slice %514 {offsets = [0, 128], sizes = [8, 128], strides = [1, 1]} : vector<8x384xf32> to vector<8x128xf32>
    %525 = vector.extract_strided_slice %515 {offsets = [0, 128], sizes = [8, 128], strides = [1, 1]} : vector<8x384xf32> to vector<8x128xf32>
    %526 = arith.addf %524, %525 : vector<8x128xf32>
    %527 = arith.negf %526 : vector<8x128xf32>
    %528 = math.exp %527 : vector<8x128xf32>
    %cst_136 = arith.constant 1.000000e+00 : f32
    %529 = vector.broadcast %cst_136 : f32 to vector<8x128xf32>
    %530 = arith.addf %529, %528 : vector<8x128xf32>
    %531 = arith.divf %529, %530 : vector<8x128xf32>
    %532 = vector.extract_strided_slice %514 {offsets = [0, 256], sizes = [8, 128], strides = [1, 1]} : vector<8x384xf32> to vector<8x128xf32>
    %533 = vector.extract_strided_slice %515 {offsets = [0, 256], sizes = [8, 128], strides = [1, 1]} : vector<8x384xf32> to vector<8x128xf32>
    %534 = vector.broadcast %299 : vector<1x128xf32> to vector<8x128xf32>
    %535 = arith.addf %533, %534 : vector<8x128xf32>
    %536 = arith.mulf %523, %535 : vector<8x128xf32>
    %537 = arith.addf %532, %536 : vector<8x128xf32>
    %538 = math.tanh %537 : vector<8x128xf32>
    %cst_137 = arith.constant 1.000000e+00 : f32
    %539 = vector.broadcast %cst_137 : f32 to vector<8x128xf32>
    %540 = arith.subf %539, %531 : vector<8x128xf32>
    %541 = arith.mulf %540, %538 : vector<8x128xf32>
    %542 = arith.mulf %531, %508 : vector<8x128xf32>
    %543 = arith.addf %541, %542 : vector<8x128xf32>
    %544 = arith.index_cast %512 : i32 to index
    %c0_138 = arith.constant 0 : index
    %545 = vector.load %arg24[%544, %c0_138] : memref<64x128xf32, #tpu.memory_space<vmem>>, vector<8x128xf32>
    tpu.vector_store %arg24[%544, %c0_138], %543 {strides = array<i32>} : memref<64x128xf32, #tpu.memory_space<vmem>>, vector<8x128xf32>,
    %c7_i32_139 = arith.constant 7 : i32
    %c8_i32_140 = arith.constant 8 : i32
    %546 = arith.muli %c7_i32_139, %c8_i32_140 : i32
    %547 = tpu.assume_multiple %546, 8 : i32
    %548 = arith.index_cast %547 : i32 to index
    %c0_141 = arith.constant 0 : index
    %549 = vector.load %arg23[%548, %c0_141] : memref<64x384xf32, #tpu.memory_space<vmem>>, vector<8x384xf32>
    %cst_142 = arith.constant dense<0.000000e+00> : vector<8x384xf32>
    %550 = tpu.matmul %543, %298, %cst_142 {dimension_numbers = #tpu.dot_dimension_numbers<[1], [0], [0], [1], [0, 0, 1, 1], [], []>} : vector<8x128xf32>, vector<128x384xf32>, vector<8x384xf32> -> vector<8x384xf32>
    %551 = vector.extract_strided_slice %549 {offsets = [0, 0], sizes = [8, 128], strides = [1, 1]} : vector<8x384xf32> to vector<8x128xf32>
    %552 = vector.extract_strided_slice %550 {offsets = [0, 0], sizes = [8, 128], strides = [1, 1]} : vector<8x384xf32> to vector<8x128xf32>
    %553 = arith.addf %551, %552 : vector<8x128xf32>
    %554 = arith.negf %553 : vector<8x128xf32>
    %555 = math.exp %554 : vector<8x128xf32>
    %cst_143 = arith.constant 1.000000e+00 : f32
    %556 = vector.broadcast %cst_143 : f32 to vector<8x128xf32>
    %557 = arith.addf %556, %555 : vector<8x128xf32>
    %558 = arith.divf %556, %557 : vector<8x128xf32>
    %559 = vector.extract_strided_slice %549 {offsets = [0, 128], sizes = [8, 128], strides = [1, 1]} : vector<8x384xf32> to vector<8x128xf32>
    %560 = vector.extract_strided_slice %550 {offsets = [0, 128], sizes = [8, 128], strides = [1, 1]} : vector<8x384xf32> to vector<8x128xf32>
    %561 = arith.addf %559, %560 : vector<8x128xf32>
    %562 = arith.negf %561 : vector<8x128xf32>
    %563 = math.exp %562 : vector<8x128xf32>
    %cst_144 = arith.constant 1.000000e+00 : f32
    %564 = vector.broadcast %cst_144 : f32 to vector<8x128xf32>
    %565 = arith.addf %564, %563 : vector<8x128xf32>
    %566 = arith.divf %564, %565 : vector<8x128xf32>
    %567 = vector.extract_strided_slice %549 {offsets = [0, 256], sizes = [8, 128], strides = [1, 1]} : vector<8x384xf32> to vector<8x128xf32>
    %568 = vector.extract_strided_slice %550 {offsets = [0, 256], sizes = [8, 128], strides = [1, 1]} : vector<8x384xf32> to vector<8x128xf32>
    %569 = vector.broadcast %299 : vector<1x128xf32> to vector<8x128xf32>
    %570 = arith.addf %568, %569 : vector<8x128xf32>
    %571 = arith.mulf %558, %570 : vector<8x128xf32>
    %572 = arith.addf %567, %571 : vector<8x128xf32>
    %573 = math.tanh %572 : vector<8x128xf32>
    %cst_145 = arith.constant 1.000000e+00 : f32
    %574 = vector.broadcast %cst_145 : f32 to vector<8x128xf32>
    %575 = arith.subf %574, %566 : vector<8x128xf32>
    %576 = arith.mulf %575, %573 : vector<8x128xf32>
    %577 = arith.mulf %566, %543 : vector<8x128xf32>
    %578 = arith.addf %576, %577 : vector<8x128xf32>
    %579 = arith.index_cast %547 : i32 to index
    %c0_146 = arith.constant 0 : index
    %580 = vector.load %arg24[%579, %c0_146] : memref<64x128xf32, #tpu.memory_space<vmem>>, vector<8x128xf32>
    tpu.vector_store %arg24[%579, %c0_146], %578 {strides = array<i32>} : memref<64x128xf32, #tpu.memory_space<vmem>>, vector<8x128xf32>,
    %c8_i32_147 = arith.constant 8 : i32
    %c0_148 = arith.constant 0 : index
    %c0_149 = arith.constant 0 : index
    %581 = vector.load %arg24[%c0_148, %c0_149] : memref<64x128xf32, #tpu.memory_space<vmem>>, vector<64x128xf32>
    %c0_150 = arith.constant 0 : index
    %c0_151 = arith.constant 0 : index
    %582 = vector.load %arg10[%c0_150, %c0_151] : memref<128x128xf32, #tpu.memory_space<vmem>>, vector<128x128xf32>
    %cst_152 = arith.constant dense<0.000000e+00> : vector<64x128xf32>
    %583 = tpu.matmul %581, %582, %cst_152 {dimension_numbers = #tpu.dot_dimension_numbers<[1], [0], [0], [1], [0, 0, 1, 1], [], []>} : vector<64x128xf32>, vector<128x128xf32>, vector<64x128xf32> -> vector<64x128xf32>
    %c0_153 = arith.constant 0 : index
    %c0_154 = arith.constant 0 : index
    %584 = vector.load %arg11[%c0_153, %c0_154] : memref<1x128xf32, #tpu.memory_space<vmem>>, vector<1x128xf32>
    %585 = vector.broadcast %584 : vector<1x128xf32> to vector<64x128xf32>
    %586 = arith.addf %583, %585 : vector<64x128xf32>
    %cst_155 = arith.constant 0.000000e+00 : f32
    %587 = vector.broadcast %cst_155 : f32 to vector<64x128xf32>
    %588 = arith.maximumf %586, %587 : vector<64x128xf32>
    %c0_156 = arith.constant 0 : index
    %c0_157 = arith.constant 0 : index
    %589 = vector.load %arg12[%c0_156, %c0_157] : memref<128x128xf32, #tpu.memory_space<vmem>>, vector<128x128xf32>
    %cst_158 = arith.constant dense<0.000000e+00> : vector<64x128xf32>
    %590 = tpu.matmul %588, %589, %cst_158 {dimension_numbers = #tpu.dot_dimension_numbers<[1], [0], [0], [1], [0, 0, 1, 1], [], []>} : vector<64x128xf32>, vector<128x128xf32>, vector<64x128xf32> -> vector<64x128xf32>
    %c0_159 = arith.constant 0 : index
    %c0_160 = arith.constant 0 : index
    %591 = vector.load %arg13[%c0_159, %c0_160] : memref<1x128xf32, #tpu.memory_space<vmem>>, vector<1x128xf32>
    %592 = vector.broadcast %591 : vector<1x128xf32> to vector<64x128xf32>
    %593 = arith.addf %590, %592 : vector<64x128xf32>
    %cst_161 = arith.constant 0.000000e+00 : f32
    %594 = vector.broadcast %cst_161 : f32 to vector<64x128xf32>
    %595 = arith.maximumf %593, %594 : vector<64x128xf32>
    %c0_162 = arith.constant 0 : index
    %c0_163 = arith.constant 0 : index
    %596 = vector.load %arg14[%c0_162, %c0_163] : memref<128x128xf32, #tpu.memory_space<vmem>>, vector<128x128xf32>
    %cst_164 = arith.constant dense<0.000000e+00> : vector<64x128xf32>
    %597 = tpu.matmul %595, %596, %cst_164 {dimension_numbers = #tpu.dot_dimension_numbers<[1], [0], [0], [1], [0, 0, 1, 1], [], []>} : vector<64x128xf32>, vector<128x128xf32>, vector<64x128xf32> -> vector<64x128xf32>
    %c0_165 = arith.constant 0 : index
    %c0_166 = arith.constant 0 : index
    %598 = vector.load %arg15[%c0_165, %c0_166] : memref<1x128xf32, #tpu.memory_space<vmem>>, vector<1x128xf32>
    %599 = vector.broadcast %598 : vector<1x128xf32> to vector<64x128xf32>
    %600 = arith.addf %597, %599 : vector<64x128xf32>
    %cst_167 = arith.constant 0.000000e+00 : f32
    %601 = vector.broadcast %cst_167 : f32 to vector<64x128xf32>
    %602 = arith.maximumf %600, %601 : vector<64x128xf32>
    %c0_168 = arith.constant 0 : index
    %c0_169 = arith.constant 0 : index
    %603 = vector.load %arg16[%c0_168, %c0_169] : memref<128x128xf32, #tpu.memory_space<vmem>>, vector<128x128xf32>
    %cst_170 = arith.constant dense<0.000000e+00> : vector<64x128xf32>
    %604 = tpu.matmul %602, %603, %cst_170 {dimension_numbers = #tpu.dot_dimension_numbers<[1], [0], [0], [1], [0, 0, 1, 1], [], []>} : vector<64x128xf32>, vector<128x128xf32>, vector<64x128xf32> -> vector<64x128xf32>
    %c0_171 = arith.constant 0 : index
    %c0_172 = arith.constant 0 : index
    %605 = vector.load %arg17[%c0_171, %c0_172] : memref<1x128xf32, #tpu.memory_space<vmem>>, vector<1x128xf32>
    %606 = vector.broadcast %605 : vector<1x128xf32> to vector<64x128xf32>
    %607 = arith.addf %604, %606 : vector<64x128xf32>
    %cst_173 = arith.constant 0.000000e+00 : f32
    %608 = vector.broadcast %cst_173 : f32 to vector<64x128xf32>
    %609 = arith.maximumf %607, %608 : vector<64x128xf32>
    %c0_174 = arith.constant 0 : index
    %c0_175 = arith.constant 0 : index
    %610 = vector.load %arg18[%c0_174, %c0_175] : memref<128x128xf32, #tpu.memory_space<vmem>>, vector<128x128xf32>
    %cst_176 = arith.constant dense<0.000000e+00> : vector<64x128xf32>
    %611 = tpu.matmul %609, %610, %cst_176 {dimension_numbers = #tpu.dot_dimension_numbers<[1], [0], [0], [1], [0, 0, 1, 1], [], []>} : vector<64x128xf32>, vector<128x128xf32>, vector<64x128xf32> -> vector<64x128xf32>
    %c0_177 = arith.constant 0 : index
    %c0_178 = arith.constant 0 : index
    %612 = vector.load %arg19[%c0_177, %c0_178] : memref<1x128xf32, #tpu.memory_space<vmem>>, vector<1x128xf32>
    %613 = vector.broadcast %612 : vector<1x128xf32> to vector<64x128xf32>
    %614 = arith.addf %611, %613 : vector<64x128xf32>
    %cst_179 = arith.constant 0.000000e+00 : f32
    %615 = vector.broadcast %cst_179 : f32 to vector<64x128xf32>
    %616 = arith.maximumf %614, %615 : vector<64x128xf32>
    %c0_180 = arith.constant 0 : index
    %c0_181 = arith.constant 0 : index
    %617 = vector.load %arg20[%c0_180, %c0_181] : memref<128x1xf32, #tpu.memory_space<vmem>>, vector<128x1xf32>
    %cst_182 = arith.constant dense<0.000000e+00> : vector<64x1xf32>
    %618 = tpu.matmul %616, %617, %cst_182 {dimension_numbers = #tpu.dot_dimension_numbers<[1], [0], [0], [1], [0, 0, 1, 1], [], []>} : vector<64x128xf32>, vector<128x1xf32>, vector<64x1xf32> -> vector<64x1xf32>
    %c0_183 = arith.constant 0 : index
    %c0_184 = arith.constant 0 : index
    %619 = vector.load %arg21[%c0_183, %c0_184] : memref<1x1xf32, #tpu.memory_space<vmem>>, vector<1x1xf32>
    %620 = vector.broadcast %619 : vector<1x1xf32> to vector<64x1xf32>
    %621 = arith.addf %618, %620 : vector<64x1xf32>
    %622 = arith.negf %621 : vector<64x1xf32>
    %623 = math.exp %622 : vector<64x1xf32>
    %cst_185 = arith.constant 1.000000e+00 : f32
    %624 = vector.broadcast %cst_185 : f32 to vector<64x1xf32>
    %625 = arith.addf %624, %623 : vector<64x1xf32>
    %626 = arith.divf %624, %625 : vector<64x1xf32>
    %c0_186 = arith.constant 0 : index
    %c0_187 = arith.constant 0 : index
    %627 = vector.load %arg22[%c0_186, %c0_187] : memref<64x1xf32, #tpu.memory_space<vmem>>, vector<64x1xf32>
    tpu.vector_store %arg22[%c0_186, %c0_187], %626 {strides = array<i32>} : memref<64x1xf32, #tpu.memory_space<vmem>>, vector<64x1xf32>,
    return
  }
  func.func @transform_0(%arg0: i32) -> (i32, i32, i32) {
    %c0_i32 = arith.constant 0 : i32
    %c0_i32_0 = arith.constant 0 : i32
    %c0_i32_1 = arith.constant 0 : i32
    return %c0_i32, %arg0, %c0_i32_0 : i32, i32, i32
  }
  func.func @transform_1(%arg0: i32) -> (i32, i32) {
    %c0_i32 = arith.constant 0 : i32
    %c0_i32_0 = arith.constant 0 : i32
    %c0_i32_1 = arith.constant 0 : i32
    return %c0_i32, %c0_i32_0 : i32, i32
  }
  func.func @transform_2(%arg0: i32) -> (i32, i32) {
    %c0_i32 = arith.constant 0 : i32
    %c0_i32_0 = arith.constant 0 : i32
    %c0_i32_1 = arith.constant 0 : i32
    return %c0_i32, %c0_i32_0 : i32, i32
  }
  func.func @transform_3(%arg0: i32) -> (i32, i32) {
    %c0_i32 = arith.constant 0 : i32
    %c0_i32_0 = arith.constant 0 : i32
    %c0_i32_1 = arith.constant 0 : i32
    return %c0_i32, %c0_i32_0 : i32, i32
  }
  func.func @transform_4(%arg0: i32) -> (i32, i32) {
    %c0_i32 = arith.constant 0 : i32
    %c0_i32_0 = arith.constant 0 : i32
    %c0_i32_1 = arith.constant 0 : i32
    return %c0_i32, %c0_i32_0 : i32, i32
  }
  func.func @transform_5(%arg0: i32) -> (i32, i32) {
    %c0_i32 = arith.constant 0 : i32
    %c0_i32_0 = arith.constant 0 : i32
    %c0_i32_1 = arith.constant 0 : i32
    return %c0_i32, %c0_i32_0 : i32, i32
  }
  func.func @transform_6(%arg0: i32) -> (i32, i32) {
    %c0_i32 = arith.constant 0 : i32
    %c0_i32_0 = arith.constant 0 : i32
    %c0_i32_1 = arith.constant 0 : i32
    return %c0_i32, %c0_i32_0 : i32, i32
  }
  func.func @transform_7(%arg0: i32) -> (i32, i32) {
    %c0_i32 = arith.constant 0 : i32
    %c0_i32_0 = arith.constant 0 : i32
    %c0_i32_1 = arith.constant 0 : i32
    return %c0_i32, %c0_i32_0 : i32, i32
  }
  func.func @transform_8(%arg0: i32) -> (i32, i32) {
    %c0_i32 = arith.constant 0 : i32
    %c0_i32_0 = arith.constant 0 : i32
    %c0_i32_1 = arith.constant 0 : i32
    return %c0_i32, %c0_i32_0 : i32, i32
  }
  func.func @transform_9(%arg0: i32) -> (i32, i32) {
    %c0_i32 = arith.constant 0 : i32
    %c0_i32_0 = arith.constant 0 : i32
    %c0_i32_1 = arith.constant 0 : i32
    return %c0_i32, %c0_i32_0 : i32, i32
  }
  func.func @transform_10(%arg0: i32) -> (i32, i32) {
    %c0_i32 = arith.constant 0 : i32
    %c0_i32_0 = arith.constant 0 : i32
    %c0_i32_1 = arith.constant 0 : i32
    return %c0_i32, %c0_i32_0 : i32, i32
  }
  func.func @transform_11(%arg0: i32) -> (i32, i32) {
    %c0_i32 = arith.constant 0 : i32
    %c0_i32_0 = arith.constant 0 : i32
    %c0_i32_1 = arith.constant 0 : i32
    return %c0_i32, %c0_i32_0 : i32, i32
  }
  func.func @transform_12(%arg0: i32) -> (i32, i32) {
    %c0_i32 = arith.constant 0 : i32
    %c0_i32_0 = arith.constant 0 : i32
    %c0_i32_1 = arith.constant 0 : i32
    return %c0_i32, %c0_i32_0 : i32, i32
  }
  func.func @transform_13(%arg0: i32) -> (i32, i32) {
    %c0_i32 = arith.constant 0 : i32
    %c0_i32_0 = arith.constant 0 : i32
    %c0_i32_1 = arith.constant 0 : i32
    return %c0_i32, %c0_i32_0 : i32, i32
  }
  func.func @transform_14(%arg0: i32) -> (i32, i32) {
    %c0_i32 = arith.constant 0 : i32
    %c0_i32_0 = arith.constant 0 : i32
    %c0_i32_1 = arith.constant 0 : i32
    return %c0_i32, %c0_i32_0 : i32, i32
  }
  func.func @transform_15(%arg0: i32) -> (i32, i32) {
    %c0_i32 = arith.constant 0 : i32
    %c0_i32_0 = arith.constant 0 : i32
    %c0_i32_1 = arith.constant 0 : i32
    return %c0_i32, %c0_i32_0 : i32, i32
  }
  func.func @transform_16(%arg0: i32) -> (i32, i32) {
    %c0_i32 = arith.constant 0 : i32
    %c0_i32_0 = arith.constant 0 : i32
    %c0_i32_1 = arith.constant 0 : i32
    return %c0_i32, %c0_i32_0 : i32, i32
  }
  func.func @transform_17(%arg0: i32) -> (i32, i32) {
    %c0_i32 = arith.constant 0 : i32
    %c0_i32_0 = arith.constant 0 : i32
    %c0_i32_1 = arith.constant 0 : i32
    return %c0_i32, %c0_i32_0 : i32, i32
  }
  func.func @transform_18(%arg0: i32) -> (i32, i32) {
    %c0_i32 = arith.constant 0 : i32
    %c0_i32_0 = arith.constant 0 : i32
    %c0_i32_1 = arith.constant 0 : i32
    return %c0_i32, %c0_i32_0 : i32, i32
  }
  func.func @transform_19(%arg0: i32) -> (i32, i32) {
    %c0_i32 = arith.constant 0 : i32
    %c0_i32_0 = arith.constant 0 : i32
    %c0_i32_1 = arith.constant 0 : i32
    return %c0_i32, %c0_i32_0 : i32, i32
  }
  func.func @transform_20(%arg0: i32) -> (i32, i32) {
    %c0_i32 = arith.constant 0 : i32
    %c0_i32_0 = arith.constant 0 : i32
    %c0_i32_1 = arith.constant 0 : i32
    return %c0_i32, %c0_i32_0 : i32, i32
  }
  func.func @transform_21(%arg0: i32) -> (i32, i32) {
    %c0_i32 = arith.constant 0 : i32
    %c0_i32_0 = arith.constant 0 : i32
    return %arg0, %c0_i32 : i32, i32
  }
}

</mosaic_0001>

<llo_original>
// kernel: tpu_custom_call.1
$region0: #{tpu_custom_call.1}
  #allocation0 [shape = 'u32[]', space=smem, size = 0x4, offset = 0x4, fixed_abs, tag = 'smem constant byte address 0x4 - core index']
  #allocation1 [shape = 'u32[144,128]{1,0:T(1,128)}', space=vmem, size = 0x12000, scoped, tag = 'internal scratch']
  #allocation2 [shape = 'f32[64,384]{1,0:T(8,128)}', space=vmem, size = 0x18000, scoped, tag = 'scratch operand']
  #allocation3 [shape = 'f32[64,128]{1,0:T(8,128)}', space=vmem, size = 0x8000, scoped, tag = 'scratch operand']
  #allocation4 [shape = 'f32[1,1]{1,0:T(1,128)S(1)}', space=vmem, size = 0x200, scoped, tag = 'scoped memory for tpu_custom_call.1']
  %s0 = inlined_call_operand.hbm [shape: f32[8,8,128], index: 0, kind: input, shape index: {}]
  %s1 = inlined_call_operand.hbm [shape: f32[128,384], index: 1, kind: input, shape index: {}]
  %s2 = inlined_call_operand.hbm [shape: f32[128,384], index: 2, kind: input, shape index: {}]
  %s3 = inlined_call_operand.vmem [shape: f32[1,384], index: 3, kind: input, shape index: {}]
  %s4 = inlined_call_operand.vmem [shape: f32[1,128], index: 4, kind: input, shape index: {}]
  %s5 = inlined_call_operand.hbm [shape: f32[128,384], index: 5, kind: input, shape index: {}]
  %s6 = inlined_call_operand.hbm [shape: f32[128,384], index: 6, kind: input, shape index: {}]
  %s7 = inlined_call_operand.vmem [shape: f32[1,384], index: 7, kind: input, shape index: {}]
  %s8 = inlined_call_operand.vmem [shape: f32[1,128], index: 8, kind: input, shape index: {}]
  %s9 = inlined_call_operand.vmem [shape: f32[128,128], index: 9, kind: input, shape index: {}]
  %s10 = inlined_call_operand.vmem [shape: f32[1,128], index: 10, kind: input, shape index: {}]
  %s11 = inlined_call_operand.hbm [shape: f32[128,128], index: 11, kind: input, shape index: {}]
  %s12 = inlined_call_operand.vmem [shape: f32[1,128], index: 12, kind: input, shape index: {}]
  %s13 = inlined_call_operand.hbm [shape: f32[128,128], index: 13, kind: input, shape index: {}]
  %s14 = inlined_call_operand.vmem [shape: f32[1,128], index: 14, kind: input, shape index: {}]
  %s15 = inlined_call_operand.hbm [shape: f32[128,128], index: 15, kind: input, shape index: {}]
  %s16 = inlined_call_operand.vmem [shape: f32[1,128], index: 16, kind: input, shape index: {}]
  %s17 = inlined_call_operand.hbm [shape: f32[128,128], index: 17, kind: input, shape index: {}]
  %s18 = inlined_call_operand.vmem [shape: f32[1,128], index: 18, kind: input, shape index: {}]
  %s19 = inlined_call_operand.vmem [shape: f32[128,1], index: 19, kind: input, shape index: {}]
  %s20 = inlined_call_operand.<no memory space> [shape: f32[1,1], index: 20, kind: input, shape index: {}]
  %s21 = inlined_call_operand.vmem [shape: f32[64,1], index: 21, kind: output, shape index: {}]
  %s22 = sld [smem:[#allocation0]]
  $region130: #{tpu_custom_call.1} parent=0
    _
  %s24 = ssub.s32 1, %s22
  %s25 = scalar_select 0, %s24, %s22
  %v26 = vstv %s20
  %27 = vst [vmem:[#allocation4] sm:$0x1] %v26
  $region1: #{tpu_custom_call.1} parent=0
    #allocation5 [shape = 'u8[32768]{0}', space=vmem, size = 0x8000, scoped, tag = 'input window, operand 0, single buffered']
    #allocation6 [shape = 's32[1]{0}', space=sflag, size = 0x4, scoped, tag = 'scoped memory for tpu_custom_call.1']
    #allocation7 [shape = 'u8[196608]{0}', space=vmem, size = 0x30000, scoped, tag = 'input window, operand 1, single buffered']
    #allocation8 [shape = 's32[1]{0}', space=sflag, size = 0x4, scoped, tag = 'scoped memory for tpu_custom_call.1']
    #allocation9 [shape = 'u8[196608]{0}', space=vmem, size = 0x30000, scoped, tag = 'input window, operand 2, single buffered']
    #allocation10 [shape = 'u8[196608]{0}', space=vmem, size = 0x30000, scoped, tag = 'input window, operand 5, single buffered']
    #allocation11 [shape = 's32[1]{0}', space=sflag, size = 0x4, scoped, tag = 'scoped memory for tpu_custom_call.1']
    #allocation12 [shape = 'u8[196608]{0}', space=vmem, size = 0x30000, scoped, tag = 'input window, operand 6, single buffered']
    #allocation13 [shape = 'u8[65536]{0}', space=vmem, size = 0x10000, scoped, tag = 'input window, operand 11, single buffered']
    #allocation14 [shape = 's32[1]{0}', space=sflag, size = 0x4, scoped, tag = 'scoped memory for tpu_custom_call.1']
    #allocation15 [shape = 'u8[65536]{0}', space=vmem, size = 0x10000, scoped, tag = 'input window, operand 13, single buffered']
    #allocation16 [shape = 'u8[65536]{0}', space=vmem, size = 0x10000, scoped, tag = 'input window, operand 15, single buffered']
    #allocation17 [shape = 's32[1]{0}', space=sflag, size = 0x4, scoped, tag = 'scoped memory for tpu_custom_call.1']
    #allocation18 [shape = 'u8[65536]{0}', space=vmem, size = 0x10000, scoped, tag = 'input window, operand 17, single buffered']
    %28 = vsyncpa [#allocation6], 0
    %29 = vsyncpa [#allocation8], 0
    %30 = vsyncpa [#allocation11], 0
    %31 = vsyncpa [#allocation14], 0
    %32 = vsyncpa [#allocation17], 0
    // Predicated region
    $region2: #{tpu_custom_call.1} parent=1 // pred_check
      _
    $region3: #{tpu_custom_call.1} parent=1 // pred_check_branch
      %34 = sbr.rel (0) target = $region5
    $region4: #{tpu_custom_call.1} parent=1 // pred_region
      %s36 = ssub.s32 1024, 1024
      %37 = vsyncadd [#allocation6], %s36
      %s38 = sshll.u32 [#allocation5], 4
      %s39 = int_to_ptr.vmem [resolvable:$true] %s38
      %44 = dma.hbm_to_vmem [thread:$0]  %s0, 1024, %s39, [#allocation6], 128, 128, 8
    $region5: #{tpu_custom_call.1} parent=1 // pred_fallthru
      _
    // Predicated region
    $region6: #{tpu_custom_call.1} parent=1 // pred_check
      _
    $region7: #{tpu_custom_call.1} parent=1 // pred_check_branch
      %46 = sbr.rel (0) target = $region9
    $region8: #{tpu_custom_call.1} parent=1 // pred_region
      %s48 = ssub.s32 6144, 6144
      %49 = vsyncadd [#allocation8], %s48
      %s50 = sshll.u32 [#allocation7], 4
      %s51 = int_to_ptr.vmem [resolvable:$true] %s50
      %56 = dma.hbm_to_vmem [thread:$0]  %s1, 6144, %s51, [#allocation8], 384, 384, 24
    $region9: #{tpu_custom_call.1} parent=1 // pred_fallthru
      _
    // Predicated region
    $region10: #{tpu_custom_call.1} parent=1 // pred_check
      _
    $region11: #{tpu_custom_call.1} parent=1 // pred_check_branch
      %58 = sbr.rel (0) target = $region13
    $region12: #{tpu_custom_call.1} parent=1 // pred_region
      %s60 = ssub.s32 6144, 6144
      %61 = vsyncadd [#allocation8], %s60
      %s62 = sshll.u32 [#allocation9], 4
      %s63 = int_to_ptr.vmem [resolvable:$true] %s62
      %68 = dma.hbm_to_vmem [thread:$0]  %s2, 6144, %s63, [#allocation8], 384, 384, 24
    $region13: #{tpu_custom_call.1} parent=1 // pred_fallthru
      _
    // Predicated region
    $region14: #{tpu_custom_call.1} parent=1 // pred_check
      _
    $region15: #{tpu_custom_call.1} parent=1 // pred_check_branch
      %70 = sbr.rel (0) target = $region17
    $region16: #{tpu_custom_call.1} parent=1 // pred_region
      _
    $region17: #{tpu_custom_call.1} parent=1 // pred_fallthru
      _
    // Predicated region
    $region18: #{tpu_custom_call.1} parent=1 // pred_check
      _
    $region19: #{tpu_custom_call.1} parent=1 // pred_check_branch
      %72 = sbr.rel (0) target = $region21
    $region20: #{tpu_custom_call.1} parent=1 // pred_region
      _
    $region21: #{tpu_custom_call.1} parent=1 // pred_fallthru
      _
    // Predicated region
    $region22: #{tpu_custom_call.1} parent=1 // pred_check
      _
    $region23: #{tpu_custom_call.1} parent=1 // pred_check_branch
      %74 = sbr.rel (0) target = $region25
    $region24: #{tpu_custom_call.1} parent=1 // pred_region
      %s76 = ssub.s32 6144, 6144
      %77 = vsyncadd [#allocation11], %s76
      %s78 = sshll.u32 [#allocation10], 4
      %s79 = int_to_ptr.vmem [resolvable:$true] %s78
      %84 = dma.hbm_to_vmem [thread:$0]  %s5, 6144, %s79, [#allocation11], 384, 384, 24
    $region25: #{tpu_custom_call.1} parent=1 // pred_fallthru
      _
    // Predicated region
    $region26: #{tpu_custom_call.1} parent=1 // pred_check
      _
    $region27: #{tpu_custom_call.1} parent=1 // pred_check_branch
      %86 = sbr.rel (0) target = $region29
    $region28: #{tpu_custom_call.1} parent=1 // pred_region
      %s88 = ssub.s32 6144, 6144
      %89 = vsyncadd [#allocation11], %s88
      %s90 = sshll.u32 [#allocation12], 4
      %s91 = int_to_ptr.vmem [resolvable:$true] %s90
      %96 = dma.hbm_to_vmem [thread:$0]  %s6, 6144, %s91, [#allocation11], 384, 384, 24
    $region29: #{tpu_custom_call.1} parent=1 // pred_fallthru
      _
    // Predicated region
    $region30: #{tpu_custom_call.1} parent=1 // pred_check
      _
    $region31: #{tpu_custom_call.1} parent=1 // pred_check_branch
      %98 = sbr.rel (0) target = $region33
    $region32: #{tpu_custom_call.1} parent=1 // pred_region
      _
    $region33: #{tpu_custom_call.1} parent=1 // pred_fallthru
      _
    // Predicated region
    $region34: #{tpu_custom_call.1} parent=1 // pred_check
      _
    $region35: #{tpu_custom_call.1} parent=1 // pred_check_branch
      %100 = sbr.rel (0) target = $region37
    $region36: #{tpu_custom_call.1} parent=1 // pred_region
      _
    $region37: #{tpu_custom_call.1} parent=1 // pred_fallthru
      _
    // Predicated region
    $region38: #{tpu_custom_call.1} parent=1 // pred_check
      _
    $region39: #{tpu_custom_call.1} parent=1 // pred_check_branch
      %102 = sbr.rel (0) target = $region41
    $region40: #{tpu_custom_call.1} parent=1 // pred_region
      _
    $region41: #{tpu_custom_call.1} parent=1 // pred_fallthru
      _
    // Predicated region
    $region42: #{tpu_custom_call.1} parent=1 // pred_check
      _
    $region43: #{tpu_custom_call.1} parent=1 // pred_check_branch
      %104 = sbr.rel (0) target = $region45
    $region44: #{tpu_custom_call.1} parent=1 // pred_region
      _
    $region45: #{tpu_custom_call.1} parent=1 // pred_fallthru
      _
    // Predicated region
    $region46: #{tpu_custom_call.1} parent=1 // pred_check
      _
    $region47: #{tpu_custom_call.1} parent=1 // pred_check_branch
      %106 = sbr.rel (0) target = $region49
    $region48: #{tpu_custom_call.1} parent=1 // pred_region
      %s108 = ssub.s32 2048, 2048
      %109 = vsyncadd [#allocation14], %s108
      %s110 = sshll.u32 [#allocation13], 4
      %s111 = int_to_ptr.vmem [resolvable:$true] %s110
      %116 = dma.hbm_to_vmem [thread:$0]  %s11, 2048, %s111, [#allocation14], 128, 128, 8
    $region49: #{tpu_custom_call.1} parent=1 // pred_fallthru
      _
    // Predicated region
    $region50: #{tpu_custom_call.1} parent=1 // pred_check
      _
    $region51: #{tpu_custom_call.1} parent=1 // pred_check_branch
      %118 = sbr.rel (0) target = $region53
    $region52: #{tpu_custom_call.1} parent=1 // pred_region
      _
    $region53: #{tpu_custom_call.1} parent=1 // pred_fallthru
      _
    // Predicated region
    $region54: #{tpu_custom_call.1} parent=1 // pred_check
      _
    $region55: #{tpu_custom_call.1} parent=1 // pred_check_branch
      %120 = sbr.rel (0) target = $region57
    $region56: #{tpu_custom_call.1} parent=1 // pred_region
      %s122 = ssub.s32 2048, 2048
      %123 = vsyncadd [#allocation14], %s122
      %s124 = sshll.u32 [#allocation15], 4
      %s125 = int_to_ptr.vmem [resolvable:$true] %s124
      %130 = dma.hbm_to_vmem [thread:$0]  %s13, 2048, %s125, [#allocation14], 128, 128, 8
    $region57: #{tpu_custom_call.1} parent=1 // pred_fallthru
      _
    // Predicated region
    $region58: #{tpu_custom_call.1} parent=1 // pred_check
      _
    $region59: #{tpu_custom_call.1} parent=1 // pred_check_branch
      %132 = sbr.rel (0) target = $region61
    $region60: #{tpu_custom_call.1} parent=1 // pred_region
      _
    $region61: #{tpu_custom_call.1} parent=1 // pred_fallthru
      _
    // Predicated region
    $region62: #{tpu_custom_call.1} parent=1 // pred_check
      _
    $region63: #{tpu_custom_call.1} parent=1 // pred_check_branch
      %134 = sbr.rel (0) target = $region65
    $region64: #{tpu_custom_call.1} parent=1 // pred_region
      %s136 = ssub.s32 2048, 2048
      %137 = vsyncadd [#allocation17], %s136
      %s138 = sshll.u32 [#allocation16], 4
      %s139 = int_to_ptr.vmem [resolvable:$true] %s138
      %144 = dma.hbm_to_vmem [thread:$0]  %s15, 2048, %s139, [#allocation17], 128, 128, 8
    $region65: #{tpu_custom_call.1} parent=1 // pred_fallthru
      _
    // Predicated region
    $region66: #{tpu_custom_call.1} parent=1 // pred_check
      _
    $region67: #{tpu_custom_call.1} parent=1 // pred_check_branch
      %146 = sbr.rel (0) target = $region69
    $region68: #{tpu_custom_call.1} parent=1 // pred_region
      _
    $region69: #{tpu_custom_call.1} parent=1 // pred_fallthru
      _
    // Predicated region
    $region70: #{tpu_custom_call.1} parent=1 // pred_check
      _
    $region71: #{tpu_custom_call.1} parent=1 // pred_check_branch
      %148 = sbr.rel (0) target = $region73
    $region72: #{tpu_custom_call.1} parent=1 // pred_region
      %s150 = ssub.s32 2048, 2048
      %151 = vsyncadd [#allocation17], %s150
      %s152 = sshll.u32 [#allocation18], 4
      %s153 = int_to_ptr.vmem [resolvable:$true] %s152
      %158 = dma.hbm_to_vmem [thread:$0]  %s17, 2048, %s153, [#allocation17], 128, 128, 8
    $region73: #{tpu_custom_call.1} parent=1 // pred_fallthru
      _
    // Predicated region
    $region74: #{tpu_custom_call.1} parent=1 // pred_check
      _
    $region75: #{tpu_custom_call.1} parent=1 // pred_check_branch
      %160 = sbr.rel (0) target = $region77
    $region76: #{tpu_custom_call.1} parent=1 // pred_region
      _
    $region77: #{tpu_custom_call.1} parent=1 // pred_fallthru
      _
    // Predicated region
    $region78: #{tpu_custom_call.1} parent=1 // pred_check
      _
    $region79: #{tpu_custom_call.1} parent=1 // pred_check_branch
      %162 = sbr.rel (0) target = $region81
    $region80: #{tpu_custom_call.1} parent=1 // pred_region
      _
    $region81: #{tpu_custom_call.1} parent=1 // pred_fallthru
      _
    // Predicated region
    $region82: #{tpu_custom_call.1} parent=1 // pred_check
      _
    $region83: #{tpu_custom_call.1} parent=1 // pred_check_branch
      %164 = sbr.rel (0) target = $region85
    $region84: #{tpu_custom_call.1} parent=1 // pred_region
      _
    $region85: #{tpu_custom_call.1} parent=1 // pred_fallthru
      _
    // Predicated region
    $region86: #{tpu_custom_call.1} parent=1 // pred_check
      _
    $region87: #{tpu_custom_call.1} parent=1 // pred_check_branch
      %166 = sbr.rel (0) target = $region89
    $region88: #{tpu_custom_call.1} parent=1 // pred_region
      %167 = dma.done [#allocation6], 1024
    $region89: #{tpu_custom_call.1} parent=1 // pred_fallthru
      _
    // Predicated region
    $region90: #{tpu_custom_call.1} parent=1 // pred_check
      _
    $region91: #{tpu_custom_call.1} parent=1 // pred_check_branch
      %169 = sbr.rel (0) target = $region93
    $region92: #{tpu_custom_call.1} parent=1 // pred_region
      %170 = dma.done [#allocation8], 6144
    $region93: #{tpu_custom_call.1} parent=1 // pred_fallthru
      _
    // Predicated region
    $region94: #{tpu_custom_call.1} parent=1 // pred_check
      _
    $region95: #{tpu_custom_call.1} parent=1 // pred_check_branch
      %172 = sbr.rel (0) target = $region97
    $region96: #{tpu_custom_call.1} parent=1 // pred_region
      %173 = dma.done [#allocation8], 6144
    $region97: #{tpu_custom_call.1} parent=1 // pred_fallthru
      _
    // Predicated region
    $region98: #{tpu_custom_call.1} parent=1 // pred_check
      _
    $region99: #{tpu_custom_call.1} parent=1 // pred_check_branch
      %175 = sbr.rel (0) target = $region101
    $region100: #{tpu_custom_call.1} parent=1 // pred_region
      %176 = dma.done [#allocation11], 6144
    $region101: #{tpu_custom_call.1} parent=1 // pred_fallthru
      _
    // Predicated region
    $region102: #{tpu_custom_call.1} parent=1 // pred_check
      _
    $region103: #{tpu_custom_call.1} parent=1 // pred_check_branch
      %178 = sbr.rel (0) target = $region105
    $region104: #{tpu_custom_call.1} parent=1 // pred_region
      %179 = dma.done [#allocation11], 6144
    $region105: #{tpu_custom_call.1} parent=1 // pred_fallthru
      _
    // Predicated region
    $region106: #{tpu_custom_call.1} parent=1 // pred_check
      _
    $region107: #{tpu_custom_call.1} parent=1 // pred_check_branch
      %181 = sbr.rel (0) target = $region109
    $region108: #{tpu_custom_call.1} parent=1 // pred_region
      %182 = dma.done [#allocation14], 2048
    $region109: #{tpu_custom_call.1} parent=1 // pred_fallthru
      _
    // Predicated region
    $region110: #{tpu_custom_call.1} parent=1 // pred_check
      _
    $region111: #{tpu_custom_call.1} parent=1 // pred_check_branch
      %184 = sbr.rel (0) target = $region113
    $region112: #{tpu_custom_call.1} parent=1 // pred_region
      %185 = dma.done [#allocation14], 2048
    $region113: #{tpu_custom_call.1} parent=1 // pred_fallthru
      _
    // Predicated region
    $region114: #{tpu_custom_call.1} parent=1 // pred_check
      _
    $region115: #{tpu_custom_call.1} parent=1 // pred_check_branch
      %187 = sbr.rel (0) target = $region117
    $region116: #{tpu_custom_call.1} parent=1 // pred_region
      %188 = dma.done [#allocation17], 2048
    $region117: #{tpu_custom_call.1} parent=1 // pred_fallthru
      _
    // Predicated region
    $region118: #{tpu_custom_call.1} parent=1 // pred_check
      _
    $region119: #{tpu_custom_call.1} parent=1 // pred_check_branch
      %190 = sbr.rel (0) target = $region121
    $region120: #{tpu_custom_call.1} parent=1 // pred_region
      %191 = dma.done [#allocation17], 2048
    $region121: #{tpu_custom_call.1} parent=1 // pred_fallthru
      _
    %v192 = vld [vmem:[#allocation5] sm:$0xff]
    %v193 = vld [vmem:[#allocation5 + $0x8] sm:$0xff]
    %v194 = vld [vmem:[#allocation5 + $0x10] sm:$0xff]
    %v195 = vld [vmem:[#allocation5 + $0x18] sm:$0xff]
    %v196 = vld [vmem:[#allocation5 + $0x20] sm:$0xff]
    %v197 = vld [vmem:[#allocation5 + $0x28] sm:$0xff]
    %v198 = vld [vmem:[#allocation5 + $0x30] sm:$0xff]
    %v199 = vld [vmem:[#allocation5 + $0x38] sm:$0xff]
    %v200 = vld [vmem:[#allocation7] sm:$0xff]
    %v201 = vld [vmem:[#allocation7 + $0x8] sm:$0xff]
    %v202 = vld [vmem:[#allocation7 + $0x10] sm:$0xff]
    %v203 = vld [vmem:[#allocation7 + $0x18] sm:$0xff]
    %v204 = vld [vmem:[#allocation7 + $0x20] sm:$0xff]
    %v205 = vld [vmem:[#allocation7 + $0x28] sm:$0xff]
    %v206 = vld [vmem:[#allocation7 + $0x30] sm:$0xff]
    %v207 = vld [vmem:[#allocation7 + $0x38] sm:$0xff]
    %v208 = vld [vmem:[#allocation7 + $0x40] sm:$0xff]
    %v209 = vld [vmem:[#allocation7 + $0x48] sm:$0xff]
    %v210 = vld [vmem:[#allocation7 + $0x50] sm:$0xff]
    %v211 = vld [vmem:[#allocation7 + $0x58] sm:$0xff]
    %v212 = vld [vmem:[#allocation7 + $0x60] sm:$0xff]
    %v213 = vld [vmem:[#allocation7 + $0x68] sm:$0xff]
    %v214 = vld [vmem:[#allocation7 + $0x70] sm:$0xff]
    %v215 = vld [vmem:[#allocation7 + $0x78] sm:$0xff]
    %v216 = vld [vmem:[#allocation7 + $0x80] sm:$0xff]
    %v217 = vld [vmem:[#allocation7 + $0x88] sm:$0xff]
    %v218 = vld [vmem:[#allocation7 + $0x90] sm:$0xff]
    %v219 = vld [vmem:[#allocation7 + $0x98] sm:$0xff]
    %v220 = vld [vmem:[#allocation7 + $0xa0] sm:$0xff]
    %v221 = vld [vmem:[#allocation7 + $0xa8] sm:$0xff]
    %v222 = vld [vmem:[#allocation7 + $0xb0] sm:$0xff]
    %v223 = vld [vmem:[#allocation7 + $0xb8] sm:$0xff]
    %v224 = vld [vmem:[#allocation7 + $0xc0] sm:$0xff]
    %v225 = vld [vmem:[#allocation7 + $0xc8] sm:$0xff]
    %v226 = vld [vmem:[#allocation7 + $0xd0] sm:$0xff]
    %v227 = vld [vmem:[#allocation7 + $0xd8] sm:$0xff]
    %v228 = vld [vmem:[#allocation7 + $0xe0] sm:$0xff]
    %v229 = vld [vmem:[#allocation7 + $0xe8] sm:$0xff]
    %v230 = vld [vmem:[#allocation7 + $0xf0] sm:$0xff]
    %v231 = vld [vmem:[#allocation7 + $0xf8] sm:$0xff]
    %v232 = vld [vmem:[#allocation7 + $0x100] sm:$0xff]
    %v233 = vld [vmem:[#allocation7 + $0x108] sm:$0xff]
    %v234 = vld [vmem:[#allocation7 + $0x110] sm:$0xff]
    %v235 = vld [vmem:[#allocation7 + $0x118] sm:$0xff]
    %v236 = vld [vmem:[#allocation7 + $0x120] sm:$0xff]
    %v237 = vld [vmem:[#allocation7 + $0x128] sm:$0xff]
    %v238 = vld [vmem:[#allocation7 + $0x130] sm:$0xff]
    %v239 = vld [vmem:[#allocation7 + $0x138] sm:$0xff]
    %v240 = vld [vmem:[#allocation7 + $0x140] sm:$0xff]
    %v241 = vld [vmem:[#allocation7 + $0x148] sm:$0xff]
    %v242 = vld [vmem:[#allocation7 + $0x150] sm:$0xff]
    %v243 = vld [vmem:[#allocation7 + $0x158] sm:$0xff]
    %v244 = vld [vmem:[#allocation7 + $0x160] sm:$0xff]
    %v245 = vld [vmem:[#allocation7 + $0x168] sm:$0xff]
    %v246 = vld [vmem:[#allocation7 + $0x170] sm:$0xff]
    %v247 = vld [vmem:[#allocation7 + $0x178] sm:$0xff]
    %v248 = vld [vmem:[%s3] sm:$0x7]
    %v250 = vlaneseq
    %v251 = vshrl.u32 %v250, 7
    %v252 = vsub.s32 0, %v251
    %v253 = vrot.slane %v248, %v252
    %v254 = vlaneseq
    %v255 = vshrl.u32 %v254, 7
    %v256 = vsub.s32 1, %v255
    %v257 = vrot.slane %v248, %v256
    %v258 = vlaneseq
    %v259 = vshrl.u32 %v258, 7
    %v260 = vsub.s32 2, %v259
    %v261 = vrot.slane %v248, %v260
    %265 = vmatprep.subr.mxu0 %v201
    %266 = vmatpush1.msra.mxu0 %v200
    %267 = vmatprep.subr.mxu0 %v204
    %268 = vmatpush1.msra.mxu0 %v203
    %269 = vmatprep.subr.mxu0 %v207
    %270 = vmatpush1.msra.mxu0 %v206
    %271 = vmatprep.subr.mxu0 %v210
    %272 = vmatpush1.msra.mxu0 %v209
    %273 = vmatprep.subr.mxu0 %v213
    %274 = vmatpush1.msra.mxu0 %v212
    %275 = vmatprep.subr.mxu0 %v216
    %276 = vmatpush1.msra.mxu0 %v215
    %277 = vmatprep.subr.mxu0 %v219
    %278 = vmatpush1.msra.mxu0 %v218
    %279 = vmatprep.subr.mxu0 %v222
    %280 = vmatpush1.msra.mxu0 %v221
    %281 = vmatprep.subr.mxu0 %v225
    %282 = vmatpush1.msra.mxu0 %v224
    %283 = vmatprep.subr.mxu0 %v228
    %284 = vmatpush1.msra.mxu0 %v227
    %285 = vmatprep.subr.mxu0 %v231
    %286 = vmatpush1.msra.mxu0 %v230
    %287 = vmatprep.subr.mxu0 %v234
    %288 = vmatpush1.msra.mxu0 %v233
    %289 = vmatprep.subr.mxu0 %v237
    %290 = vmatpush1.msra.mxu0 %v236
    %291 = vmatprep.subr.mxu0 %v240
    %292 = vmatpush1.msra.mxu0 %v239
    %293 = vmatprep.subr.mxu0 %v243
    %294 = vmatpush1.msra.mxu0 %v242
    %295 = vmatprep.subr.mxu0 %v246
    %296 = vmatpush1.msra.mxu0 %v245
    %297 = vmatprep.subr.mxu0 0.0
    %298 = vmatpush1.msra.mxu0 0.0
    %299 = vmatprep.subr.mxu0 0.0
    %300 = vmatpush1.msra.mxu0 0.0
    %301 = vmatprep.subr.mxu0 0.0
    %302 = vmatpush1.msra.mxu0 0.0
    %303 = vmatprep.subr.mxu0 0.0
    %304 = vmatpush1.msra.mxu0 0.0
    %305 = vmatprep.subr.mxu0 0.0
    %306 = vmatpush1.msra.mxu0 0.0
    %307 = vmatprep.subr.mxu0 0.0
    %308 = vmatpush1.msra.mxu0 0.0
    %309 = vmatprep.subr.mxu0 0.0
    %310 = vmatpush1.msra.mxu0 0.0
    %311 = vmatprep.subr.mxu0 0.0
    %312 = vmatpush1.msra.mxu0 0.0
    %313 = vmatprep.subr.mxu0 0.0
    %314 = vmatpush1.msra.mxu0 0.0
    %315 = vmatprep.subr.mxu0 0.0
    %316 = vmatpush1.msra.mxu0 0.0
    %317 = vmatprep.subr.mxu0 0.0
    %318 = vmatpush1.msra.mxu0 0.0
    %319 = vmatprep.subr.mxu0 0.0
    %320 = vmatpush1.msra.mxu0 0.0
    %321 = vmatprep.subr.mxu0 0.0
    %322 = vmatpush1.msra.mxu0 0.0
    %323 = vmatprep.subr.mxu0 0.0
    %324 = vmatpush1.msra.mxu0 0.0
    %325 = vmatprep.subr.mxu0 0.0
    %326 = vmatpush1.msra.mxu0 0.0
    %327 = vmatprep.subr.mxu0 0.0
    %328 = vmatpush1.msra.mxu0 0.0
    %329 = vmatprep.mubr.f32.mxu0 0.0
    %330 = vmatmul.mubr.f32.gmra.mrb[0].mxu0 %v192
    %v331 = vpop.f32.mrb[0].mxu0
    %v332 = vadd.f32 %v253, %v331
    %v333 = vpop.f32.mrb[0].mxu0
    %v334 = vadd.f32 %v257, %v333
    %335 = vmatprep.mubr.f32.mxu0 0.0
    %336 = vmatmul.mubr.f32.gmra.mrb[0].mxu0 %v193
    %v337 = vpop.f32.mrb[0].mxu0
    %v338 = vadd.f32 %v253, %v337
    %v339 = vpop.f32.mrb[0].mxu0
    %v340 = vadd.f32 %v257, %v339
    %341 = vmatprep.mubr.f32.mxu0 0.0
    %342 = vmatmul.mubr.f32.gmra.mrb[0].mxu0 %v194
    %v343 = vpop.f32.mrb[0].mxu0
    %v344 = vadd.f32 %v253, %v343
    %v345 = vpop.f32.mrb[0].mxu0
    %v346 = vadd.f32 %v257, %v345
    %347 = vmatprep.mubr.f32.mxu0 0.0
    %348 = vmatmul.mubr.f32.gmra.mrb[0].mxu0 %v195
    %v349 = vpop.f32.mrb[0].mxu0
    %v350 = vadd.f32 %v253, %v349
    %v351 = vpop.f32.mrb[0].mxu0
    %v352 = vadd.f32 %v257, %v351
    %353 = vmatprep.mubr.f32.mxu0 0.0
    %354 = vmatmul.mubr.f32.gmra.mrb[0].mxu0 %v196
    %v355 = vpop.f32.mrb[0].mxu0
    %v356 = vadd.f32 %v253, %v355
    %v357 = vpop.f32.mrb[0].mxu0
    %v358 = vadd.f32 %v257, %v357
    %359 = vmatprep.mubr.f32.mxu0 0.0
    %360 = vmatmul.mubr.f32.gmra.mrb[0].mxu0 %v197
    %v361 = vpop.f32.mrb[0].mxu0
    %v362 = vadd.f32 %v253, %v361
    %v363 = vpop.f32.mrb[0].mxu0
    %v364 = vadd.f32 %v257, %v363
    %365 = vmatprep.mubr.f32.mxu0 0.0
    %366 = vmatmul.mubr.f32.gmra.mrb[0].mxu0 %v198
    %v367 = vpop.f32.mrb[0].mxu0
    %v368 = vadd.f32 %v253, %v367
    %v369 = vpop.f32.mrb[0].mxu0
    %v370 = vadd.f32 %v257, %v369
    %371 = vmatprep.mubr.f32.mxu0 0.0
    %372 = vmatmul.mubr.f32.gmra.mrb[0].mxu0 %v199
    %v373 = vpop.f32.mrb[0].mxu0
    %v374 = vadd.f32 %v253, %v373
    %v375 = vpop.f32.mrb[0].mxu0
    %v376 = vadd.f32 %v257, %v375
    %377 = vdwg.mxu0
    %378 = vmatprep.subr.mxu0 0.0
    %379 = vmatpush1.msra.mxu0 %v202
    %380 = vmatprep.subr.mxu0 0.0
    %381 = vmatpush1.msra.mxu0 %v205
    %382 = vmatprep.subr.mxu0 0.0
    %383 = vmatpush1.msra.mxu0 %v208
    %384 = vmatprep.subr.mxu0 0.0
    %385 = vmatpush1.msra.mxu0 %v211
    %386 = vmatprep.subr.mxu0 0.0
    %387 = vmatpush1.msra.mxu0 %v214
    %388 = vmatprep.subr.mxu0 0.0
    %389 = vmatpush1.msra.mxu0 %v217
    %390 = vmatprep.subr.mxu0 0.0
    %391 = vmatpush1.msra.mxu0 %v220
    %392 = vmatprep.subr.mxu0 0.0
    %393 = vmatpush1.msra.mxu0 %v223
    %394 = vmatprep.subr.mxu0 0.0
    %395 = vmatpush1.msra.mxu0 %v226
    %396 = vmatprep.subr.mxu0 0.0
    %397 = vmatpush1.msra.mxu0 %v229
    %398 = vmatprep.subr.mxu0 0.0
    %399 = vmatpush1.msra.mxu0 %v232
    %400 = vmatprep.subr.mxu0 0.0
    %401 = vmatpush1.msra.mxu0 %v235
    %402 = vmatprep.subr.mxu0 0.0
    %403 = vmatpush1.msra.mxu0 %v238
    %404 = vmatprep.subr.mxu0 0.0
    %405 = vmatpush1.msra.mxu0 %v241
    %406 = vmatprep.subr.mxu0 0.0
    %407 = vmatpush1.msra.mxu0 %v244
    %408 = vmatprep.subr.mxu0 0.0
    %409 = vmatpush1.msra.mxu0 %v247
    %410 = vmatprep.subr.mxu0 0.0
    %411 = vmatpush1.msra.mxu0 0.0
    %412 = vmatprep.subr.mxu0 0.0
    %413 = vmatpush1.msra.mxu0 0.0
    %414 = vmatprep.subr.mxu0 0.0
    %415 = vmatpush1.msra.mxu0 0.0
    %416 = vmatprep.subr.mxu0 0.0
    %417 = vmatpush1.msra.mxu0 0.0
    %418 = vmatprep.subr.mxu0 0.0
    %419 = vmatpush1.msra.mxu0 0.0
    %420 = vmatprep.subr.mxu0 0.0
    %421 = vmatpush1.msra.mxu0 0.0
    %422 = vmatprep.subr.mxu0 0.0
    %423 = vmatpush1.msra.mxu0 0.0
    %424 = vmatprep.subr.mxu0 0.0
    %425 = vmatpush1.msra.mxu0 0.0
    %426 = vmatprep.subr.mxu0 0.0
    %427 = vmatpush1.msra.mxu0 0.0
    %428 = vmatprep.subr.mxu0 0.0
    %429 = vmatpush1.msra.mxu0 0.0
    %430 = vmatprep.subr.mxu0 0.0
    %431 = vmatpush1.msra.mxu0 0.0
    %432 = vmatprep.subr.mxu0 0.0
    %433 = vmatpush1.msra.mxu0 0.0
    %434 = vmatprep.subr.mxu0 0.0
    %435 = vmatpush1.msra.mxu0 0.0
    %436 = vmatprep.subr.mxu0 0.0
    %437 = vmatpush1.msra.mxu0 0.0
    %438 = vmatprep.subr.mxu0 0.0
    %439 = vmatpush1.msra.mxu0 0.0
    %440 = vmatprep.subr.mxu0 0.0
    %441 = vmatpush1.msra.mxu0 0.0
    %442 = vmatprep.mubr.f32.mxu0 0.0
    %443 = vmatmul.mubr.f32.gmra.mrb[0].mxu0 %v192
    %v444 = vpop.f32.mrb[0].mxu0
    %v445 = vadd.f32 %v261, %v444
    %v446 = vpop.f32.mrb[0].mxu0
    %447 = vmatprep.mubr.f32.mxu0 0.0
    %448 = vmatmul.mubr.f32.gmra.mrb[0].mxu0 %v193
    %v449 = vpop.f32.mrb[0].mxu0
    %v450 = vadd.f32 %v261, %v449
    %v451 = vpop.f32.mrb[0].mxu0
    %452 = vmatprep.mubr.f32.mxu0 0.0
    %453 = vmatmul.mubr.f32.gmra.mrb[0].mxu0 %v194
    %v454 = vpop.f32.mrb[0].mxu0
    %v455 = vadd.f32 %v261, %v454
    %v456 = vpop.f32.mrb[0].mxu0
    %457 = vmatprep.mubr.f32.mxu0 0.0
    %458 = vmatmul.mubr.f32.gmra.mrb[0].mxu0 %v195
    %v459 = vpop.f32.mrb[0].mxu0
    %v460 = vadd.f32 %v261, %v459
    %v461 = vpop.f32.mrb[0].mxu0
    %462 = vmatprep.mubr.f32.mxu0 0.0
    %463 = vmatmul.mubr.f32.gmra.mrb[0].mxu0 %v196
    %v464 = vpop.f32.mrb[0].mxu0
    %v465 = vadd.f32 %v261, %v464
    %v466 = vpop.f32.mrb[0].mxu0
    %467 = vmatprep.mubr.f32.mxu0 0.0
    %468 = vmatmul.mubr.f32.gmra.mrb[0].mxu0 %v197
    %v469 = vpop.f32.mrb[0].mxu0
    %v470 = vadd.f32 %v261, %v469
    %v471 = vpop.f32.mrb[0].mxu0
    %472 = vmatprep.mubr.f32.mxu0 0.0
    %473 = vmatmul.mubr.f32.gmra.mrb[0].mxu0 %v198
    %v474 = vpop.f32.mrb[0].mxu0
    %v475 = vadd.f32 %v261, %v474
    %v476 = vpop.f32.mrb[0].mxu0
    %477 = vmatprep.mubr.f32.mxu0 0.0
    %478 = vmatmul.mubr.f32.gmra.mrb[0].mxu0 %v199
    %v479 = vpop.f32.mrb[0].mxu0
    %v480 = vadd.f32 %v261, %v479
    %v481 = vpop.f32.mrb[0].mxu0
    %482 = vdwg.mxu0
    %483 = vst [vmem:[#allocation2] sm:$0xff] %v332
    %484 = vst [vmem:[#allocation2 + $0x8] sm:$0xff] %v334
    %485 = vst [vmem:[#allocation2 + $0x10] sm:$0xff] %v445
    %486 = vst [vmem:[#allocation2 + $0x18] sm:$0xff] %v338
    %487 = vst [vmem:[#allocation2 + $0x20] sm:$0xff] %v340
    %488 = vst [vmem:[#allocation2 + $0x28] sm:$0xff] %v450
    %489 = vst [vmem:[#allocation2 + $0x30] sm:$0xff] %v344
    %490 = vst [vmem:[#allocation2 + $0x38] sm:$0xff] %v346
    %491 = vst [vmem:[#allocation2 + $0x40] sm:$0xff] %v455
    %492 = vst [vmem:[#allocation2 + $0x48] sm:$0xff] %v350
    %493 = vst [vmem:[#allocation2 + $0x50] sm:$0xff] %v352
    %494 = vst [vmem:[#allocation2 + $0x58] sm:$0xff] %v460
    %495 = vst [vmem:[#allocation2 + $0x60] sm:$0xff] %v356
    %496 = vst [vmem:[#allocation2 + $0x68] sm:$0xff] %v358
    %497 = vst [vmem:[#allocation2 + $0x70] sm:$0xff] %v465
    %498 = vst [vmem:[#allocation2 + $0x78] sm:$0xff] %v362
    %499 = vst [vmem:[#allocation2 + $0x80] sm:$0xff] %v364
    %500 = vst [vmem:[#allocation2 + $0x88] sm:$0xff] %v470
    %501 = vst [vmem:[#allocation2 + $0x90] sm:$0xff] %v368
    %502 = vst [vmem:[#allocation2 + $0x98] sm:$0xff] %v370
    %503 = vst [vmem:[#allocation2 + $0xa0] sm:$0xff] %v475
    %504 = vst [vmem:[#allocation2 + $0xa8] sm:$0xff] %v374
    %505 = vst [vmem:[#allocation2 + $0xb0] sm:$0xff] %v376
    %506 = vst [vmem:[#allocation2 + $0xb8] sm:$0xff] %v480
    %v507 = vld [vmem:[#allocation9] sm:$0xff]
    %v508 = vld [vmem:[#allocation9 + $0x8] sm:$0xff]
    %v509 = vld [vmem:[#allocation9 + $0x10] sm:$0xff]
    %v510 = vld [vmem:[#allocation9 + $0x18] sm:$0xff]
    %v511 = vld [vmem:[#allocation9 + $0x20] sm:$0xff]
    %v512 = vld [vmem:[#allocation9 + $0x28] sm:$0xff]
    %v513 = vld [vmem:[#allocation9 + $0x30] sm:$0xff]
    %v514 = vld [vmem:[#allocation9 + $0x38] sm:$0xff]
    %v515 = vld [vmem:[#allocation9 + $0x40] sm:$0xff]
    %v516 = vld [vmem:[#allocation9 + $0x48] sm:$0xff]
    %v517 = vld [vmem:[#allocation9 + $0x50] sm:$0xff]
    %v518 = vld [vmem:[#allocation9 + $0x58] sm:$0xff]
    %v519 = vld [vmem:[#allocation9 + $0x60] sm:$0xff]
    %v520 = vld [vmem:[#allocation9 + $0x68] sm:$0xff]
    %v521 = vld [vmem:[#allocation9 + $0x70] sm:$0xff]
    %v522 = vld [vmem:[#allocation9 + $0x78] sm:$0xff]
    %v523 = vld [vmem:[#allocation9 + $0x80] sm:$0xff]
    %v524 = vld [vmem:[#allocation9 + $0x88] sm:$0xff]
    %v525 = vld [vmem:[#allocation9 + $0x90] sm:$0xff]
    %v526 = vld [vmem:[#allocation9 + $0x98] sm:$0xff]
    %v527 = vld [vmem:[#allocation9 + $0xa0] sm:$0xff]
    %v528 = vld [vmem:[#allocation9 + $0xa8] sm:$0xff]
    %v529 = vld [vmem:[#allocation9 + $0xb0] sm:$0xff]
    %v530 = vld [vmem:[#allocation9 + $0xb8] sm:$0xff]
    %v531 = vld [vmem:[#allocation9 + $0xc0] sm:$0xff]
    %v532 = vld [vmem:[#allocation9 + $0xc8] sm:$0xff]
    %v533 = vld [vmem:[#allocation9 + $0xd0] sm:$0xff]
    %v534 = vld [vmem:[#allocation9 + $0xd8] sm:$0xff]
    %v535 = vld [vmem:[#allocation9 + $0xe0] sm:$0xff]
    %v536 = vld [vmem:[#allocation9 + $0xe8] sm:$0xff]
    %v537 = vld [vmem:[#allocation9 + $0xf0] sm:$0xff]
    %v538 = vld [vmem:[#allocation9 + $0xf8] sm:$0xff]
    %v539 = vld [vmem:[#allocation9 + $0x100] sm:$0xff]
    %v540 = vld [vmem:[#allocation9 + $0x108] sm:$0xff]
    %v541 = vld [vmem:[#allocation9 + $0x110] sm:$0xff]
    %v542 = vld [vmem:[#allocation9 + $0x118] sm:$0xff]
    %v543 = vld [vmem:[#allocation9 + $0x120] sm:$0xff]
    %v544 = vld [vmem:[#allocation9 + $0x128] sm:$0xff]
    %v545 = vld [vmem:[#allocation9 + $0x130] sm:$0xff]
    %v546 = vld [vmem:[#allocation9 + $0x138] sm:$0xff]
    %v547 = vld [vmem:[#allocation9 + $0x140] sm:$0xff]
    %v548 = vld [vmem:[#allocation9 + $0x148] sm:$0xff]
    %v549 = vld [vmem:[#allocation9 + $0x150] sm:$0xff]
    %v550 = vld [vmem:[#allocation9 + $0x158] sm:$0xff]
    %v551 = vld [vmem:[#allocation9 + $0x160] sm:$0xff]
    %v552 = vld [vmem:[#allocation9 + $0x168] sm:$0xff]
    %v553 = vld [vmem:[#allocation9 + $0x170] sm:$0xff]
    %v554 = vld [vmem:[#allocation9 + $0x178] sm:$0xff]
    %v555 = vld [vmem:[%s4] sm:$0x1]
    %s556 = smul.u32 0, 3
    %s557 = smul.addr %s556, 8
    %s558 = scalar_lea.vmem [#allocation2], %s557
    %v559 = vld [vmem:[%s558] sm:$0xff]
    %v560 = vld [vmem:[%s558 + $0x8] sm:$0xff]
    %v561 = vld [vmem:[%s558 + $0x10] sm:$0xff]
    %562 = vmatprep.subr.mxu0 %v508
    %563 = vmatpush1.msra.mxu0 %v507
    %564 = vmatprep.subr.mxu0 %v511
    %565 = vmatpush1.msra.mxu0 %v510
    %566 = vmatprep.subr.mxu0 %v514
    %567 = vmatpush1.msra.mxu0 %v513
    %568 = vmatprep.subr.mxu0 %v517
    %569 = vmatpush1.msra.mxu0 %v516
    %570 = vmatprep.subr.mxu0 %v520
    %571 = vmatpush1.msra.mxu0 %v519
    %572 = vmatprep.subr.mxu0 %v523
    %573 = vmatpush1.msra.mxu0 %v522
    %574 = vmatprep.subr.mxu0 %v526
    %575 = vmatpush1.msra.mxu0 %v525
    %576 = vmatprep.subr.mxu0 %v529
    %577 = vmatpush1.msra.mxu0 %v528
    %578 = vmatprep.subr.mxu0 %v532
    %579 = vmatpush1.msra.mxu0 %v531
    %580 = vmatprep.subr.mxu0 %v535
    %581 = vmatpush1.msra.mxu0 %v534
    %582 = vmatprep.subr.mxu0 %v538
    %583 = vmatpush1.msra.mxu0 %v537
    %584 = vmatprep.subr.mxu0 %v541
    %585 = vmatpush1.msra.mxu0 %v540
    %586 = vmatprep.subr.mxu0 %v544
    %587 = vmatpush1.msra.mxu0 %v543
    %588 = vmatprep.subr.mxu0 %v547
    %589 = vmatpush1.msra.mxu0 %v546
    %590 = vmatprep.subr.mxu0 %v550
    %591 = vmatpush1.msra.mxu0 %v549
    %592 = vmatprep.subr.mxu0 %v553
    %593 = vmatpush1.msra.mxu0 %v552
    %594 = vmatprep.subr.mxu0 0.0
    %595 = vmatpush1.msra.mxu0 0.0
    %596 = vmatprep.subr.mxu0 0.0
    %597 = vmatpush1.msra.mxu0 0.0
    %598 = vmatprep.subr.mxu0 0.0
    %599 = vmatpush1.msra.mxu0 0.0
    %600 = vmatprep.subr.mxu0 0.0
    %601 = vmatpush1.msra.mxu0 0.0
    %602 = vmatprep.subr.mxu0 0.0
    %603 = vmatpush1.msra.mxu0 0.0
    %604 = vmatprep.subr.mxu0 0.0
    %605 = vmatpush1.msra.mxu0 0.0
    %606 = vmatprep.subr.mxu0 0.0
    %607 = vmatpush1.msra.mxu0 0.0
    %608 = vmatprep.subr.mxu0 0.0
    %609 = vmatpush1.msra.mxu0 0.0
    %610 = vmatprep.subr.mxu0 0.0
    %611 = vmatpush1.msra.mxu0 0.0
    %612 = vmatprep.subr.mxu0 0.0
    %613 = vmatpush1.msra.mxu0 0.0
    %614 = vmatprep.subr.mxu0 0.0
    %615 = vmatpush1.msra.mxu0 0.0
    %616 = vmatprep.subr.mxu0 0.0
    %617 = vmatpush1.msra.mxu0 0.0
    %618 = vmatprep.subr.mxu0 0.0
    %619 = vmatpush1.msra.mxu0 0.0
    %620 = vmatprep.subr.mxu0 0.0
    %621 = vmatpush1.msra.mxu0 0.0
    %622 = vmatprep.subr.mxu0 0.0
    %623 = vmatpush1.msra.mxu0 0.0
    %624 = vmatprep.subr.mxu0 0.0
    %625 = vmatpush1.msra.mxu0 0.0
    %626 = vmatprep.mubr.f32.mxu0 0.0
    %627 = vmatmul.mubr.f32.gmra.mrb[0].mxu0 0.0
    %v628 = vpop.f32.mrb[0].mxu0
    %v629 = vadd.f32 0.0, %v628
    %v630 = vpop.f32.mrb[0].mxu0
    %v631 = vadd.f32 0.0, %v630
    %632 = vdwg.mxu0
    %633 = vmatprep.subr.mxu0 0.0
    %634 = vmatpush1.msra.mxu0 %v509
    %635 = vmatprep.subr.mxu0 0.0
    %636 = vmatpush1.msra.mxu0 %v512
    %637 = vmatprep.subr.mxu0 0.0
    %638 = vmatpush1.msra.mxu0 %v515
    %639 = vmatprep.subr.mxu0 0.0
    %640 = vmatpush1.msra.mxu0 %v518
    %641 = vmatprep.subr.mxu0 0.0
    %642 = vmatpush1.msra.mxu0 %v521
    %643 = vmatprep.subr.mxu0 0.0
    %644 = vmatpush1.msra.mxu0 %v524
    %645 = vmatprep.subr.mxu0 0.0
    %646 = vmatpush1.msra.mxu0 %v527
    %647 = vmatprep.subr.mxu0 0.0
    %648 = vmatpush1.msra.mxu0 %v530
    %649 = vmatprep.subr.mxu0 0.0
    %650 = vmatpush1.msra.mxu0 %v533
    %651 = vmatprep.subr.mxu0 0.0
    %652 = vmatpush1.msra.mxu0 %v536
    %653 = vmatprep.subr.mxu0 0.0
    %654 = vmatpush1.msra.mxu0 %v539
    %655 = vmatprep.subr.mxu0 0.0
    %656 = vmatpush1.msra.mxu0 %v542
    %657 = vmatprep.subr.mxu0 0.0
    %658 = vmatpush1.msra.mxu0 %v545
    %659 = vmatprep.subr.mxu0 0.0
    %660 = vmatpush1.msra.mxu0 %v548
    %661 = vmatprep.subr.mxu0 0.0
    %662 = vmatpush1.msra.mxu0 %v551
    %663 = vmatprep.subr.mxu0 0.0
    %664 = vmatpush1.msra.mxu0 %v554
    %665 = vmatprep.subr.mxu0 0.0
    %666 = vmatpush1.msra.mxu0 0.0
    %667 = vmatprep.subr.mxu0 0.0
    %668 = vmatpush1.msra.mxu0 0.0
    %669 = vmatprep.subr.mxu0 0.0
    %670 = vmatpush1.msra.mxu0 0.0
    %671 = vmatprep.subr.mxu0 0.0
    %672 = vmatpush1.msra.mxu0 0.0
    %673 = vmatprep.subr.mxu0 0.0
    %674 = vmatpush1.msra.mxu0 0.0
    %675 = vmatprep.subr.mxu0 0.0
    %676 = vmatpush1.msra.mxu0 0.0
    %677 = vmatprep.subr.mxu0 0.0
    %678 = vmatpush1.msra.mxu0 0.0
    %679 = vmatprep.subr.mxu0 0.0
    %680 = vmatpush1.msra.mxu0 0.0
    %681 = vmatprep.subr.mxu0 0.0
    %682 = vmatpush1.msra.mxu0 0.0
    %683 = vmatprep.subr.mxu0 0.0
    %684 = vmatpush1.msra.mxu0 0.0
    %685 = vmatprep.subr.mxu0 0.0
    %686 = vmatpush1.msra.mxu0 0.0
    %687 = vmatprep.subr.mxu0 0.0
    %688 = vmatpush1.msra.mxu0 0.0
    %689 = vmatprep.subr.mxu0 0.0
    %690 = vmatpush1.msra.mxu0 0.0
    %691 = vmatprep.subr.mxu0 0.0
    %692 = vmatpush1.msra.mxu0 0.0
    %693 = vmatprep.subr.mxu0 0.0
    %694 = vmatpush1.msra.mxu0 0.0
    %695 = vmatprep.subr.mxu0 0.0
    %696 = vmatpush1.msra.mxu0 0.0
    %697 = vmatprep.mubr.f32.mxu0 0.0
    %698 = vmatmul.mubr.f32.gmra.mrb[0].mxu0 0.0
    %v699 = vpop.f32.mrb[0].mxu0
    %v700 = vadd.f32 0.0, %v699
    %v701 = vpop.f32.mrb[0].mxu0
    %702 = vdwg.mxu0
    %v703 = vadd.f32 %v559, %v629
    %v704 = vxor.u32 %v703, 2147483648
    %v705 = vmul.f32 %v704, 1.442695
    %v706 = vpow.pop %v705
    %v707 = vadd.f32 %v706, 1.0
    %v708 = vrcp.pop %v707
    %v709 = vmul.f32 1.0, %v708
    %v710 = vadd.f32 %v560, %v631
    %v711 = vxor.u32 %v710, 2147483648
    %v712 = vmul.f32 %v711, 1.442695
    %v713 = vpow.pop %v712
    %v714 = vadd.f32 %v713, 1.0
    %v715 = vrcp.pop %v714
    %v716 = vmul.f32 1.0, %v715
    %v718 = vlaneseq
    %v719 = vshrl.u32 %v718, 7
    %v720 = vsub.s32 0, %v719
    %v721 = vrot.slane %v555, %v720
    %v723 = vadd.f32 %v700, %v721
    %v724 = vmul.f32 %v709, %v723
    %v725 = vadd.f32 %v561, %v724
    %v726 = vtanh.pop %v725
    %v727 = vsub.f32 1.0, %v716
    %v728 = vmul.f32 %v727, %v726
    %v729 = vmul.f32 %v716, 0.0
    %v730 = vadd.f32 %v728, %v729
    %731 = vst [vmem:[#allocation3] sm:$0xff] %v730
    %s732 = smul.u32 1, 3
    %s733 = smul.addr %s732, 8
    %s734 = scalar_lea.vmem [#allocation2], %s733
    %v735 = vld [vmem:[%s734] sm:$0xff]
    %v736 = vld [vmem:[%s734 + $0x8] sm:$0xff]
    %v737 = vld [vmem:[%s734 + $0x10] sm:$0xff]
    %738 = vmatprep.subr.mxu0 %v508
    %739 = vmatpush1.msra.mxu0 %v507
    %740 = vmatprep.subr.mxu0 %v511
    %741 = vmatpush1.msra.mxu0 %v510
    %742 = vmatprep.subr.mxu0 %v514
    %743 = vmatpush1.msra.mxu0 %v513
    %744 = vmatprep.subr.mxu0 %v517
    %745 = vmatpush1.msra.mxu0 %v516
    %746 = vmatprep.subr.mxu0 %v520
    %747 = vmatpush1.msra.mxu0 %v519
    %748 = vmatprep.subr.mxu0 %v523
    %749 = vmatpush1.msra.mxu0 %v522
    %750 = vmatprep.subr.mxu0 %v526
    %751 = vmatpush1.msra.mxu0 %v525
    %752 = vmatprep.subr.mxu0 %v529
    %753 = vmatpush1.msra.mxu0 %v528
    %754 = vmatprep.subr.mxu0 %v532
    %755 = vmatpush1.msra.mxu0 %v531
    %756 = vmatprep.subr.mxu0 %v535
    %757 = vmatpush1.msra.mxu0 %v534
    %758 = vmatprep.subr.mxu0 %v538
    %759 = vmatpush1.msra.mxu0 %v537
    %760 = vmatprep.subr.mxu0 %v541
    %761 = vmatpush1.msra.mxu0 %v540
    %762 = vmatprep.subr.mxu0 %v544
    %763 = vmatpush1.msra.mxu0 %v543
    %764 = vmatprep.subr.mxu0 %v547
    %765 = vmatpush1.msra.mxu0 %v546
    %766 = vmatprep.subr.mxu0 %v550
    %767 = vmatpush1.msra.mxu0 %v549
    %768 = vmatprep.subr.mxu0 %v553
    %769 = vmatpush1.msra.mxu0 %v552
    %770 = vmatprep.subr.mxu0 0.0
    %771 = vmatpush1.msra.mxu0 0.0
    %772 = vmatprep.subr.mxu0 0.0
    %773 = vmatpush1.msra.mxu0 0.0
    %774 = vmatprep.subr.mxu0 0.0
    %775 = vmatpush1.msra.mxu0 0.0
    %776 = vmatprep.subr.mxu0 0.0
    %777 = vmatpush1.msra.mxu0 0.0
    %778 = vmatprep.subr.mxu0 0.0
    %779 = vmatpush1.msra.mxu0 0.0
    %780 = vmatprep.subr.mxu0 0.0
    %781 = vmatpush1.msra.mxu0 0.0
    %782 = vmatprep.subr.mxu0 0.0
    %783 = vmatpush1.msra.mxu0 0.0
    %784 = vmatprep.subr.mxu0 0.0
    %785 = vmatpush1.msra.mxu0 0.0
    %786 = vmatprep.subr.mxu0 0.0
    %787 = vmatpush1.msra.mxu0 0.0
    %788 = vmatprep.subr.mxu0 0.0
    %789 = vmatpush1.msra.mxu0 0.0
    %790 = vmatprep.subr.mxu0 0.0
    %791 = vmatpush1.msra.mxu0 0.0
    %792 = vmatprep.subr.mxu0 0.0
    %793 = vmatpush1.msra.mxu0 0.0
    %794 = vmatprep.subr.mxu0 0.0
    %795 = vmatpush1.msra.mxu0 0.0
    %796 = vmatprep.subr.mxu0 0.0
    %797 = vmatpush1.msra.mxu0 0.0
    %798 = vmatprep.subr.mxu0 0.0
    %799 = vmatpush1.msra.mxu0 0.0
    %800 = vmatprep.subr.mxu0 0.0
    %801 = vmatpush1.msra.mxu0 0.0
    %802 = vmatprep.mubr.f32.mxu0 0.0
    %803 = vmatmul.mubr.f32.gmra.mrb[0].mxu0 %v730
    %v804 = vpop.f32.mrb[0].mxu0
    %v805 = vadd.f32 0.0, %v804
    %v806 = vpop.f32.mrb[0].mxu0
    %v807 = vadd.f32 0.0, %v806
    %808 = vdwg.mxu0
    %809 = vmatprep.subr.mxu0 0.0
    %810 = vmatpush1.msra.mxu0 %v509
    %811 = vmatprep.subr.mxu0 0.0
    %812 = vmatpush1.msra.mxu0 %v512
    %813 = vmatprep.subr.mxu0 0.0
    %814 = vmatpush1.msra.mxu0 %v515
    %815 = vmatprep.subr.mxu0 0.0
    %816 = vmatpush1.msra.mxu0 %v518
    %817 = vmatprep.subr.mxu0 0.0
    %818 = vmatpush1.msra.mxu0 %v521
    %819 = vmatprep.subr.mxu0 0.0
    %820 = vmatpush1.msra.mxu0 %v524
    %821 = vmatprep.subr.mxu0 0.0
    %822 = vmatpush1.msra.mxu0 %v527
    %823 = vmatprep.subr.mxu0 0.0
    %824 = vmatpush1.msra.mxu0 %v530
    %825 = vmatprep.subr.mxu0 0.0
    %826 = vmatpush1.msra.mxu0 %v533
    %827 = vmatprep.subr.mxu0 0.0
    %828 = vmatpush1.msra.mxu0 %v536
    %829 = vmatprep.subr.mxu0 0.0
    %830 = vmatpush1.msra.mxu0 %v539
    %831 = vmatprep.subr.mxu0 0.0
    %832 = vmatpush1.msra.mxu0 %v542
    %833 = vmatprep.subr.mxu0 0.0
    %834 = vmatpush1.msra.mxu0 %v545
    %835 = vmatprep.subr.mxu0 0.0
    %836 = vmatpush1.msra.mxu0 %v548
    %837 = vmatprep.subr.mxu0 0.0
    %838 = vmatpush1.msra.mxu0 %v551
    %839 = vmatprep.subr.mxu0 0.0
    %840 = vmatpush1.msra.mxu0 %v554
    %841 = vmatprep.subr.mxu0 0.0
    %842 = vmatpush1.msra.mxu0 0.0
    %843 = vmatprep.subr.mxu0 0.0
    %844 = vmatpush1.msra.mxu0 0.0
    %845 = vmatprep.subr.mxu0 0.0
    %846 = vmatpush1.msra.mxu0 0.0
    %847 = vmatprep.subr.mxu0 0.0
    %848 = vmatpush1.msra.mxu0 0.0
    %849 = vmatprep.subr.mxu0 0.0
    %850 = vmatpush1.msra.mxu0 0.0
    %851 = vmatprep.subr.mxu0 0.0
    %852 = vmatpush1.msra.mxu0 0.0
    %853 = vmatprep.subr.mxu0 0.0
    %854 = vmatpush1.msra.mxu0 0.0
    %855 = vmatprep.subr.mxu0 0.0
    %856 = vmatpush1.msra.mxu0 0.0
    %857 = vmatprep.subr.mxu0 0.0
    %858 = vmatpush1.msra.mxu0 0.0
    %859 = vmatprep.subr.mxu0 0.0
    %860 = vmatpush1.msra.mxu0 0.0
    %861 = vmatprep.subr.mxu0 0.0
    %862 = vmatpush1.msra.mxu0 0.0
    %863 = vmatprep.subr.mxu0 0.0
    %864 = vmatpush1.msra.mxu0 0.0
    %865 = vmatprep.subr.mxu0 0.0
    %866 = vmatpush1.msra.mxu0 0.0
    %867 = vmatprep.subr.mxu0 0.0
    %868 = vmatpush1.msra.mxu0 0.0
    %869 = vmatprep.subr.mxu0 0.0
    %870 = vmatpush1.msra.mxu0 0.0
    %871 = vmatprep.subr.mxu0 0.0
    %872 = vmatpush1.msra.mxu0 0.0
    %873 = vmatprep.mubr.f32.mxu0 0.0
    %874 = vmatmul.mubr.f32.gmra.mrb[0].mxu0 %v730
    %v875 = vpop.f32.mrb[0].mxu0
    %v876 = vadd.f32 0.0, %v875
    %v877 = vpop.f32.mrb[0].mxu0
    %878 = vdwg.mxu0
    %v879 = vadd.f32 %v735, %v805
    %v880 = vxor.u32 %v879, 2147483648
    %v881 = vmul.f32 %v880, 1.442695
    %v882 = vpow.pop %v881
    %v883 = vadd.f32 %v882, 1.0
    %v884 = vrcp.pop %v883
    %v885 = vmul.f32 1.0, %v884
    %v886 = vadd.f32 %v736, %v807
    %v887 = vxor.u32 %v886, 2147483648
    %v888 = vmul.f32 %v887, 1.442695
    %v889 = vpow.pop %v888
    %v890 = vadd.f32 %v889, 1.0
    %v891 = vrcp.pop %v890
    %v892 = vmul.f32 1.0, %v891
    %v893 = vadd.f32 %v876, %v721
    %v894 = vmul.f32 %v885, %v893
    %v895 = vadd.f32 %v737, %v894
    %v896 = vtanh.pop %v895
    %v897 = vsub.f32 1.0, %v892
    %v898 = vmul.f32 %v897, %v896
    %v899 = vmul.f32 %v892, %v730
    %v900 = vadd.f32 %v898, %v899
    %s901 = scalar_lea.vmem [#allocation3], 8
    %902 = vst [vmem:[%s901] sm:$0xff] %v900
    %s903 = smul.u32 2, 3
    %s904 = smul.addr %s903, 8
    %s905 = scalar_lea.vmem [#allocation2], %s904
    %v906 = vld [vmem:[%s905] sm:$0xff]
    %v907 = vld [vmem:[%s905 + $0x8] sm:$0xff]
    %v908 = vld [vmem:[%s905 + $0x10] sm:$0xff]
    %909 = vmatprep.subr.mxu0 %v508
    %910 = vmatpush1.msra.mxu0 %v507
    %911 = vmatprep.subr.mxu0 %v511
    %912 = vmatpush1.msra.mxu0 %v510
    %913 = vmatprep.subr.mxu0 %v514
    %914 = vmatpush1.msra.mxu0 %v513
    %915 = vmatprep.subr.mxu0 %v517
    %916 = vmatpush1.msra.mxu0 %v516
    %917 = vmatprep.subr.mxu0 %v520
    %918 = vmatpush1.msra.mxu0 %v519
    %919 = vmatprep.subr.mxu0 %v523
    %920 = vmatpush1.msra.mxu0 %v522
    %921 = vmatprep.subr.mxu0 %v526
    %922 = vmatpush1.msra.mxu0 %v525
    %923 = vmatprep.subr.mxu0 %v529
    %924 = vmatpush1.msra.mxu0 %v528
    %925 = vmatprep.subr.mxu0 %v532
    %926 = vmatpush1.msra.mxu0 %v531
    %927 = vmatprep.subr.mxu0 %v535
    %928 = vmatpush1.msra.mxu0 %v534
    %929 = vmatprep.subr.mxu0 %v538
    %930 = vmatpush1.msra.mxu0 %v537
    %931 = vmatprep.subr.mxu0 %v541
    %932 = vmatpush1.msra.mxu0 %v540
    %933 = vmatprep.subr.mxu0 %v544
    %934 = vmatpush1.msra.mxu0 %v543
    %935 = vmatprep.subr.mxu0 %v547
    %936 = vmatpush1.msra.mxu0 %v546
    %937 = vmatprep.subr.mxu0 %v550
    %938 = vmatpush1.msra.mxu0 %v549
    %939 = vmatprep.subr.mxu0 %v553
    %940 = vmatpush1.msra.mxu0 %v552
    %941 = vmatprep.subr.mxu0 0.0
    %942 = vmatpush1.msra.mxu0 0.0
    %943 = vmatprep.subr.mxu0 0.0
    %944 = vmatpush1.msra.mxu0 0.0
    %945 = vmatprep.subr.mxu0 0.0
    %946 = vmatpush1.msra.mxu0 0.0
    %947 = vmatprep.subr.mxu0 0.0
    %948 = vmatpush1.msra.mxu0 0.0
    %949 = vmatprep.subr.mxu0 0.0
    %950 = vmatpush1.msra.mxu0 0.0
    %951 = vmatprep.subr.mxu0 0.0
    %952 = vmatpush1.msra.mxu0 0.0
    %953 = vmatprep.subr.mxu0 0.0
    %954 = vmatpush1.msra.mxu0 0.0
    %955 = vmatprep.subr.mxu0 0.0
    %956 = vmatpush1.msra.mxu0 0.0
    %957 = vmatprep.subr.mxu0 0.0
    %958 = vmatpush1.msra.mxu0 0.0
    %959 = vmatprep.subr.mxu0 0.0
    %960 = vmatpush1.msra.mxu0 0.0
    %961 = vmatprep.subr.mxu0 0.0
    %962 = vmatpush1.msra.mxu0 0.0
    %963 = vmatprep.subr.mxu0 0.0
    %964 = vmatpush1.msra.mxu0 0.0
    %965 = vmatprep.subr.mxu0 0.0
    %966 = vmatpush1.msra.mxu0 0.0
    %967 = vmatprep.subr.mxu0 0.0
    %968 = vmatpush1.msra.mxu0 0.0
    %969 = vmatprep.subr.mxu0 0.0
    %970 = vmatpush1.msra.mxu0 0.0
    %971 = vmatprep.subr.mxu0 0.0
    %972 = vmatpush1.msra.mxu0 0.0
    %973 = vmatprep.mubr.f32.mxu0 0.0
    %974 = vmatmul.mubr.f32.gmra.mrb[0].mxu0 %v900
    %v975 = vpop.f32.mrb[0].mxu0
    %v976 = vadd.f32 0.0, %v975
    %v977 = vpop.f32.mrb[0].mxu0
    %v978 = vadd.f32 0.0, %v977
    %979 = vdwg.mxu0
    %980 = vmatprep.subr.mxu0 0.0
    %981 = vmatpush1.msra.mxu0 %v509
    %982 = vmatprep.subr.mxu0 0.0
    %983 = vmatpush1.msra.mxu0 %v512
    %984 = vmatprep.subr.mxu0 0.0
    %985 = vmatpush1.msra.mxu0 %v515
    %986 = vmatprep.subr.mxu0 0.0
    %987 = vmatpush1.msra.mxu0 %v518
    %988 = vmatprep.subr.mxu0 0.0
    %989 = vmatpush1.msra.mxu0 %v521
    %990 = vmatprep.subr.mxu0 0.0
    %991 = vmatpush1.msra.mxu0 %v524
    %992 = vmatprep.subr.mxu0 0.0
    %993 = vmatpush1.msra.mxu0 %v527
    %994 = vmatprep.subr.mxu0 0.0
    %995 = vmatpush1.msra.mxu0 %v530
    %996 = vmatprep.subr.mxu0 0.0
    %997 = vmatpush1.msra.mxu0 %v533
    %998 = vmatprep.subr.mxu0 0.0
    %999 = vmatpush1.msra.mxu0 %v536
    %1000 = vmatprep.subr.mxu0 0.0
    %1001 = vmatpush1.msra.mxu0 %v539
    %1002 = vmatprep.subr.mxu0 0.0
    %1003 = vmatpush1.msra.mxu0 %v542
    %1004 = vmatprep.subr.mxu0 0.0
    %1005 = vmatpush1.msra.mxu0 %v545
    %1006 = vmatprep.subr.mxu0 0.0
    %1007 = vmatpush1.msra.mxu0 %v548
    %1008 = vmatprep.subr.mxu0 0.0
    %1009 = vmatpush1.msra.mxu0 %v551
    %1010 = vmatprep.subr.mxu0 0.0
    %1011 = vmatpush1.msra.mxu0 %v554
    %1012 = vmatprep.subr.mxu0 0.0
    %1013 = vmatpush1.msra.mxu0 0.0
    %1014 = vmatprep.subr.mxu0 0.0
    %1015 = vmatpush1.msra.mxu0 0.0
    %1016 = vmatprep.subr.mxu0 0.0
    %1017 = vmatpush1.msra.mxu0 0.0
    %1018 = vmatprep.subr.mxu0 0.0
    %1019 = vmatpush1.msra.mxu0 0.0
    %1020 = vmatprep.subr.mxu0 0.0
    %1021 = vmatpush1.msra.mxu0 0.0
    %1022 = vmatprep.subr.mxu0 0.0
    %1023 = vmatpush1.msra.mxu0 0.0
    %1024 = vmatprep.subr.mxu0 0.0
    %1025 = vmatpush1.msra.mxu0 0.0
    %1026 = vmatprep.subr.mxu0 0.0
    %1027 = vmatpush1.msra.mxu0 0.0
    %1028 = vmatprep.subr.mxu0 0.0
    %1029 = vmatpush1.msra.mxu0 0.0
    %1030 = vmatprep.subr.mxu0 0.0
    %1031 = vmatpush1.msra.mxu0 0.0
    %1032 = vmatprep.subr.mxu0 0.0
    %1033 = vmatpush1.msra.mxu0 0.0
    %1034 = vmatprep.subr.mxu0 0.0
    %1035 = vmatpush1.msra.mxu0 0.0
    %1036 = vmatprep.subr.mxu0 0.0
    %1037 = vmatpush1.msra.mxu0 0.0
    %1038 = vmatprep.subr.mxu0 0.0
    %1039 = vmatpush1.msra.mxu0 0.0
    %1040 = vmatprep.subr.mxu0 0.0
    %1041 = vmatpush1.msra.mxu0 0.0
    %1042 = vmatprep.subr.mxu0 0.0
    %1043 = vmatpush1.msra.mxu0 0.0
    %1044 = vmatprep.mubr.f32.mxu0 0.0
    %1045 = vmatmul.mubr.f32.gmra.mrb[0].mxu0 %v900
    %v1046 = vpop.f32.mrb[0].mxu0
    %v1047 = vadd.f32 0.0, %v1046
    %v1048 = vpop.f32.mrb[0].mxu0
    %1049 = vdwg.mxu0
    %v1050 = vadd.f32 %v906, %v976
    %v1051 = vxor.u32 %v1050, 2147483648
    %v1052 = vmul.f32 %v1051, 1.442695
    %v1053 = vpow.pop %v1052
    %v1054 = vadd.f32 %v1053, 1.0
    %v1055 = vrcp.pop %v1054
    %v1056 = vmul.f32 1.0, %v1055
    %v1057 = vadd.f32 %v907, %v978
    %v1058 = vxor.u32 %v1057, 2147483648
    %v1059 = vmul.f32 %v1058, 1.442695
    %v1060 = vpow.pop %v1059
    %v1061 = vadd.f32 %v1060, 1.0
    %v1062 = vrcp.pop %v1061
    %v1063 = vmul.f32 1.0, %v1062
    %v1064 = vadd.f32 %v1047, %v721
    %v1065 = vmul.f32 %v1056, %v1064
    %v1066 = vadd.f32 %v908, %v1065
    %v1067 = vtanh.pop %v1066
    %v1068 = vsub.f32 1.0, %v1063
    %v1069 = vmul.f32 %v1068, %v1067
    %v1070 = vmul.f32 %v1063, %v900
    %v1071 = vadd.f32 %v1069, %v1070
    %s1072 = scalar_lea.vmem [#allocation3], 16
    %1073 = vst [vmem:[%s1072] sm:$0xff] %v1071
    %s1074 = smul.u32 3, 3
    %s1075 = smul.addr %s1074, 8
    %s1076 = scalar_lea.vmem [#allocation2], %s1075
    %v1077 = vld [vmem:[%s1076] sm:$0xff]
    %v1078 = vld [vmem:[%s1076 + $0x8] sm:$0xff]
    %v1079 = vld [vmem:[%s1076 + $0x10] sm:$0xff]
    %1080 = vmatprep.subr.mxu0 %v508
    %1081 = vmatpush1.msra.mxu0 %v507
    %1082 = vmatprep.subr.mxu0 %v511
    %1083 = vmatpush1.msra.mxu0 %v510
    %1084 = vmatprep.subr.mxu0 %v514
    %1085 = vmatpush1.msra.mxu0 %v513
    %1086 = vmatprep.subr.mxu0 %v517
    %1087 = vmatpush1.msra.mxu0 %v516
    %1088 = vmatprep.subr.mxu0 %v520
    %1089 = vmatpush1.msra.mxu0 %v519
    %1090 = vmatprep.subr.mxu0 %v523
    %1091 = vmatpush1.msra.mxu0 %v522
    %1092 = vmatprep.subr.mxu0 %v526
    %1093 = vmatpush1.msra.mxu0 %v525
    %1094 = vmatprep.subr.mxu0 %v529
    %1095 = vmatpush1.msra.mxu0 %v528
    %1096 = vmatprep.subr.mxu0 %v532
    %1097 = vmatpush1.msra.mxu0 %v531
    %1098 = vmatprep.subr.mxu0 %v535
    %1099 = vmatpush1.msra.mxu0 %v534
    %1100 = vmatprep.subr.mxu0 %v538
    %1101 = vmatpush1.msra.mxu0 %v537
    %1102 = vmatprep.subr.mxu0 %v541
    %1103 = vmatpush1.msra.mxu0 %v540
    %1104 = vmatprep.subr.mxu0 %v544
    %1105 = vmatpush1.msra.mxu0 %v543
    %1106 = vmatprep.subr.mxu0 %v547
    %1107 = vmatpush1.msra.mxu0 %v546
    %1108 = vmatprep.subr.mxu0 %v550
    %1109 = vmatpush1.msra.mxu0 %v549
    %1110 = vmatprep.subr.mxu0 %v553
    %1111 = vmatpush1.msra.mxu0 %v552
    %1112 = vmatprep.subr.mxu0 0.0
    %1113 = vmatpush1.msra.mxu0 0.0
    %1114 = vmatprep.subr.mxu0 0.0
    %1115 = vmatpush1.msra.mxu0 0.0
    %1116 = vmatprep.subr.mxu0 0.0
    %1117 = vmatpush1.msra.mxu0 0.0
    %1118 = vmatprep.subr.mxu0 0.0
    %1119 = vmatpush1.msra.mxu0 0.0
    %1120 = vmatprep.subr.mxu0 0.0
    %1121 = vmatpush1.msra.mxu0 0.0
    %1122 = vmatprep.subr.mxu0 0.0
    %1123 = vmatpush1.msra.mxu0 0.0
    %1124 = vmatprep.subr.mxu0 0.0
    %1125 = vmatpush1.msra.mxu0 0.0
    %1126 = vmatprep.subr.mxu0 0.0
    %1127 = vmatpush1.msra.mxu0 0.0
    %1128 = vmatprep.subr.mxu0 0.0
    %1129 = vmatpush1.msra.mxu0 0.0
    %1130 = vmatprep.subr.mxu0 0.0
    %1131 = vmatpush1.msra.mxu0 0.0
    %1132 = vmatprep.subr.mxu0 0.0
    %1133 = vmatpush1.msra.mxu0 0.0
    %1134 = vmatprep.subr.mxu0 0.0
    %1135 = vmatpush1.msra.mxu0 0.0
    %1136 = vmatprep.subr.mxu0 0.0
    %1137 = vmatpush1.msra.mxu0 0.0
    %1138 = vmatprep.subr.mxu0 0.0
    %1139 = vmatpush1.msra.mxu0 0.0
    %1140 = vmatprep.subr.mxu0 0.0
    %1141 = vmatpush1.msra.mxu0 0.0
    %1142 = vmatprep.subr.mxu0 0.0
    %1143 = vmatpush1.msra.mxu0 0.0
    %1144 = vmatprep.mubr.f32.mxu0 0.0
    %1145 = vmatmul.mubr.f32.gmra.mrb[0].mxu0 %v1071
    %v1146 = vpop.f32.mrb[0].mxu0
    %v1147 = vadd.f32 0.0, %v1146
    %v1148 = vpop.f32.mrb[0].mxu0
    %v1149 = vadd.f32 0.0, %v1148
    %1150 = vdwg.mxu0
    %1151 = vmatprep.subr.mxu0 0.0
    %1152 = vmatpush1.msra.mxu0 %v509
    %1153 = vmatprep.subr.mxu0 0.0
    %1154 = vmatpush1.msra.mxu0 %v512
    %1155 = vmatprep.subr.mxu0 0.0
    %1156 = vmatpush1.msra.mxu0 %v515
    %1157 = vmatprep.subr.mxu0 0.0
    %1158 = vmatpush1.msra.mxu0 %v518
    %1159 = vmatprep.subr.mxu0 0.0
    %1160 = vmatpush1.msra.mxu0 %v521
    %1161 = vmatprep.subr.mxu0 0.0
    %1162 = vmatpush1.msra.mxu0 %v524
    %1163 = vmatprep.subr.mxu0 0.0
    %1164 = vmatpush1.msra.mxu0 %v527
    %1165 = vmatprep.subr.mxu0 0.0
    %1166 = vmatpush1.msra.mxu0 %v530
    %1167 = vmatprep.subr.mxu0 0.0
    %1168 = vmatpush1.msra.mxu0 %v533
    %1169 = vmatprep.subr.mxu0 0.0
    %1170 = vmatpush1.msra.mxu0 %v536
    %1171 = vmatprep.subr.mxu0 0.0
    %1172 = vmatpush1.msra.mxu0 %v539
    %1173 = vmatprep.subr.mxu0 0.0
    %1174 = vmatpush1.msra.mxu0 %v542
    %1175 = vmatprep.subr.mxu0 0.0
    %1176 = vmatpush1.msra.mxu0 %v545
    %1177 = vmatprep.subr.mxu0 0.0
    %1178 = vmatpush1.msra.mxu0 %v548
    %1179 = vmatprep.subr.mxu0 0.0
    %1180 = vmatpush1.msra.mxu0 %v551
    %1181 = vmatprep.subr.mxu0 0.0
    %1182 = vmatpush1.msra.mxu0 %v554
    %1183 = vmatprep.subr.mxu0 0.0
    %1184 = vmatpush1.msra.mxu0 0.0
    %1185 = vmatprep.subr.mxu0 0.0
    %1186 = vmatpush1.msra.mxu0 0.0
    %1187 = vmatprep.subr.mxu0 0.0
    %1188 = vmatpush1.msra.mxu0 0.0
    %1189 = vmatprep.subr.mxu0 0.0
    %1190 = vmatpush1.msra.mxu0 0.0
    %1191 = vmatprep.subr.mxu0 0.0
    %1192 = vmatpush1.msra.mxu0 0.0
    %1193 = vmatprep.subr.mxu0 0.0
    %1194 = vmatpush1.msra.mxu0 0.0
    %1195 = vmatprep.subr.mxu0 0.0
    %1196 = vmatpush1.msra.mxu0 0.0
    %1197 = vmatprep.subr.mxu0 0.0
    %1198 = vmatpush1.msra.mxu0 0.0
    %1199 = vmatprep.subr.mxu0 0.0
    %1200 = vmatpush1.msra.mxu0 0.0
    %1201 = vmatprep.subr.mxu0 0.0
    %1202 = vmatpush1.msra.mxu0 0.0
    %1203 = vmatprep.subr.mxu0 0.0
    %1204 = vmatpush1.msra.mxu0 0.0
    %1205 = vmatprep.subr.mxu0 0.0
    %1206 = vmatpush1.msra.mxu0 0.0
    %1207 = vmatprep.subr.mxu0 0.0
    %1208 = vmatpush1.msra.mxu0 0.0
    %1209 = vmatprep.subr.mxu0 0.0
    %1210 = vmatpush1.msra.mxu0 0.0
    %1211 = vmatprep.subr.mxu0 0.0
    %1212 = vmatpush1.msra.mxu0 0.0
    %1213 = vmatprep.subr.mxu0 0.0
    %1214 = vmatpush1.msra.mxu0 0.0
    %1215 = vmatprep.mubr.f32.mxu0 0.0
    %1216 = vmatmul.mubr.f32.gmra.mrb[0].mxu0 %v1071
    %v1217 = vpop.f32.mrb[0].mxu0
    %v1218 = vadd.f32 0.0, %v1217
    %v1219 = vpop.f32.mrb[0].mxu0
    %1220 = vdwg.mxu0
    %v1221 = vadd.f32 %v1077, %v1147
    %v1222 = vxor.u32 %v1221, 2147483648
    %v1223 = vmul.f32 %v1222, 1.442695
    %v1224 = vpow.pop %v1223
    %v1225 = vadd.f32 %v1224, 1.0
    %v1226 = vrcp.pop %v1225
    %v1227 = vmul.f32 1.0, %v1226
    %v1228 = vadd.f32 %v1078, %v1149
    %v1229 = vxor.u32 %v1228, 2147483648
    %v1230 = vmul.f32 %v1229, 1.442695
    %v1231 = vpow.pop %v1230
    %v1232 = vadd.f32 %v1231, 1.0
    %v1233 = vrcp.pop %v1232
    %v1234 = vmul.f32 1.0, %v1233
    %v1235 = vadd.f32 %v1218, %v721
    %v1236 = vmul.f32 %v1227, %v1235
    %v1237 = vadd.f32 %v1079, %v1236
    %v1238 = vtanh.pop %v1237
    %v1239 = vsub.f32 1.0, %v1234
    %v1240 = vmul.f32 %v1239, %v1238
    %v1241 = vmul.f32 %v1234, %v1071
    %v1242 = vadd.f32 %v1240, %v1241
    %s1243 = scalar_lea.vmem [#allocation3], 24
    %1244 = vst [vmem:[%s1243] sm:$0xff] %v1242
    %s1245 = smul.u32 4, 3
    %s1246 = smul.addr %s1245, 8
    %s1247 = scalar_lea.vmem [#allocation2], %s1246
    %v1248 = vld [vmem:[%s1247] sm:$0xff]
    %v1249 = vld [vmem:[%s1247 + $0x8] sm:$0xff]
    %v1250 = vld [vmem:[%s1247 + $0x10] sm:$0xff]
    %1251 = vmatprep.subr.mxu0 %v508
    %1252 = vmatpush1.msra.mxu0 %v507
    %1253 = vmatprep.subr.mxu0 %v511
    %1254 = vmatpush1.msra.mxu0 %v510
    %1255 = vmatprep.subr.mxu0 %v514
    %1256 = vmatpush1.msra.mxu0 %v513
    %1257 = vmatprep.subr.mxu0 %v517
    %1258 = vmatpush1.msra.mxu0 %v516
    %1259 = vmatprep.subr.mxu0 %v520
    %1260 = vmatpush1.msra.mxu0 %v519
    %1261 = vmatprep.subr.mxu0 %v523
    %1262 = vmatpush1.msra.mxu0 %v522
    %1263 = vmatprep.subr.mxu0 %v526
    %1264 = vmatpush1.msra.mxu0 %v525
    %1265 = vmatprep.subr.mxu0 %v529
    %1266 = vmatpush1.msra.mxu0 %v528
    %1267 = vmatprep.subr.mxu0 %v532
    %1268 = vmatpush1.msra.mxu0 %v531
    %1269 = vmatprep.subr.mxu0 %v535
    %1270 = vmatpush1.msra.mxu0 %v534
    %1271 = vmatprep.subr.mxu0 %v538
    %1272 = vmatpush1.msra.mxu0 %v537
    %1273 = vmatprep.subr.mxu0 %v541
    %1274 = vmatpush1.msra.mxu0 %v540
    %1275 = vmatprep.subr.mxu0 %v544
    %1276 = vmatpush1.msra.mxu0 %v543
    %1277 = vmatprep.subr.mxu0 %v547
    %1278 = vmatpush1.msra.mxu0 %v546
    %1279 = vmatprep.subr.mxu0 %v550
    %1280 = vmatpush1.msra.mxu0 %v549
    %1281 = vmatprep.subr.mxu0 %v553
    %1282 = vmatpush1.msra.mxu0 %v552
    %1283 = vmatprep.subr.mxu0 0.0
    %1284 = vmatpush1.msra.mxu0 0.0
    %1285 = vmatprep.subr.mxu0 0.0
    %1286 = vmatpush1.msra.mxu0 0.0
    %1287 = vmatprep.subr.mxu0 0.0
    %1288 = vmatpush1.msra.mxu0 0.0
    %1289 = vmatprep.subr.mxu0 0.0
    %1290 = vmatpush1.msra.mxu0 0.0
    %1291 = vmatprep.subr.mxu0 0.0
    %1292 = vmatpush1.msra.mxu0 0.0
    %1293 = vmatprep.subr.mxu0 0.0
    %1294 = vmatpush1.msra.mxu0 0.0
    %1295 = vmatprep.subr.mxu0 0.0
    %1296 = vmatpush1.msra.mxu0 0.0
    %1297 = vmatprep.subr.mxu0 0.0
    %1298 = vmatpush1.msra.mxu0 0.0
    %1299 = vmatprep.subr.mxu0 0.0
    %1300 = vmatpush1.msra.mxu0 0.0
    %1301 = vmatprep.subr.mxu0 0.0
    %1302 = vmatpush1.msra.mxu0 0.0
    %1303 = vmatprep.subr.mxu0 0.0
    %1304 = vmatpush1.msra.mxu0 0.0
    %1305 = vmatprep.subr.mxu0 0.0
    %1306 = vmatpush1.msra.mxu0 0.0
    %1307 = vmatprep.subr.mxu0 0.0
    %1308 = vmatpush1.msra.mxu0 0.0
    %1309 = vmatprep.subr.mxu0 0.0
    %1310 = vmatpush1.msra.mxu0 0.0
    %1311 = vmatprep.subr.mxu0 0.0
    %1312 = vmatpush1.msra.mxu0 0.0
    %1313 = vmatprep.subr.mxu0 0.0
    %1314 = vmatpush1.msra.mxu0 0.0
    %1315 = vmatprep.mubr.f32.mxu0 0.0
    %1316 = vmatmul.mubr.f32.gmra.mrb[0].mxu0 %v1242
    %v1317 = vpop.f32.mrb[0].mxu0
    %v1318 = vadd.f32 0.0, %v1317
    %v1319 = vpop.f32.mrb[0].mxu0
    %v1320 = vadd.f32 0.0, %v1319
    %1321 = vdwg.mxu0
    %1322 = vmatprep.subr.mxu0 0.0
    %1323 = vmatpush1.msra.mxu0 %v509
    %1324 = vmatprep.subr.mxu0 0.0
    %1325 = vmatpush1.msra.mxu0 %v512
    %1326 = vmatprep.subr.mxu0 0.0
    %1327 = vmatpush1.msra.mxu0 %v515
    %1328 = vmatprep.subr.mxu0 0.0
    %1329 = vmatpush1.msra.mxu0 %v518
    %1330 = vmatprep.subr.mxu0 0.0
    %1331 = vmatpush1.msra.mxu0 %v521
    %1332 = vmatprep.subr.mxu0 0.0
    %1333 = vmatpush1.msra.mxu0 %v524
    %1334 = vmatprep.subr.mxu0 0.0
    %1335 = vmatpush1.msra.mxu0 %v527
    %1336 = vmatprep.subr.mxu0 0.0
    %1337 = vmatpush1.msra.mxu0 %v530
    %1338 = vmatprep.subr.mxu0 0.0
    %1339 = vmatpush1.msra.mxu0 %v533
    %1340 = vmatprep.subr.mxu0 0.0
    %1341 = vmatpush1.msra.mxu0 %v536
    %1342 = vmatprep.subr.mxu0 0.0
    %1343 = vmatpush1.msra.mxu0 %v539
    %1344 = vmatprep.subr.mxu0 0.0
    %1345 = vmatpush1.msra.mxu0 %v542
    %1346 = vmatprep.subr.mxu0 0.0
    %1347 = vmatpush1.msra.mxu0 %v545
    %1348 = vmatprep.subr.mxu0 0.0
    %1349 = vmatpush1.msra.mxu0 %v548
    %1350 = vmatprep.subr.mxu0 0.0
    %1351 = vmatpush1.msra.mxu0 %v551
    %1352 = vmatprep.subr.mxu0 0.0
    %1353 = vmatpush1.msra.mxu0 %v554
    %1354 = vmatprep.subr.mxu0 0.0
    %1355 = vmatpush1.msra.mxu0 0.0
    %1356 = vmatprep.subr.mxu0 0.0
    %1357 = vmatpush1.msra.mxu0 0.0
    %1358 = vmatprep.subr.mxu0 0.0
    %1359 = vmatpush1.msra.mxu0 0.0
    %1360 = vmatprep.subr.mxu0 0.0
    %1361 = vmatpush1.msra.mxu0 0.0
    %1362 = vmatprep.subr.mxu0 0.0
    %1363 = vmatpush1.msra.mxu0 0.0
    %1364 = vmatprep.subr.mxu0 0.0
    %1365 = vmatpush1.msra.mxu0 0.0
    %1366 = vmatprep.subr.mxu0 0.0
    %1367 = vmatpush1.msra.mxu0 0.0
    %1368 = vmatprep.subr.mxu0 0.0
    %1369 = vmatpush1.msra.mxu0 0.0
    %1370 = vmatprep.subr.mxu0 0.0
    %1371 = vmatpush1.msra.mxu0 0.0
    %1372 = vmatprep.subr.mxu0 0.0
    %1373 = vmatpush1.msra.mxu0 0.0
    %1374 = vmatprep.subr.mxu0 0.0
    %1375 = vmatpush1.msra.mxu0 0.0
    %1376 = vmatprep.subr.mxu0 0.0
    %1377 = vmatpush1.msra.mxu0 0.0
    %1378 = vmatprep.subr.mxu0 0.0
    %1379 = vmatpush1.msra.mxu0 0.0
    %1380 = vmatprep.subr.mxu0 0.0
    %1381 = vmatpush1.msra.mxu0 0.0
    %1382 = vmatprep.subr.mxu0 0.0
    %1383 = vmatpush1.msra.mxu0 0.0
    %1384 = vmatprep.subr.mxu0 0.0
    %1385 = vmatpush1.msra.mxu0 0.0
    %1386 = vmatprep.mubr.f32.mxu0 0.0
    %1387 = vmatmul.mubr.f32.gmra.mrb[0].mxu0 %v1242
    %v1388 = vpop.f32.mrb[0].mxu0
    %v1389 = vadd.f32 0.0, %v1388
    %v1390 = vpop.f32.mrb[0].mxu0
    %1391 = vdwg.mxu0
    %v1392 = vadd.f32 %v1248, %v1318
    %v1393 = vxor.u32 %v1392, 2147483648
    %v1394 = vmul.f32 %v1393, 1.442695
    %v1395 = vpow.pop %v1394
    %v1396 = vadd.f32 %v1395, 1.0
    %v1397 = vrcp.pop %v1396
    %v1398 = vmul.f32 1.0, %v1397
    %v1399 = vadd.f32 %v1249, %v1320
    %v1400 = vxor.u32 %v1399, 2147483648
    %v1401 = vmul.f32 %v1400, 1.442695
    %v1402 = vpow.pop %v1401
    %v1403 = vadd.f32 %v1402, 1.0
    %v1404 = vrcp.pop %v1403
    %v1405 = vmul.f32 1.0, %v1404
    %v1406 = vadd.f32 %v1389, %v721
    %v1407 = vmul.f32 %v1398, %v1406
    %v1408 = vadd.f32 %v1250, %v1407
    %v1409 = vtanh.pop %v1408
    %v1410 = vsub.f32 1.0, %v1405
    %v1411 = vmul.f32 %v1410, %v1409
    %v1412 = vmul.f32 %v1405, %v1242
    %v1413 = vadd.f32 %v1411, %v1412
    %s1414 = scalar_lea.vmem [#allocation3], 32
    %1415 = vst [vmem:[%s1414] sm:$0xff] %v1413
    %s1416 = smul.u32 5, 3
    %s1417 = smul.addr %s1416, 8
    %s1418 = scalar_lea.vmem [#allocation2], %s1417
    %v1419 = vld [vmem:[%s1418] sm:$0xff]
    %v1420 = vld [vmem:[%s1418 + $0x8] sm:$0xff]
    %v1421 = vld [vmem:[%s1418 + $0x10] sm:$0xff]
    %1422 = vmatprep.subr.mxu0 %v508
    %1423 = vmatpush1.msra.mxu0 %v507
    %1424 = vmatprep.subr.mxu0 %v511
    %1425 = vmatpush1.msra.mxu0 %v510
    %1426 = vmatprep.subr.mxu0 %v514
    %1427 = vmatpush1.msra.mxu0 %v513
    %1428 = vmatprep.subr.mxu0 %v517
    %1429 = vmatpush1.msra.mxu0 %v516
    %1430 = vmatprep.subr.mxu0 %v520
    %1431 = vmatpush1.msra.mxu0 %v519
    %1432 = vmatprep.subr.mxu0 %v523
    %1433 = vmatpush1.msra.mxu0 %v522
    %1434 = vmatprep.subr.mxu0 %v526
    %1435 = vmatpush1.msra.mxu0 %v525
    %1436 = vmatprep.subr.mxu0 %v529
    %1437 = vmatpush1.msra.mxu0 %v528
    %1438 = vmatprep.subr.mxu0 %v532
    %1439 = vmatpush1.msra.mxu0 %v531
    %1440 = vmatprep.subr.mxu0 %v535
    %1441 = vmatpush1.msra.mxu0 %v534
    %1442 = vmatprep.subr.mxu0 %v538
    %1443 = vmatpush1.msra.mxu0 %v537
    %1444 = vmatprep.subr.mxu0 %v541
    %1445 = vmatpush1.msra.mxu0 %v540
    %1446 = vmatprep.subr.mxu0 %v544
    %1447 = vmatpush1.msra.mxu0 %v543
    %1448 = vmatprep.subr.mxu0 %v547
    %1449 = vmatpush1.msra.mxu0 %v546
    %1450 = vmatprep.subr.mxu0 %v550
    %1451 = vmatpush1.msra.mxu0 %v549
    %1452 = vmatprep.subr.mxu0 %v553
    %1453 = vmatpush1.msra.mxu0 %v552
    %1454 = vmatprep.subr.mxu0 0.0
    %1455 = vmatpush1.msra.mxu0 0.0
    %1456 = vmatprep.subr.mxu0 0.0
    %1457 = vmatpush1.msra.mxu0 0.0
    %1458 = vmatprep.subr.mxu0 0.0
    %1459 = vmatpush1.msra.mxu0 0.0
    %1460 = vmatprep.subr.mxu0 0.0
    %1461 = vmatpush1.msra.mxu0 0.0
    %1462 = vmatprep.subr.mxu0 0.0
    %1463 = vmatpush1.msra.mxu0 0.0
    %1464 = vmatprep.subr.mxu0 0.0
    %1465 = vmatpush1.msra.mxu0 0.0
    %1466 = vmatprep.subr.mxu0 0.0
    %1467 = vmatpush1.msra.mxu0 0.0
    %1468 = vmatprep.subr.mxu0 0.0
    %1469 = vmatpush1.msra.mxu0 0.0
    %1470 = vmatprep.subr.mxu0 0.0
    %1471 = vmatpush1.msra.mxu0 0.0
    %1472 = vmatprep.subr.mxu0 0.0
    %1473 = vmatpush1.msra.mxu0 0.0
    %1474 = vmatprep.subr.mxu0 0.0
    %1475 = vmatpush1.msra.mxu0 0.0
    %1476 = vmatprep.subr.mxu0 0.0
    %1477 = vmatpush1.msra.mxu0 0.0
    %1478 = vmatprep.subr.mxu0 0.0
    %1479 = vmatpush1.msra.mxu0 0.0
    %1480 = vmatprep.subr.mxu0 0.0
    %1481 = vmatpush1.msra.mxu0 0.0
    %1482 = vmatprep.subr.mxu0 0.0
    %1483 = vmatpush1.msra.mxu0 0.0
    %1484 = vmatprep.subr.mxu0 0.0
    %1485 = vmatpush1.msra.mxu0 0.0
    %1486 = vmatprep.mubr.f32.mxu0 0.0
    %1487 = vmatmul.mubr.f32.gmra.mrb[0].mxu0 %v1413
    %v1488 = vpop.f32.mrb[0].mxu0
    %v1489 = vadd.f32 0.0, %v1488
    %v1490 = vpop.f32.mrb[0].mxu0
    %v1491 = vadd.f32 0.0, %v1490
    %1492 = vdwg.mxu0
    %1493 = vmatprep.subr.mxu0 0.0
    %1494 = vmatpush1.msra.mxu0 %v509
    %1495 = vmatprep.subr.mxu0 0.0
    %1496 = vmatpush1.msra.mxu0 %v512
    %1497 = vmatprep.subr.mxu0 0.0
    %1498 = vmatpush1.msra.mxu0 %v515
    %1499 = vmatprep.subr.mxu0 0.0
    %1500 = vmatpush1.msra.mxu0 %v518
    %1501 = vmatprep.subr.mxu0 0.0
    %1502 = vmatpush1.msra.mxu0 %v521
    %1503 = vmatprep.subr.mxu0 0.0
    %1504 = vmatpush1.msra.mxu0 %v524
    %1505 = vmatprep.subr.mxu0 0.0
    %1506 = vmatpush1.msra.mxu0 %v527
    %1507 = vmatprep.subr.mxu0 0.0
    %1508 = vmatpush1.msra.mxu0 %v530
    %1509 = vmatprep.subr.mxu0 0.0
    %1510 = vmatpush1.msra.mxu0 %v533
    %1511 = vmatprep.subr.mxu0 0.0
    %1512 = vmatpush1.msra.mxu0 %v536
    %1513 = vmatprep.subr.mxu0 0.0
    %1514 = vmatpush1.msra.mxu0 %v539
    %1515 = vmatprep.subr.mxu0 0.0
    %1516 = vmatpush1.msra.mxu0 %v542
    %1517 = vmatprep.subr.mxu0 0.0
    %1518 = vmatpush1.msra.mxu0 %v545
    %1519 = vmatprep.subr.mxu0 0.0
    %1520 = vmatpush1.msra.mxu0 %v548
    %1521 = vmatprep.subr.mxu0 0.0
    %1522 = vmatpush1.msra.mxu0 %v551
    %1523 = vmatprep.subr.mxu0 0.0
    %1524 = vmatpush1.msra.mxu0 %v554
    %1525 = vmatprep.subr.mxu0 0.0
    %1526 = vmatpush1.msra.mxu0 0.0
    %1527 = vmatprep.subr.mxu0 0.0
    %1528 = vmatpush1.msra.mxu0 0.0
    %1529 = vmatprep.subr.mxu0 0.0
    %1530 = vmatpush1.msra.mxu0 0.0
    %1531 = vmatprep.subr.mxu0 0.0
    %1532 = vmatpush1.msra.mxu0 0.0
    %1533 = vmatprep.subr.mxu0 0.0
    %1534 = vmatpush1.msra.mxu0 0.0
    %1535 = vmatprep.subr.mxu0 0.0
    %1536 = vmatpush1.msra.mxu0 0.0
    %1537 = vmatprep.subr.mxu0 0.0
    %1538 = vmatpush1.msra.mxu0 0.0
    %1539 = vmatprep.subr.mxu0 0.0
    %1540 = vmatpush1.msra.mxu0 0.0
    %1541 = vmatprep.subr.mxu0 0.0
    %1542 = vmatpush1.msra.mxu0 0.0
    %1543 = vmatprep.subr.mxu0 0.0
    %1544 = vmatpush1.msra.mxu0 0.0
    %1545 = vmatprep.subr.mxu0 0.0
    %1546 = vmatpush1.msra.mxu0 0.0
    %1547 = vmatprep.subr.mxu0 0.0
    %1548 = vmatpush1.msra.mxu0 0.0
    %1549 = vmatprep.subr.mxu0 0.0
    %1550 = vmatpush1.msra.mxu0 0.0
    %1551 = vmatprep.subr.mxu0 0.0
    %1552 = vmatpush1.msra.mxu0 0.0
    %1553 = vmatprep.subr.mxu0 0.0
    %1554 = vmatpush1.msra.mxu0 0.0
    %1555 = vmatprep.subr.mxu0 0.0
    %1556 = vmatpush1.msra.mxu0 0.0
    %1557 = vmatprep.mubr.f32.mxu0 0.0
    %1558 = vmatmul.mubr.f32.gmra.mrb[0].mxu0 %v1413
    %v1559 = vpop.f32.mrb[0].mxu0
    %v1560 = vadd.f32 0.0, %v1559
    %v1561 = vpop.f32.mrb[0].mxu0
    %1562 = vdwg.mxu0
    %v1563 = vadd.f32 %v1419, %v1489
    %v1564 = vxor.u32 %v1563, 2147483648
    %v1565 = vmul.f32 %v1564, 1.442695
    %v1566 = vpow.pop %v1565
    %v1567 = vadd.f32 %v1566, 1.0
    %v1568 = vrcp.pop %v1567
    %v1569 = vmul.f32 1.0, %v1568
    %v1570 = vadd.f32 %v1420, %v1491
    %v1571 = vxor.u32 %v1570, 2147483648
    %v1572 = vmul.f32 %v1571, 1.442695
    %v1573 = vpow.pop %v1572
    %v1574 = vadd.f32 %v1573, 1.0
    %v1575 = vrcp.pop %v1574
    %v1576 = vmul.f32 1.0, %v1575
    %v1577 = vadd.f32 %v1560, %v721
    %v1578 = vmul.f32 %v1569, %v1577
    %v1579 = vadd.f32 %v1421, %v1578
    %v1580 = vtanh.pop %v1579
    %v1581 = vsub.f32 1.0, %v1576
    %v1582 = vmul.f32 %v1581, %v1580
    %v1583 = vmul.f32 %v1576, %v1413
    %v1584 = vadd.f32 %v1582, %v1583
    %s1585 = scalar_lea.vmem [#allocation3], 40
    %1586 = vst [vmem:[%s1585] sm:$0xff] %v1584
    %s1587 = smul.u32 6, 3
    %s1588 = smul.addr %s1587, 8
    %s1589 = scalar_lea.vmem [#allocation2], %s1588
    %v1590 = vld [vmem:[%s1589] sm:$0xff]
    %v1591 = vld [vmem:[%s1589 + $0x8] sm:$0xff]
    %v1592 = vld [vmem:[%s1589 + $0x10] sm:$0xff]
    %1593 = vmatprep.subr.mxu0 %v508
    %1594 = vmatpush1.msra.mxu0 %v507
    %1595 = vmatprep.subr.mxu0 %v511
    %1596 = vmatpush1.msra.mxu0 %v510
    %1597 = vmatprep.subr.mxu0 %v514
    %1598 = vmatpush1.msra.mxu0 %v513
    %1599 = vmatprep.subr.mxu0 %v517
    %1600 = vmatpush1.msra.mxu0 %v516
    %1601 = vmatprep.subr.mxu0 %v520
    %1602 = vmatpush1.msra.mxu0 %v519
    %1603 = vmatprep.subr.mxu0 %v523
    %1604 = vmatpush1.msra.mxu0 %v522
    %1605 = vmatprep.subr.mxu0 %v526
    %1606 = vmatpush1.msra.mxu0 %v525
    %1607 = vmatprep.subr.mxu0 %v529
    %1608 = vmatpush1.msra.mxu0 %v528
    %1609 = vmatprep.subr.mxu0 %v532
    %1610 = vmatpush1.msra.mxu0 %v531
    %1611 = vmatprep.subr.mxu0 %v535
    %1612 = vmatpush1.msra.mxu0 %v534
    %1613 = vmatprep.subr.mxu0 %v538
    %1614 = vmatpush1.msra.mxu0 %v537
    %1615 = vmatprep.subr.mxu0 %v541
    %1616 = vmatpush1.msra.mxu0 %v540
    %1617 = vmatprep.subr.mxu0 %v544
    %1618 = vmatpush1.msra.mxu0 %v543
    %1619 = vmatprep.subr.mxu0 %v547
    %1620 = vmatpush1.msra.mxu0 %v546
    %1621 = vmatprep.subr.mxu0 %v550
    %1622 = vmatpush1.msra.mxu0 %v549
    %1623 = vmatprep.subr.mxu0 %v553
    %1624 = vmatpush1.msra.mxu0 %v552
    %1625 = vmatprep.subr.mxu0 0.0
    %1626 = vmatpush1.msra.mxu0 0.0
    %1627 = vmatprep.subr.mxu0 0.0
    %1628 = vmatpush1.msra.mxu0 0.0
    %1629 = vmatprep.subr.mxu0 0.0
    %1630 = vmatpush1.msra.mxu0 0.0
    %1631 = vmatprep.subr.mxu0 0.0
    %1632 = vmatpush1.msra.mxu0 0.0
    %1633 = vmatprep.subr.mxu0 0.0
    %1634 = vmatpush1.msra.mxu0 0.0
    %1635 = vmatprep.subr.mxu0 0.0
    %1636 = vmatpush1.msra.mxu0 0.0
    %1637 = vmatprep.subr.mxu0 0.0
    %1638 = vmatpush1.msra.mxu0 0.0
    %1639 = vmatprep.subr.mxu0 0.0
    %1640 = vmatpush1.msra.mxu0 0.0
    %1641 = vmatprep.subr.mxu0 0.0
    %1642 = vmatpush1.msra.mxu0 0.0
    %1643 = vmatprep.subr.mxu0 0.0
    %1644 = vmatpush1.msra.mxu0 0.0
    %1645 = vmatprep.subr.mxu0 0.0
    %1646 = vmatpush1.msra.mxu0 0.0
    %1647 = vmatprep.subr.mxu0 0.0
    %1648 = vmatpush1.msra.mxu0 0.0
    %1649 = vmatprep.subr.mxu0 0.0
    %1650 = vmatpush1.msra.mxu0 0.0
    %1651 = vmatprep.subr.mxu0 0.0
    %1652 = vmatpush1.msra.mxu0 0.0
    %1653 = vmatprep.subr.mxu0 0.0
    %1654 = vmatpush1.msra.mxu0 0.0
    %1655 = vmatprep.subr.mxu0 0.0
    %1656 = vmatpush1.msra.mxu0 0.0
    %1657 = vmatprep.mubr.f32.mxu0 0.0
    %1658 = vmatmul.mubr.f32.gmra.mrb[0].mxu0 %v1584
    %v1659 = vpop.f32.mrb[0].mxu0
    %v1660 = vadd.f32 0.0, %v1659
    %v1661 = vpop.f32.mrb[0].mxu0
    %v1662 = vadd.f32 0.0, %v1661
    %1663 = vdwg.mxu0
    %1664 = vmatprep.subr.mxu0 0.0
    %1665 = vmatpush1.msra.mxu0 %v509
    %1666 = vmatprep.subr.mxu0 0.0
    %1667 = vmatpush1.msra.mxu0 %v512
    %1668 = vmatprep.subr.mxu0 0.0
    %1669 = vmatpush1.msra.mxu0 %v515
    %1670 = vmatprep.subr.mxu0 0.0
    %1671 = vmatpush1.msra.mxu0 %v518
    %1672 = vmatprep.subr.mxu0 0.0
    %1673 = vmatpush1.msra.mxu0 %v521
    %1674 = vmatprep.subr.mxu0 0.0
    %1675 = vmatpush1.msra.mxu0 %v524
    %1676 = vmatprep.subr.mxu0 0.0
    %1677 = vmatpush1.msra.mxu0 %v527
    %1678 = vmatprep.subr.mxu0 0.0
    %1679 = vmatpush1.msra.mxu0 %v530
    %1680 = vmatprep.subr.mxu0 0.0
    %1681 = vmatpush1.msra.mxu0 %v533
    %1682 = vmatprep.subr.mxu0 0.0
    %1683 = vmatpush1.msra.mxu0 %v536
    %1684 = vmatprep.subr.mxu0 0.0
    %1685 = vmatpush1.msra.mxu0 %v539
    %1686 = vmatprep.subr.mxu0 0.0
    %1687 = vmatpush1.msra.mxu0 %v542
    %1688 = vmatprep.subr.mxu0 0.0
    %1689 = vmatpush1.msra.mxu0 %v545
    %1690 = vmatprep.subr.mxu0 0.0
    %1691 = vmatpush1.msra.mxu0 %v548
    %1692 = vmatprep.subr.mxu0 0.0
    %1693 = vmatpush1.msra.mxu0 %v551
    %1694 = vmatprep.subr.mxu0 0.0
    %1695 = vmatpush1.msra.mxu0 %v554
    %1696 = vmatprep.subr.mxu0 0.0
    %1697 = vmatpush1.msra.mxu0 0.0
    %1698 = vmatprep.subr.mxu0 0.0
    %1699 = vmatpush1.msra.mxu0 0.0
    %1700 = vmatprep.subr.mxu0 0.0
    %1701 = vmatpush1.msra.mxu0 0.0
    %1702 = vmatprep.subr.mxu0 0.0
    %1703 = vmatpush1.msra.mxu0 0.0
    %1704 = vmatprep.subr.mxu0 0.0
    %1705 = vmatpush1.msra.mxu0 0.0
    %1706 = vmatprep.subr.mxu0 0.0
    %1707 = vmatpush1.msra.mxu0 0.0
    %1708 = vmatprep.subr.mxu0 0.0
    %1709 = vmatpush1.msra.mxu0 0.0
    %1710 = vmatprep.subr.mxu0 0.0
    %1711 = vmatpush1.msra.mxu0 0.0
    %1712 = vmatprep.subr.mxu0 0.0
    %1713 = vmatpush1.msra.mxu0 0.0
    %1714 = vmatprep.subr.mxu0 0.0
    %1715 = vmatpush1.msra.mxu0 0.0
    %1716 = vmatprep.subr.mxu0 0.0
    %1717 = vmatpush1.msra.mxu0 0.0
    %1718 = vmatprep.subr.mxu0 0.0
    %1719 = vmatpush1.msra.mxu0 0.0
    %1720 = vmatprep.subr.mxu0 0.0
    %1721 = vmatpush1.msra.mxu0 0.0
    %1722 = vmatprep.subr.mxu0 0.0
    %1723 = vmatpush1.msra.mxu0 0.0
    %1724 = vmatprep.subr.mxu0 0.0
    %1725 = vmatpush1.msra.mxu0 0.0
    %1726 = vmatprep.subr.mxu0 0.0
    %1727 = vmatpush1.msra.mxu0 0.0
    %1728 = vmatprep.mubr.f32.mxu0 0.0
    %1729 = vmatmul.mubr.f32.gmra.mrb[0].mxu0 %v1584
    %v1730 = vpop.f32.mrb[0].mxu0
    %v1731 = vadd.f32 0.0, %v1730
    %v1732 = vpop.f32.mrb[0].mxu0
    %1733 = vdwg.mxu0
    %v1734 = vadd.f32 %v1590, %v1660
    %v1735 = vxor.u32 %v1734, 2147483648
    %v1736 = vmul.f32 %v1735, 1.442695
    %v1737 = vpow.pop %v1736
    %v1738 = vadd.f32 %v1737, 1.0
    %v1739 = vrcp.pop %v1738
    %v1740 = vmul.f32 1.0, %v1739
    %v1741 = vadd.f32 %v1591, %v1662
    %v1742 = vxor.u32 %v1741, 2147483648
    %v1743 = vmul.f32 %v1742, 1.442695
    %v1744 = vpow.pop %v1743
    %v1745 = vadd.f32 %v1744, 1.0
    %v1746 = vrcp.pop %v1745
    %v1747 = vmul.f32 1.0, %v1746
    %v1748 = vadd.f32 %v1731, %v721
    %v1749 = vmul.f32 %v1740, %v1748
    %v1750 = vadd.f32 %v1592, %v1749
    %v1751 = vtanh.pop %v1750
    %v1752 = vsub.f32 1.0, %v1747
    %v1753 = vmul.f32 %v1752, %v1751
    %v1754 = vmul.f32 %v1747, %v1584
    %v1755 = vadd.f32 %v1753, %v1754
    %s1756 = scalar_lea.vmem [#allocation3], 48
    %1757 = vst [vmem:[%s1756] sm:$0xff] %v1755
    %s1758 = smul.u32 7, 3
    %s1759 = smul.addr %s1758, 8
    %s1760 = scalar_lea.vmem [#allocation2], %s1759
    %v1761 = vld [vmem:[%s1760] sm:$0xff]
    %v1762 = vld [vmem:[%s1760 + $0x8] sm:$0xff]
    %v1763 = vld [vmem:[%s1760 + $0x10] sm:$0xff]
    %1764 = vmatprep.subr.mxu0 %v508
    %1765 = vmatpush1.msra.mxu0 %v507
    %1766 = vmatprep.subr.mxu0 %v511
    %1767 = vmatpush1.msra.mxu0 %v510
    %1768 = vmatprep.subr.mxu0 %v514
    %1769 = vmatpush1.msra.mxu0 %v513
    %1770 = vmatprep.subr.mxu0 %v517
    %1771 = vmatpush1.msra.mxu0 %v516
    %1772 = vmatprep.subr.mxu0 %v520
    %1773 = vmatpush1.msra.mxu0 %v519
    %1774 = vmatprep.subr.mxu0 %v523
    %1775 = vmatpush1.msra.mxu0 %v522
    %1776 = vmatprep.subr.mxu0 %v526
    %1777 = vmatpush1.msra.mxu0 %v525
    %1778 = vmatprep.subr.mxu0 %v529
    %1779 = vmatpush1.msra.mxu0 %v528
    %1780 = vmatprep.subr.mxu0 %v532
    %1781 = vmatpush1.msra.mxu0 %v531
    %1782 = vmatprep.subr.mxu0 %v535
    %1783 = vmatpush1.msra.mxu0 %v534
    %1784 = vmatprep.subr.mxu0 %v538
    %1785 = vmatpush1.msra.mxu0 %v537
    %1786 = vmatprep.subr.mxu0 %v541
    %1787 = vmatpush1.msra.mxu0 %v540
    %1788 = vmatprep.subr.mxu0 %v544
    %1789 = vmatpush1.msra.mxu0 %v543
    %1790 = vmatprep.subr.mxu0 %v547
    %1791 = vmatpush1.msra.mxu0 %v546
    %1792 = vmatprep.subr.mxu0 %v550
    %1793 = vmatpush1.msra.mxu0 %v549
    %1794 = vmatprep.subr.mxu0 %v553
    %1795 = vmatpush1.msra.mxu0 %v552
    %1796 = vmatprep.subr.mxu0 0.0
    %1797 = vmatpush1.msra.mxu0 0.0
    %1798 = vmatprep.subr.mxu0 0.0
    %1799 = vmatpush1.msra.mxu0 0.0
    %1800 = vmatprep.subr.mxu0 0.0
    %1801 = vmatpush1.msra.mxu0 0.0
    %1802 = vmatprep.subr.mxu0 0.0
    %1803 = vmatpush1.msra.mxu0 0.0
    %1804 = vmatprep.subr.mxu0 0.0
    %1805 = vmatpush1.msra.mxu0 0.0
    %1806 = vmatprep.subr.mxu0 0.0
    %1807 = vmatpush1.msra.mxu0 0.0
    %1808 = vmatprep.subr.mxu0 0.0
    %1809 = vmatpush1.msra.mxu0 0.0
    %1810 = vmatprep.subr.mxu0 0.0
    %1811 = vmatpush1.msra.mxu0 0.0
    %1812 = vmatprep.subr.mxu0 0.0
    %1813 = vmatpush1.msra.mxu0 0.0
    %1814 = vmatprep.subr.mxu0 0.0
    %1815 = vmatpush1.msra.mxu0 0.0
    %1816 = vmatprep.subr.mxu0 0.0
    %1817 = vmatpush1.msra.mxu0 0.0
    %1818 = vmatprep.subr.mxu0 0.0
    %1819 = vmatpush1.msra.mxu0 0.0
    %1820 = vmatprep.subr.mxu0 0.0
    %1821 = vmatpush1.msra.mxu0 0.0
    %1822 = vmatprep.subr.mxu0 0.0
    %1823 = vmatpush1.msra.mxu0 0.0
    %1824 = vmatprep.subr.mxu0 0.0
    %1825 = vmatpush1.msra.mxu0 0.0
    %1826 = vmatprep.subr.mxu0 0.0
    %1827 = vmatpush1.msra.mxu0 0.0
    %1828 = vmatprep.mubr.f32.mxu0 0.0
    %1829 = vmatmul.mubr.f32.gmra.mrb[0].mxu0 %v1755
    %v1830 = vpop.f32.mrb[0].mxu0
    %v1831 = vadd.f32 0.0, %v1830
    %v1832 = vpop.f32.mrb[0].mxu0
    %v1833 = vadd.f32 0.0, %v1832
    %1834 = vdwg.mxu0
    %1835 = vmatprep.subr.mxu0 0.0
    %1836 = vmatpush1.msra.mxu0 %v509
    %1837 = vmatprep.subr.mxu0 0.0
    %1838 = vmatpush1.msra.mxu0 %v512
    %1839 = vmatprep.subr.mxu0 0.0
    %1840 = vmatpush1.msra.mxu0 %v515
    %1841 = vmatprep.subr.mxu0 0.0
    %1842 = vmatpush1.msra.mxu0 %v518
    %1843 = vmatprep.subr.mxu0 0.0
    %1844 = vmatpush1.msra.mxu0 %v521
    %1845 = vmatprep.subr.mxu0 0.0
    %1846 = vmatpush1.msra.mxu0 %v524
    %1847 = vmatprep.subr.mxu0 0.0
    %1848 = vmatpush1.msra.mxu0 %v527
    %1849 = vmatprep.subr.mxu0 0.0
    %1850 = vmatpush1.msra.mxu0 %v530
    %1851 = vmatprep.subr.mxu0 0.0
    %1852 = vmatpush1.msra.mxu0 %v533
    %1853 = vmatprep.subr.mxu0 0.0
    %1854 = vmatpush1.msra.mxu0 %v536
    %1855 = vmatprep.subr.mxu0 0.0
    %1856 = vmatpush1.msra.mxu0 %v539
    %1857 = vmatprep.subr.mxu0 0.0
    %1858 = vmatpush1.msra.mxu0 %v542
    %1859 = vmatprep.subr.mxu0 0.0
    %1860 = vmatpush1.msra.mxu0 %v545
    %1861 = vmatprep.subr.mxu0 0.0
    %1862 = vmatpush1.msra.mxu0 %v548
    %1863 = vmatprep.subr.mxu0 0.0
    %1864 = vmatpush1.msra.mxu0 %v551
    %1865 = vmatprep.subr.mxu0 0.0
    %1866 = vmatpush1.msra.mxu0 %v554
    %1867 = vmatprep.subr.mxu0 0.0
    %1868 = vmatpush1.msra.mxu0 0.0
    %1869 = vmatprep.subr.mxu0 0.0
    %1870 = vmatpush1.msra.mxu0 0.0
    %1871 = vmatprep.subr.mxu0 0.0
    %1872 = vmatpush1.msra.mxu0 0.0
    %1873 = vmatprep.subr.mxu0 0.0
    %1874 = vmatpush1.msra.mxu0 0.0
    %1875 = vmatprep.subr.mxu0 0.0
    %1876 = vmatpush1.msra.mxu0 0.0
    %1877 = vmatprep.subr.mxu0 0.0
    %1878 = vmatpush1.msra.mxu0 0.0
    %1879 = vmatprep.subr.mxu0 0.0
    %1880 = vmatpush1.msra.mxu0 0.0
    %1881 = vmatprep.subr.mxu0 0.0
    %1882 = vmatpush1.msra.mxu0 0.0
    %1883 = vmatprep.subr.mxu0 0.0
    %1884 = vmatpush1.msra.mxu0 0.0
    %1885 = vmatprep.subr.mxu0 0.0
    %1886 = vmatpush1.msra.mxu0 0.0
    %1887 = vmatprep.subr.mxu0 0.0
    %1888 = vmatpush1.msra.mxu0 0.0
    %1889 = vmatprep.subr.mxu0 0.0
    %1890 = vmatpush1.msra.mxu0 0.0
    %1891 = vmatprep.subr.mxu0 0.0
    %1892 = vmatpush1.msra.mxu0 0.0
    %1893 = vmatprep.subr.mxu0 0.0
    %1894 = vmatpush1.msra.mxu0 0.0
    %1895 = vmatprep.subr.mxu0 0.0
    %1896 = vmatpush1.msra.mxu0 0.0
    %1897 = vmatprep.subr.mxu0 0.0
    %1898 = vmatpush1.msra.mxu0 0.0
    %1899 = vmatprep.mubr.f32.mxu0 0.0
    %1900 = vmatmul.mubr.f32.gmra.mrb[0].mxu0 %v1755
    %v1901 = vpop.f32.mrb[0].mxu0
    %v1902 = vadd.f32 0.0, %v1901
    %v1903 = vpop.f32.mrb[0].mxu0
    %1904 = vdwg.mxu0
    %v1905 = vadd.f32 %v1761, %v1831
    %v1906 = vxor.u32 %v1905, 2147483648
    %v1907 = vmul.f32 %v1906, 1.442695
    %v1908 = vpow.pop %v1907
    %v1909 = vadd.f32 %v1908, 1.0
    %v1910 = vrcp.pop %v1909
    %v1911 = vmul.f32 1.0, %v1910
    %v1912 = vadd.f32 %v1762, %v1833
    %v1913 = vxor.u32 %v1912, 2147483648
    %v1914 = vmul.f32 %v1913, 1.442695
    %v1915 = vpow.pop %v1914
    %v1916 = vadd.f32 %v1915, 1.0
    %v1917 = vrcp.pop %v1916
    %v1918 = vmul.f32 1.0, %v1917
    %v1919 = vadd.f32 %v1902, %v721
    %v1920 = vmul.f32 %v1911, %v1919
    %v1921 = vadd.f32 %v1763, %v1920
    %v1922 = vtanh.pop %v1921
    %v1923 = vsub.f32 1.0, %v1918
    %v1924 = vmul.f32 %v1923, %v1922
    %v1925 = vmul.f32 %v1918, %v1755
    %v1926 = vadd.f32 %v1924, %v1925
    %s1927 = scalar_lea.vmem [#allocation3], 56
    %1928 = vst [vmem:[%s1927] sm:$0xff] %v1926
    %v1929 = vld [vmem:[#allocation3] sm:$0xff]
    %v1930 = vld [vmem:[#allocation3 + $0x8] sm:$0xff]
    %v1931 = vld [vmem:[#allocation3 + $0x10] sm:$0xff]
    %v1932 = vld [vmem:[#allocation3 + $0x18] sm:$0xff]
    %v1933 = vld [vmem:[#allocation3 + $0x20] sm:$0xff]
    %v1934 = vld [vmem:[#allocation3 + $0x28] sm:$0xff]
    %v1935 = vld [vmem:[#allocation3 + $0x30] sm:$0xff]
    %v1936 = vld [vmem:[#allocation3 + $0x38] sm:$0xff]
    %v1937 = vld [vmem:[#allocation10] sm:$0xff]
    %v1938 = vld [vmem:[#allocation10 + $0x8] sm:$0xff]
    %v1939 = vld [vmem:[#allocation10 + $0x10] sm:$0xff]
    %v1940 = vld [vmem:[#allocation10 + $0x18] sm:$0xff]
    %v1941 = vld [vmem:[#allocation10 + $0x20] sm:$0xff]
    %v1942 = vld [vmem:[#allocation10 + $0x28] sm:$0xff]
    %v1943 = vld [vmem:[#allocation10 + $0x30] sm:$0xff]
    %v1944 = vld [vmem:[#allocation10 + $0x38] sm:$0xff]
    %v1945 = vld [vmem:[#allocation10 + $0x40] sm:$0xff]
    %v1946 = vld [vmem:[#allocation10 + $0x48] sm:$0xff]
    %v1947 = vld [vmem:[#allocation10 + $0x50] sm:$0xff]
    %v1948 = vld [vmem:[#allocation10 + $0x58] sm:$0xff]
    %v1949 = vld [vmem:[#allocation10 + $0x60] sm:$0xff]
    %v1950 = vld [vmem:[#allocation10 + $0x68] sm:$0xff]
    %v1951 = vld [vmem:[#allocation10 + $0x70] sm:$0xff]
    %v1952 = vld [vmem:[#allocation10 + $0x78] sm:$0xff]
    %v1953 = vld [vmem:[#allocation10 + $0x80] sm:$0xff]
    %v1954 = vld [vmem:[#allocation10 + $0x88] sm:$0xff]
    %v1955 = vld [vmem:[#allocation10 + $0x90] sm:$0xff]
    %v1956 = vld [vmem:[#allocation10 + $0x98] sm:$0xff]
    %v1957 = vld [vmem:[#allocation10 + $0xa0] sm:$0xff]
    %v1958 = vld [vmem:[#allocation10 + $0xa8] sm:$0xff]
    %v1959 = vld [vmem:[#allocation10 + $0xb0] sm:$0xff]
    %v1960 = vld [vmem:[#allocation10 + $0xb8] sm:$0xff]
    %v1961 = vld [vmem:[#allocation10 + $0xc0] sm:$0xff]
    %v1962 = vld [vmem:[#allocation10 + $0xc8] sm:$0xff]
    %v1963 = vld [vmem:[#allocation10 + $0xd0] sm:$0xff]
    %v1964 = vld [vmem:[#allocation10 + $0xd8] sm:$0xff]
    %v1965 = vld [vmem:[#allocation10 + $0xe0] sm:$0xff]
    %v1966 = vld [vmem:[#allocation10 + $0xe8] sm:$0xff]
    %v1967 = vld [vmem:[#allocation10 + $0xf0] sm:$0xff]
    %v1968 = vld [vmem:[#allocation10 + $0xf8] sm:$0xff]
    %v1969 = vld [vmem:[#allocation10 + $0x100] sm:$0xff]
    %v1970 = vld [vmem:[#allocation10 + $0x108] sm:$0xff]
    %v1971 = vld [vmem:[#allocation10 + $0x110] sm:$0xff]
    %v1972 = vld [vmem:[#allocation10 + $0x118] sm:$0xff]
    %v1973 = vld [vmem:[#allocation10 + $0x120] sm:$0xff]
    %v1974 = vld [vmem:[#allocation10 + $0x128] sm:$0xff]
    %v1975 = vld [vmem:[#allocation10 + $0x130] sm:$0xff]
    %v1976 = vld [vmem:[#allocation10 + $0x138] sm:$0xff]
    %v1977 = vld [vmem:[#allocation10 + $0x140] sm:$0xff]
    %v1978 = vld [vmem:[#allocation10 + $0x148] sm:$0xff]
    %v1979 = vld [vmem:[#allocation10 + $0x150] sm:$0xff]
    %v1980 = vld [vmem:[#allocation10 + $0x158] sm:$0xff]
    %v1981 = vld [vmem:[#allocation10 + $0x160] sm:$0xff]
    %v1982 = vld [vmem:[#allocation10 + $0x168] sm:$0xff]
    %v1983 = vld [vmem:[#allocation10 + $0x170] sm:$0xff]
    %v1984 = vld [vmem:[#allocation10 + $0x178] sm:$0xff]
    %v1985 = vld [vmem:[%s7] sm:$0x7]
    %v1987 = vlaneseq
    %v1988 = vshrl.u32 %v1987, 7
    %v1989 = vsub.s32 0, %v1988
    %v1990 = vrot.slane %v1985, %v1989
    %v1991 = vlaneseq
    %v1992 = vshrl.u32 %v1991, 7
    %v1993 = vsub.s32 1, %v1992
    %v1994 = vrot.slane %v1985, %v1993
    %v1995 = vlaneseq
    %v1996 = vshrl.u32 %v1995, 7
    %v1997 = vsub.s32 2, %v1996
    %v1998 = vrot.slane %v1985, %v1997
    %2002 = vmatprep.subr.mxu0 %v1938
    %2003 = vmatpush1.msra.mxu0 %v1937
    %2004 = vmatprep.subr.mxu0 %v1941
    %2005 = vmatpush1.msra.mxu0 %v1940
    %2006 = vmatprep.subr.mxu0 %v1944
    %2007 = vmatpush1.msra.mxu0 %v1943
    %2008 = vmatprep.subr.mxu0 %v1947
    %2009 = vmatpush1.msra.mxu0 %v1946
    %2010 = vmatprep.subr.mxu0 %v1950
    %2011 = vmatpush1.msra.mxu0 %v1949
    %2012 = vmatprep.subr.mxu0 %v1953
    %2013 = vmatpush1.msra.mxu0 %v1952
    %2014 = vmatprep.subr.mxu0 %v1956
    %2015 = vmatpush1.msra.mxu0 %v1955
    %2016 = vmatprep.subr.mxu0 %v1959
    %2017 = vmatpush1.msra.mxu0 %v1958
    %2018 = vmatprep.subr.mxu0 %v1962
    %2019 = vmatpush1.msra.mxu0 %v1961
    %2020 = vmatprep.subr.mxu0 %v1965
    %2021 = vmatpush1.msra.mxu0 %v1964
    %2022 = vmatprep.subr.mxu0 %v1968
    %2023 = vmatpush1.msra.mxu0 %v1967
    %2024 = vmatprep.subr.mxu0 %v1971
    %2025 = vmatpush1.msra.mxu0 %v1970
    %2026 = vmatprep.subr.mxu0 %v1974
    %2027 = vmatpush1.msra.mxu0 %v1973
    %2028 = vmatprep.subr.mxu0 %v1977
    %2029 = vmatpush1.msra.mxu0 %v1976
    %2030 = vmatprep.subr.mxu0 %v1980
    %2031 = vmatpush1.msra.mxu0 %v1979
    %2032 = vmatprep.subr.mxu0 %v1983
    %2033 = vmatpush1.msra.mxu0 %v1982
    %2034 = vmatprep.subr.mxu0 0.0
    %2035 = vmatpush1.msra.mxu0 0.0
    %2036 = vmatprep.subr.mxu0 0.0
    %2037 = vmatpush1.msra.mxu0 0.0
    %2038 = vmatprep.subr.mxu0 0.0
    %2039 = vmatpush1.msra.mxu0 0.0
    %2040 = vmatprep.subr.mxu0 0.0
    %2041 = vmatpush1.msra.mxu0 0.0
    %2042 = vmatprep.subr.mxu0 0.0
    %2043 = vmatpush1.msra.mxu0 0.0
    %2044 = vmatprep.subr.mxu0 0.0
    %2045 = vmatpush1.msra.mxu0 0.0
    %2046 = vmatprep.subr.mxu0 0.0
    %2047 = vmatpush1.msra.mxu0 0.0
    %2048 = vmatprep.subr.mxu0 0.0
    %2049 = vmatpush1.msra.mxu0 0.0
    %2050 = vmatprep.subr.mxu0 0.0
    %2051 = vmatpush1.msra.mxu0 0.0
    %2052 = vmatprep.subr.mxu0 0.0
    %2053 = vmatpush1.msra.mxu0 0.0
    %2054 = vmatprep.subr.mxu0 0.0
    %2055 = vmatpush1.msra.mxu0 0.0
    %2056 = vmatprep.subr.mxu0 0.0
    %2057 = vmatpush1.msra.mxu0 0.0
    %2058 = vmatprep.subr.mxu0 0.0
    %2059 = vmatpush1.msra.mxu0 0.0
    %2060 = vmatprep.subr.mxu0 0.0
    %2061 = vmatpush1.msra.mxu0 0.0
    %2062 = vmatprep.subr.mxu0 0.0
    %2063 = vmatpush1.msra.mxu0 0.0
    %2064 = vmatprep.subr.mxu0 0.0
    %2065 = vmatpush1.msra.mxu0 0.0
    %2066 = vmatprep.mubr.f32.mxu0 0.0
    %2067 = vmatmul.mubr.f32.gmra.mrb[0].mxu0 %v1929
    %v2068 = vpop.f32.mrb[0].mxu0
    %v2069 = vadd.f32 %v1990, %v2068
    %v2070 = vpop.f32.mrb[0].mxu0
    %v2071 = vadd.f32 %v1994, %v2070
    %2072 = vmatprep.mubr.f32.mxu0 0.0
    %2073 = vmatmul.mubr.f32.gmra.mrb[0].mxu0 %v1930
    %v2074 = vpop.f32.mrb[0].mxu0
    %v2075 = vadd.f32 %v1990, %v2074
    %v2076 = vpop.f32.mrb[0].mxu0
    %v2077 = vadd.f32 %v1994, %v2076
    %2078 = vmatprep.mubr.f32.mxu0 0.0
    %2079 = vmatmul.mubr.f32.gmra.mrb[0].mxu0 %v1931
    %v2080 = vpop.f32.mrb[0].mxu0
    %v2081 = vadd.f32 %v1990, %v2080
    %v2082 = vpop.f32.mrb[0].mxu0
    %v2083 = vadd.f32 %v1994, %v2082
    %2084 = vmatprep.mubr.f32.mxu0 0.0
    %2085 = vmatmul.mubr.f32.gmra.mrb[0].mxu0 %v1932
    %v2086 = vpop.f32.mrb[0].mxu0
    %v2087 = vadd.f32 %v1990, %v2086
    %v2088 = vpop.f32.mrb[0].mxu0
    %v2089 = vadd.f32 %v1994, %v2088
    %2090 = vmatprep.mubr.f32.mxu0 0.0
    %2091 = vmatmul.mubr.f32.gmra.mrb[0].mxu0 %v1933
    %v2092 = vpop.f32.mrb[0].mxu0
    %v2093 = vadd.f32 %v1990, %v2092
    %v2094 = vpop.f32.mrb[0].mxu0
    %v2095 = vadd.f32 %v1994, %v2094
    %2096 = vmatprep.mubr.f32.mxu0 0.0
    %2097 = vmatmul.mubr.f32.gmra.mrb[0].mxu0 %v1934
    %v2098 = vpop.f32.mrb[0].mxu0
    %v2099 = vadd.f32 %v1990, %v2098
    %v2100 = vpop.f32.mrb[0].mxu0
    %v2101 = vadd.f32 %v1994, %v2100
    %2102 = vmatprep.mubr.f32.mxu0 0.0
    %2103 = vmatmul.mubr.f32.gmra.mrb[0].mxu0 %v1935
    %v2104 = vpop.f32.mrb[0].mxu0
    %v2105 = vadd.f32 %v1990, %v2104
    %v2106 = vpop.f32.mrb[0].mxu0
    %v2107 = vadd.f32 %v1994, %v2106
    %2108 = vmatprep.mubr.f32.mxu0 0.0
    %2109 = vmatmul.mubr.f32.gmra.mrb[0].mxu0 %v1936
    %v2110 = vpop.f32.mrb[0].mxu0
    %v2111 = vadd.f32 %v1990, %v2110
    %v2112 = vpop.f32.mrb[0].mxu0
    %v2113 = vadd.f32 %v1994, %v2112
    %2114 = vdwg.mxu0
    %2115 = vmatprep.subr.mxu0 0.0
    %2116 = vmatpush1.msra.mxu0 %v1939
    %2117 = vmatprep.subr.mxu0 0.0
    %2118 = vmatpush1.msra.mxu0 %v1942
    %2119 = vmatprep.subr.mxu0 0.0
    %2120 = vmatpush1.msra.mxu0 %v1945
    %2121 = vmatprep.subr.mxu0 0.0
    %2122 = vmatpush1.msra.mxu0 %v1948
    %2123 = vmatprep.subr.mxu0 0.0
    %2124 = vmatpush1.msra.mxu0 %v1951
    %2125 = vmatprep.subr.mxu0 0.0
    %2126 = vmatpush1.msra.mxu0 %v1954
    %2127 = vmatprep.subr.mxu0 0.0
    %2128 = vmatpush1.msra.mxu0 %v1957
    %2129 = vmatprep.subr.mxu0 0.0
    %2130 = vmatpush1.msra.mxu0 %v1960
    %2131 = vmatprep.subr.mxu0 0.0
    %2132 = vmatpush1.msra.mxu0 %v1963
    %2133 = vmatprep.subr.mxu0 0.0
    %2134 = vmatpush1.msra.mxu0 %v1966
    %2135 = vmatprep.subr.mxu0 0.0
    %2136 = vmatpush1.msra.mxu0 %v1969
    %2137 = vmatprep.subr.mxu0 0.0
    %2138 = vmatpush1.msra.mxu0 %v1972
    %2139 = vmatprep.subr.mxu0 0.0
    %2140 = vmatpush1.msra.mxu0 %v1975
    %2141 = vmatprep.subr.mxu0 0.0
    %2142 = vmatpush1.msra.mxu0 %v1978
    %2143 = vmatprep.subr.mxu0 0.0
    %2144 = vmatpush1.msra.mxu0 %v1981
    %2145 = vmatprep.subr.mxu0 0.0
    %2146 = vmatpush1.msra.mxu0 %v1984
    %2147 = vmatprep.subr.mxu0 0.0
    %2148 = vmatpush1.msra.mxu0 0.0
    %2149 = vmatprep.subr.mxu0 0.0
    %2150 = vmatpush1.msra.mxu0 0.0
    %2151 = vmatprep.subr.mxu0 0.0
    %2152 = vmatpush1.msra.mxu0 0.0
    %2153 = vmatprep.subr.mxu0 0.0
    %2154 = vmatpush1.msra.mxu0 0.0
    %2155 = vmatprep.subr.mxu0 0.0
    %2156 = vmatpush1.msra.mxu0 0.0
    %2157 = vmatprep.subr.mxu0 0.0
    %2158 = vmatpush1.msra.mxu0 0.0
    %2159 = vmatprep.subr.mxu0 0.0
    %2160 = vmatpush1.msra.mxu0 0.0
    %2161 = vmatprep.subr.mxu0 0.0
    %2162 = vmatpush1.msra.mxu0 0.0
    %2163 = vmatprep.subr.mxu0 0.0
    %2164 = vmatpush1.msra.mxu0 0.0
    %2165 = vmatprep.subr.mxu0 0.0
    %2166 = vmatpush1.msra.mxu0 0.0
    %2167 = vmatprep.subr.mxu0 0.0
    %2168 = vmatpush1.msra.mxu0 0.0
    %2169 = vmatprep.subr.mxu0 0.0
    %2170 = vmatpush1.msra.mxu0 0.0
    %2171 = vmatprep.subr.mxu0 0.0
    %2172 = vmatpush1.msra.mxu0 0.0
    %2173 = vmatprep.subr.mxu0 0.0
    %2174 = vmatpush1.msra.mxu0 0.0
    %2175 = vmatprep.subr.mxu0 0.0
    %2176 = vmatpush1.msra.mxu0 0.0
    %2177 = vmatprep.subr.mxu0 0.0
    %2178 = vmatpush1.msra.mxu0 0.0
    %2179 = vmatprep.mubr.f32.mxu0 0.0
    %2180 = vmatmul.mubr.f32.gmra.mrb[0].mxu0 %v1929
    %v2181 = vpop.f32.mrb[0].mxu0
    %v2182 = vadd.f32 %v1998, %v2181
    %v2183 = vpop.f32.mrb[0].mxu0
    %2184 = vmatprep.mubr.f32.mxu0 0.0
    %2185 = vmatmul.mubr.f32.gmra.mrb[0].mxu0 %v1930
    %v2186 = vpop.f32.mrb[0].mxu0
    %v2187 = vadd.f32 %v1998, %v2186
    %v2188 = vpop.f32.mrb[0].mxu0
    %2189 = vmatprep.mubr.f32.mxu0 0.0
    %2190 = vmatmul.mubr.f32.gmra.mrb[0].mxu0 %v1931
    %v2191 = vpop.f32.mrb[0].mxu0
    %v2192 = vadd.f32 %v1998, %v2191
    %v2193 = vpop.f32.mrb[0].mxu0
    %2194 = vmatprep.mubr.f32.mxu0 0.0
    %2195 = vmatmul.mubr.f32.gmra.mrb[0].mxu0 %v1932
    %v2196 = vpop.f32.mrb[0].mxu0
    %v2197 = vadd.f32 %v1998, %v2196
    %v2198 = vpop.f32.mrb[0].mxu0
    %2199 = vmatprep.mubr.f32.mxu0 0.0
    %2200 = vmatmul.mubr.f32.gmra.mrb[0].mxu0 %v1933
    %v2201 = vpop.f32.mrb[0].mxu0
    %v2202 = vadd.f32 %v1998, %v2201
    %v2203 = vpop.f32.mrb[0].mxu0
    %2204 = vmatprep.mubr.f32.mxu0 0.0
    %2205 = vmatmul.mubr.f32.gmra.mrb[0].mxu0 %v1934
    %v2206 = vpop.f32.mrb[0].mxu0
    %v2207 = vadd.f32 %v1998, %v2206
    %v2208 = vpop.f32.mrb[0].mxu0
    %2209 = vmatprep.mubr.f32.mxu0 0.0
    %2210 = vmatmul.mubr.f32.gmra.mrb[0].mxu0 %v1935
    %v2211 = vpop.f32.mrb[0].mxu0
    %v2212 = vadd.f32 %v1998, %v2211
    %v2213 = vpop.f32.mrb[0].mxu0
    %2214 = vmatprep.mubr.f32.mxu0 0.0
    %2215 = vmatmul.mubr.f32.gmra.mrb[0].mxu0 %v1936
    %v2216 = vpop.f32.mrb[0].mxu0
    %v2217 = vadd.f32 %v1998, %v2216
    %v2218 = vpop.f32.mrb[0].mxu0
    %2219 = vdwg.mxu0
    %2220 = vst [vmem:[#allocation2] sm:$0xff] %v2069
    %2221 = vst [vmem:[#allocation2 + $0x8] sm:$0xff] %v2071
    %2222 = vst [vmem:[#allocation2 + $0x10] sm:$0xff] %v2182
    %2223 = vst [vmem:[#allocation2 + $0x18] sm:$0xff] %v2075
    %2224 = vst [vmem:[#allocation2 + $0x20] sm:$0xff] %v2077
    %2225 = vst [vmem:[#allocation2 + $0x28] sm:$0xff] %v2187
    %2226 = vst [vmem:[#allocation2 + $0x30] sm:$0xff] %v2081
    %2227 = vst [vmem:[#allocation2 + $0x38] sm:$0xff] %v2083
    %2228 = vst [vmem:[#allocation2 + $0x40] sm:$0xff] %v2192
    %2229 = vst [vmem:[#allocation2 + $0x48] sm:$0xff] %v2087
    %2230 = vst [vmem:[#allocation2 + $0x50] sm:$0xff] %v2089
    %2231 = vst [vmem:[#allocation2 + $0x58] sm:$0xff] %v2197
    %2232 = vst [vmem:[#allocation2 + $0x60] sm:$0xff] %v2093
    %2233 = vst [vmem:[#allocation2 + $0x68] sm:$0xff] %v2095
    %2234 = vst [vmem:[#allocation2 + $0x70] sm:$0xff] %v2202
    %2235 = vst [vmem:[#allocation2 + $0x78] sm:$0xff] %v2099
    %2236 = vst [vmem:[#allocation2 + $0x80] sm:$0xff] %v2101
    %2237 = vst [vmem:[#allocation2 + $0x88] sm:$0xff] %v2207
    %2238 = vst [vmem:[#allocation2 + $0x90] sm:$0xff] %v2105
    %2239 = vst [vmem:[#allocation2 + $0x98] sm:$0xff] %v2107
    %2240 = vst [vmem:[#allocation2 + $0xa0] sm:$0xff] %v2212
    %2241 = vst [vmem:[#allocation2 + $0xa8] sm:$0xff] %v2111
    %2242 = vst [vmem:[#allocation2 + $0xb0] sm:$0xff] %v2113
    %2243 = vst [vmem:[#allocation2 + $0xb8] sm:$0xff] %v2217
    %v2244 = vld [vmem:[#allocation12] sm:$0xff]
    %v2245 = vld [vmem:[#allocation12 + $0x8] sm:$0xff]
    %v2246 = vld [vmem:[#allocation12 + $0x10] sm:$0xff]
    %v2247 = vld [vmem:[#allocation12 + $0x18] sm:$0xff]
    %v2248 = vld [vmem:[#allocation12 + $0x20] sm:$0xff]
    %v2249 = vld [vmem:[#allocation12 + $0x28] sm:$0xff]
    %v2250 = vld [vmem:[#allocation12 + $0x30] sm:$0xff]
    %v2251 = vld [vmem:[#allocation12 + $0x38] sm:$0xff]
    %v2252 = vld [vmem:[#allocation12 + $0x40] sm:$0xff]
    %v2253 = vld [vmem:[#allocation12 + $0x48] sm:$0xff]
    %v2254 = vld [vmem:[#allocation12 + $0x50] sm:$0xff]
    %v2255 = vld [vmem:[#allocation12 + $0x58] sm:$0xff]
    %v2256 = vld [vmem:[#allocation12 + $0x60] sm:$0xff]
    %v2257 = vld [vmem:[#allocation12 + $0x68] sm:$0xff]
    %v2258 = vld [vmem:[#allocation12 + $0x70] sm:$0xff]
    %v2259 = vld [vmem:[#allocation12 + $0x78] sm:$0xff]
    %v2260 = vld [vmem:[#allocation12 + $0x80] sm:$0xff]
    %v2261 = vld [vmem:[#allocation12 + $0x88] sm:$0xff]
    %v2262 = vld [vmem:[#allocation12 + $0x90] sm:$0xff]
    %v2263 = vld [vmem:[#allocation12 + $0x98] sm:$0xff]
    %v2264 = vld [vmem:[#allocation12 + $0xa0] sm:$0xff]
    %v2265 = vld [vmem:[#allocation12 + $0xa8] sm:$0xff]
    %v2266 = vld [vmem:[#allocation12 + $0xb0] sm:$0xff]
    %v2267 = vld [vmem:[#allocation12 + $0xb8] sm:$0xff]
    %v2268 = vld [vmem:[#allocation12 + $0xc0] sm:$0xff]
    %v2269 = vld [vmem:[#allocation12 + $0xc8] sm:$0xff]
    %v2270 = vld [vmem:[#allocation12 + $0xd0] sm:$0xff]
    %v2271 = vld [vmem:[#allocation12 + $0xd8] sm:$0xff]
    %v2272 = vld [vmem:[#allocation12 + $0xe0] sm:$0xff]
    %v2273 = vld [vmem:[#allocation12 + $0xe8] sm:$0xff]
    %v2274 = vld [vmem:[#allocation12 + $0xf0] sm:$0xff]
    %v2275 = vld [vmem:[#allocation12 + $0xf8] sm:$0xff]
    %v2276 = vld [vmem:[#allocation12 + $0x100] sm:$0xff]
    %v2277 = vld [vmem:[#allocation12 + $0x108] sm:$0xff]
    %v2278 = vld [vmem:[#allocation12 + $0x110] sm:$0xff]
    %v2279 = vld [vmem:[#allocation12 + $0x118] sm:$0xff]
    %v2280 = vld [vmem:[#allocation12 + $0x120] sm:$0xff]
    %v2281 = vld [vmem:[#allocation12 + $0x128] sm:$0xff]
    %v2282 = vld [vmem:[#allocation12 + $0x130] sm:$0xff]
    %v2283 = vld [vmem:[#allocation12 + $0x138] sm:$0xff]
    %v2284 = vld [vmem:[#allocation12 + $0x140] sm:$0xff]
    %v2285 = vld [vmem:[#allocation12 + $0x148] sm:$0xff]
    %v2286 = vld [vmem:[#allocation12 + $0x150] sm:$0xff]
    %v2287 = vld [vmem:[#allocation12 + $0x158] sm:$0xff]
    %v2288 = vld [vmem:[#allocation12 + $0x160] sm:$0xff]
    %v2289 = vld [vmem:[#allocation12 + $0x168] sm:$0xff]
    %v2290 = vld [vmem:[#allocation12 + $0x170] sm:$0xff]
    %v2291 = vld [vmem:[#allocation12 + $0x178] sm:$0xff]
    %v2292 = vld [vmem:[%s8] sm:$0x1]
    %v2293 = vld [vmem:[%s558] sm:$0xff]
    %v2294 = vld [vmem:[%s558 + $0x8] sm:$0xff]
    %v2295 = vld [vmem:[%s558 + $0x10] sm:$0xff]
    %2296 = vmatprep.subr.mxu0 %v2245
    %2297 = vmatpush1.msra.mxu0 %v2244
    %2298 = vmatprep.subr.mxu0 %v2248
    %2299 = vmatpush1.msra.mxu0 %v2247
    %2300 = vmatprep.subr.mxu0 %v2251
    %2301 = vmatpush1.msra.mxu0 %v2250
    %2302 = vmatprep.subr.mxu0 %v2254
    %2303 = vmatpush1.msra.mxu0 %v2253
    %2304 = vmatprep.subr.mxu0 %v2257
    %2305 = vmatpush1.msra.mxu0 %v2256
    %2306 = vmatprep.subr.mxu0 %v2260
    %2307 = vmatpush1.msra.mxu0 %v2259
    %2308 = vmatprep.subr.mxu0 %v2263
    %2309 = vmatpush1.msra.mxu0 %v2262
    %2310 = vmatprep.subr.mxu0 %v2266
    %2311 = vmatpush1.msra.mxu0 %v2265
    %2312 = vmatprep.subr.mxu0 %v2269
    %2313 = vmatpush1.msra.mxu0 %v2268
    %2314 = vmatprep.subr.mxu0 %v2272
    %2315 = vmatpush1.msra.mxu0 %v2271
    %2316 = vmatprep.subr.mxu0 %v2275
    %2317 = vmatpush1.msra.mxu0 %v2274
    %2318 = vmatprep.subr.mxu0 %v2278
    %2319 = vmatpush1.msra.mxu0 %v2277
    %2320 = vmatprep.subr.mxu0 %v2281
    %2321 = vmatpush1.msra.mxu0 %v2280
    %2322 = vmatprep.subr.mxu0 %v2284
    %2323 = vmatpush1.msra.mxu0 %v2283
    %2324 = vmatprep.subr.mxu0 %v2287
    %2325 = vmatpush1.msra.mxu0 %v2286
    %2326 = vmatprep.subr.mxu0 %v2290
    %2327 = vmatpush1.msra.mxu0 %v2289
    %2328 = vmatprep.subr.mxu0 0.0
    %2329 = vmatpush1.msra.mxu0 0.0
    %2330 = vmatprep.subr.mxu0 0.0
    %2331 = vmatpush1.msra.mxu0 0.0
    %2332 = vmatprep.subr.mxu0 0.0
    %2333 = vmatpush1.msra.mxu0 0.0
    %2334 = vmatprep.subr.mxu0 0.0
    %2335 = vmatpush1.msra.mxu0 0.0
    %2336 = vmatprep.subr.mxu0 0.0
    %2337 = vmatpush1.msra.mxu0 0.0
    %2338 = vmatprep.subr.mxu0 0.0
    %2339 = vmatpush1.msra.mxu0 0.0
    %2340 = vmatprep.subr.mxu0 0.0
    %2341 = vmatpush1.msra.mxu0 0.0
    %2342 = vmatprep.subr.mxu0 0.0
    %2343 = vmatpush1.msra.mxu0 0.0
    %2344 = vmatprep.subr.mxu0 0.0
    %2345 = vmatpush1.msra.mxu0 0.0
    %2346 = vmatprep.subr.mxu0 0.0
    %2347 = vmatpush1.msra.mxu0 0.0
    %2348 = vmatprep.subr.mxu0 0.0
    %2349 = vmatpush1.msra.mxu0 0.0
    %2350 = vmatprep.subr.mxu0 0.0
    %2351 = vmatpush1.msra.mxu0 0.0
    %2352 = vmatprep.subr.mxu0 0.0
    %2353 = vmatpush1.msra.mxu0 0.0
    %2354 = vmatprep.subr.mxu0 0.0
    %2355 = vmatpush1.msra.mxu0 0.0
    %2356 = vmatprep.subr.mxu0 0.0
    %2357 = vmatpush1.msra.mxu0 0.0
    %2358 = vmatprep.subr.mxu0 0.0
    %2359 = vmatpush1.msra.mxu0 0.0
    %2360 = vmatprep.mubr.f32.mxu0 0.0
    %2361 = vmatmul.mubr.f32.gmra.mrb[0].mxu0 0.0
    %v2362 = vpop.f32.mrb[0].mxu0
    %v2363 = vadd.f32 0.0, %v2362
    %v2364 = vpop.f32.mrb[0].mxu0
    %v2365 = vadd.f32 0.0, %v2364
    %2366 = vdwg.mxu0
    %2367 = vmatprep.subr.mxu0 0.0
    %2368 = vmatpush1.msra.mxu0 %v2246
    %2369 = vmatprep.subr.mxu0 0.0
    %2370 = vmatpush1.msra.mxu0 %v2249
    %2371 = vmatprep.subr.mxu0 0.0
    %2372 = vmatpush1.msra.mxu0 %v2252
    %2373 = vmatprep.subr.mxu0 0.0
    %2374 = vmatpush1.msra.mxu0 %v2255
    %2375 = vmatprep.subr.mxu0 0.0
    %2376 = vmatpush1.msra.mxu0 %v2258
    %2377 = vmatprep.subr.mxu0 0.0
    %2378 = vmatpush1.msra.mxu0 %v2261
    %2379 = vmatprep.subr.mxu0 0.0
    %2380 = vmatpush1.msra.mxu0 %v2264
    %2381 = vmatprep.subr.mxu0 0.0
    %2382 = vmatpush1.msra.mxu0 %v2267
    %2383 = vmatprep.subr.mxu0 0.0
    %2384 = vmatpush1.msra.mxu0 %v2270
    %2385 = vmatprep.subr.mxu0 0.0
    %2386 = vmatpush1.msra.mxu0 %v2273
    %2387 = vmatprep.subr.mxu0 0.0
    %2388 = vmatpush1.msra.mxu0 %v2276
    %2389 = vmatprep.subr.mxu0 0.0
    %2390 = vmatpush1.msra.mxu0 %v2279
    %2391 = vmatprep.subr.mxu0 0.0
    %2392 = vmatpush1.msra.mxu0 %v2282
    %2393 = vmatprep.subr.mxu0 0.0
    %2394 = vmatpush1.msra.mxu0 %v2285
    %2395 = vmatprep.subr.mxu0 0.0
    %2396 = vmatpush1.msra.mxu0 %v2288
    %2397 = vmatprep.subr.mxu0 0.0
    %2398 = vmatpush1.msra.mxu0 %v2291
    %2399 = vmatprep.subr.mxu0 0.0
    %2400 = vmatpush1.msra.mxu0 0.0
    %2401 = vmatprep.subr.mxu0 0.0
    %2402 = vmatpush1.msra.mxu0 0.0
    %2403 = vmatprep.subr.mxu0 0.0
    %2404 = vmatpush1.msra.mxu0 0.0
    %2405 = vmatprep.subr.mxu0 0.0
    %2406 = vmatpush1.msra.mxu0 0.0
    %2407 = vmatprep.subr.mxu0 0.0
    %2408 = vmatpush1.msra.mxu0 0.0
    %2409 = vmatprep.subr.mxu0 0.0
    %2410 = vmatpush1.msra.mxu0 0.0
    %2411 = vmatprep.subr.mxu0 0.0
    %2412 = vmatpush1.msra.mxu0 0.0
    %2413 = vmatprep.subr.mxu0 0.0
    %2414 = vmatpush1.msra.mxu0 0.0
    %2415 = vmatprep.subr.mxu0 0.0
    %2416 = vmatpush1.msra.mxu0 0.0
    %2417 = vmatprep.subr.mxu0 0.0
    %2418 = vmatpush1.msra.mxu0 0.0
    %2419 = vmatprep.subr.mxu0 0.0
    %2420 = vmatpush1.msra.mxu0 0.0
    %2421 = vmatprep.subr.mxu0 0.0
    %2422 = vmatpush1.msra.mxu0 0.0
    %2423 = vmatprep.subr.mxu0 0.0
    %2424 = vmatpush1.msra.mxu0 0.0
    %2425 = vmatprep.subr.mxu0 0.0
    %2426 = vmatpush1.msra.mxu0 0.0
    %2427 = vmatprep.subr.mxu0 0.0
    %2428 = vmatpush1.msra.mxu0 0.0
    %2429 = vmatprep.subr.mxu0 0.0
    %2430 = vmatpush1.msra.mxu0 0.0
    %2431 = vmatprep.mubr.f32.mxu0 0.0
    %2432 = vmatmul.mubr.f32.gmra.mrb[0].mxu0 0.0
    %v2433 = vpop.f32.mrb[0].mxu0
    %v2434 = vadd.f32 0.0, %v2433
    %v2435 = vpop.f32.mrb[0].mxu0
    %2436 = vdwg.mxu0
    %v2437 = vadd.f32 %v2293, %v2363
    %v2438 = vxor.u32 %v2437, 2147483648
    %v2439 = vmul.f32 %v2438, 1.442695
    %v2440 = vpow.pop %v2439
    %v2441 = vadd.f32 %v2440, 1.0
    %v2442 = vrcp.pop %v2441
    %v2443 = vmul.f32 1.0, %v2442
    %v2444 = vadd.f32 %v2294, %v2365
    %v2445 = vxor.u32 %v2444, 2147483648
    %v2446 = vmul.f32 %v2445, 1.442695
    %v2447 = vpow.pop %v2446
    %v2448 = vadd.f32 %v2447, 1.0
    %v2449 = vrcp.pop %v2448
    %v2450 = vmul.f32 1.0, %v2449
    %v2452 = vlaneseq
    %v2453 = vshrl.u32 %v2452, 7
    %v2454 = vsub.s32 0, %v2453
    %v2455 = vrot.slane %v2292, %v2454
    %v2457 = vadd.f32 %v2434, %v2455
    %v2458 = vmul.f32 %v2443, %v2457
    %v2459 = vadd.f32 %v2295, %v2458
    %v2460 = vtanh.pop %v2459
    %v2461 = vsub.f32 1.0, %v2450
    %v2462 = vmul.f32 %v2461, %v2460
    %v2463 = vmul.f32 %v2450, 0.0
    %v2464 = vadd.f32 %v2462, %v2463
    %2465 = vst [vmem:[#allocation3] sm:$0xff] %v2464
    %v2466 = vld [vmem:[%s734] sm:$0xff]
    %v2467 = vld [vmem:[%s734 + $0x8] sm:$0xff]
    %v2468 = vld [vmem:[%s734 + $0x10] sm:$0xff]
    %2469 = vmatprep.subr.mxu0 %v2245
    %2470 = vmatpush1.msra.mxu0 %v2244
    %2471 = vmatprep.subr.mxu0 %v2248
    %2472 = vmatpush1.msra.mxu0 %v2247
    %2473 = vmatprep.subr.mxu0 %v2251
    %2474 = vmatpush1.msra.mxu0 %v2250
    %2475 = vmatprep.subr.mxu0 %v2254
    %2476 = vmatpush1.msra.mxu0 %v2253
    %2477 = vmatprep.subr.mxu0 %v2257
    %2478 = vmatpush1.msra.mxu0 %v2256
    %2479 = vmatprep.subr.mxu0 %v2260
    %2480 = vmatpush1.msra.mxu0 %v2259
    %2481 = vmatprep.subr.mxu0 %v2263
    %2482 = vmatpush1.msra.mxu0 %v2262
    %2483 = vmatprep.subr.mxu0 %v2266
    %2484 = vmatpush1.msra.mxu0 %v2265
    %2485 = vmatprep.subr.mxu0 %v2269
    %2486 = vmatpush1.msra.mxu0 %v2268
    %2487 = vmatprep.subr.mxu0 %v2272
    %2488 = vmatpush1.msra.mxu0 %v2271
    %2489 = vmatprep.subr.mxu0 %v2275
    %2490 = vmatpush1.msra.mxu0 %v2274
    %2491 = vmatprep.subr.mxu0 %v2278
    %2492 = vmatpush1.msra.mxu0 %v2277
    %2493 = vmatprep.subr.mxu0 %v2281
    %2494 = vmatpush1.msra.mxu0 %v2280
    %2495 = vmatprep.subr.mxu0 %v2284
    %2496 = vmatpush1.msra.mxu0 %v2283
    %2497 = vmatprep.subr.mxu0 %v2287
    %2498 = vmatpush1.msra.mxu0 %v2286
    %2499 = vmatprep.subr.mxu0 %v2290
    %2500 = vmatpush1.msra.mxu0 %v2289
    %2501 = vmatprep.subr.mxu0 0.0
    %2502 = vmatpush1.msra.mxu0 0.0
    %2503 = vmatprep.subr.mxu0 0.0
    %2504 = vmatpush1.msra.mxu0 0.0
    %2505 = vmatprep.subr.mxu0 0.0
    %2506 = vmatpush1.msra.mxu0 0.0
    %2507 = vmatprep.subr.mxu0 0.0
    %2508 = vmatpush1.msra.mxu0 0.0
    %2509 = vmatprep.subr.mxu0 0.0
    %2510 = vmatpush1.msra.mxu0 0.0
    %2511 = vmatprep.subr.mxu0 0.0
    %2512 = vmatpush1.msra.mxu0 0.0
    %2513 = vmatprep.subr.mxu0 0.0
    %2514 = vmatpush1.msra.mxu0 0.0
    %2515 = vmatprep.subr.mxu0 0.0
    %2516 = vmatpush1.msra.mxu0 0.0
    %2517 = vmatprep.subr.mxu0 0.0
    %2518 = vmatpush1.msra.mxu0 0.0
    %2519 = vmatprep.subr.mxu0 0.0
    %2520 = vmatpush1.msra.mxu0 0.0
    %2521 = vmatprep.subr.mxu0 0.0
    %2522 = vmatpush1.msra.mxu0 0.0
    %2523 = vmatprep.subr.mxu0 0.0
    %2524 = vmatpush1.msra.mxu0 0.0
    %2525 = vmatprep.subr.mxu0 0.0
    %2526 = vmatpush1.msra.mxu0 0.0
    %2527 = vmatprep.subr.mxu0 0.0
    %2528 = vmatpush1.msra.mxu0 0.0
    %2529 = vmatprep.subr.mxu0 0.0
    %2530 = vmatpush1.msra.mxu0 0.0
    %2531 = vmatprep.subr.mxu0 0.0
    %2532 = vmatpush1.msra.mxu0 0.0
    %2533 = vmatprep.mubr.f32.mxu0 0.0
    %2534 = vmatmul.mubr.f32.gmra.mrb[0].mxu0 %v2464
    %v2535 = vpop.f32.mrb[0].mxu0
    %v2536 = vadd.f32 0.0, %v2535
    %v2537 = vpop.f32.mrb[0].mxu0
    %v2538 = vadd.f32 0.0, %v2537
    %2539 = vdwg.mxu0
    %2540 = vmatprep.subr.mxu0 0.0
    %2541 = vmatpush1.msra.mxu0 %v2246
    %2542 = vmatprep.subr.mxu0 0.0
    %2543 = vmatpush1.msra.mxu0 %v2249
    %2544 = vmatprep.subr.mxu0 0.0
    %2545 = vmatpush1.msra.mxu0 %v2252
    %2546 = vmatprep.subr.mxu0 0.0
    %2547 = vmatpush1.msra.mxu0 %v2255
    %2548 = vmatprep.subr.mxu0 0.0
    %2549 = vmatpush1.msra.mxu0 %v2258
    %2550 = vmatprep.subr.mxu0 0.0
    %2551 = vmatpush1.msra.mxu0 %v2261
    %2552 = vmatprep.subr.mxu0 0.0
    %2553 = vmatpush1.msra.mxu0 %v2264
    %2554 = vmatprep.subr.mxu0 0.0
    %2555 = vmatpush1.msra.mxu0 %v2267
    %2556 = vmatprep.subr.mxu0 0.0
    %2557 = vmatpush1.msra.mxu0 %v2270
    %2558 = vmatprep.subr.mxu0 0.0
    %2559 = vmatpush1.msra.mxu0 %v2273
    %2560 = vmatprep.subr.mxu0 0.0
    %2561 = vmatpush1.msra.mxu0 %v2276
    %2562 = vmatprep.subr.mxu0 0.0
    %2563 = vmatpush1.msra.mxu0 %v2279
    %2564 = vmatprep.subr.mxu0 0.0
    %2565 = vmatpush1.msra.mxu0 %v2282
    %2566 = vmatprep.subr.mxu0 0.0
    %2567 = vmatpush1.msra.mxu0 %v2285
    %2568 = vmatprep.subr.mxu0 0.0
    %2569 = vmatpush1.msra.mxu0 %v2288
    %2570 = vmatprep.subr.mxu0 0.0
    %2571 = vmatpush1.msra.mxu0 %v2291
    %2572 = vmatprep.subr.mxu0 0.0
    %2573 = vmatpush1.msra.mxu0 0.0
    %2574 = vmatprep.subr.mxu0 0.0
    %2575 = vmatpush1.msra.mxu0 0.0
    %2576 = vmatprep.subr.mxu0 0.0
    %2577 = vmatpush1.msra.mxu0 0.0
    %2578 = vmatprep.subr.mxu0 0.0
    %2579 = vmatpush1.msra.mxu0 0.0
    %2580 = vmatprep.subr.mxu0 0.0
    %2581 = vmatpush1.msra.mxu0 0.0
    %2582 = vmatprep.subr.mxu0 0.0
    %2583 = vmatpush1.msra.mxu0 0.0
    %2584 = vmatprep.subr.mxu0 0.0
    %2585 = vmatpush1.msra.mxu0 0.0
    %2586 = vmatprep.subr.mxu0 0.0
    %2587 = vmatpush1.msra.mxu0 0.0
    %2588 = vmatprep.subr.mxu0 0.0
    %2589 = vmatpush1.msra.mxu0 0.0
    %2590 = vmatprep.subr.mxu0 0.0
    %2591 = vmatpush1.msra.mxu0 0.0
    %2592 = vmatprep.subr.mxu0 0.0
    %2593 = vmatpush1.msra.mxu0 0.0
    %2594 = vmatprep.subr.mxu0 0.0
    %2595 = vmatpush1.msra.mxu0 0.0
    %2596 = vmatprep.subr.mxu0 0.0
    %2597 = vmatpush1.msra.mxu0 0.0
    %2598 = vmatprep.subr.mxu0 0.0
    %2599 = vmatpush1.msra.mxu0 0.0
    %2600 = vmatprep.subr.mxu0 0.0
    %2601 = vmatpush1.msra.mxu0 0.0
    %2602 = vmatprep.subr.mxu0 0.0
    %2603 = vmatpush1.msra.mxu0 0.0
    %2604 = vmatprep.mubr.f32.mxu0 0.0
    %2605 = vmatmul.mubr.f32.gmra.mrb[0].mxu0 %v2464
    %v2606 = vpop.f32.mrb[0].mxu0
    %v2607 = vadd.f32 0.0, %v2606
    %v2608 = vpop.f32.mrb[0].mxu0
    %2609 = vdwg.mxu0
    %v2610 = vadd.f32 %v2466, %v2536
    %v2611 = vxor.u32 %v2610, 2147483648
    %v2612 = vmul.f32 %v2611, 1.442695
    %v2613 = vpow.pop %v2612
    %v2614 = vadd.f32 %v2613, 1.0
    %v2615 = vrcp.pop %v2614
    %v2616 = vmul.f32 1.0, %v2615
    %v2617 = vadd.f32 %v2467, %v2538
    %v2618 = vxor.u32 %v2617, 2147483648
    %v2619 = vmul.f32 %v2618, 1.442695
    %v2620 = vpow.pop %v2619
    %v2621 = vadd.f32 %v2620, 1.0
    %v2622 = vrcp.pop %v2621
    %v2623 = vmul.f32 1.0, %v2622
    %v2624 = vadd.f32 %v2607, %v2455
    %v2625 = vmul.f32 %v2616, %v2624
    %v2626 = vadd.f32 %v2468, %v2625
    %v2627 = vtanh.pop %v2626
    %v2628 = vsub.f32 1.0, %v2623
    %v2629 = vmul.f32 %v2628, %v2627
    %v2630 = vmul.f32 %v2623, %v2464
    %v2631 = vadd.f32 %v2629, %v2630
    %2632 = vst [vmem:[%s901] sm:$0xff] %v2631
    %v2633 = vld [vmem:[%s905] sm:$0xff]
    %v2634 = vld [vmem:[%s905 + $0x8] sm:$0xff]
    %v2635 = vld [vmem:[%s905 + $0x10] sm:$0xff]
    %2636 = vmatprep.subr.mxu0 %v2245
    %2637 = vmatpush1.msra.mxu0 %v2244
    %2638 = vmatprep.subr.mxu0 %v2248
    %2639 = vmatpush1.msra.mxu0 %v2247
    %2640 = vmatprep.subr.mxu0 %v2251
    %2641 = vmatpush1.msra.mxu0 %v2250
    %2642 = vmatprep.subr.mxu0 %v2254
    %2643 = vmatpush1.msra.mxu0 %v2253
    %2644 = vmatprep.subr.mxu0 %v2257
    %2645 = vmatpush1.msra.mxu0 %v2256
    %2646 = vmatprep.subr.mxu0 %v2260
    %2647 = vmatpush1.msra.mxu0 %v2259
    %2648 = vmatprep.subr.mxu0 %v2263
    %2649 = vmatpush1.msra.mxu0 %v2262
    %2650 = vmatprep.subr.mxu0 %v2266
    %2651 = vmatpush1.msra.mxu0 %v2265
    %2652 = vmatprep.subr.mxu0 %v2269
    %2653 = vmatpush1.msra.mxu0 %v2268
    %2654 = vmatprep.subr.mxu0 %v2272
    %2655 = vmatpush1.msra.mxu0 %v2271
    %2656 = vmatprep.subr.mxu0 %v2275
    %2657 = vmatpush1.msra.mxu0 %v2274
    %2658 = vmatprep.subr.mxu0 %v2278
    %2659 = vmatpush1.msra.mxu0 %v2277
    %2660 = vmatprep.subr.mxu0 %v2281
    %2661 = vmatpush1.msra.mxu0 %v2280
    %2662 = vmatprep.subr.mxu0 %v2284
    %2663 = vmatpush1.msra.mxu0 %v2283
    %2664 = vmatprep.subr.mxu0 %v2287
    %2665 = vmatpush1.msra.mxu0 %v2286
    %2666 = vmatprep.subr.mxu0 %v2290
    %2667 = vmatpush1.msra.mxu0 %v2289
    %2668 = vmatprep.subr.mxu0 0.0
    %2669 = vmatpush1.msra.mxu0 0.0
    %2670 = vmatprep.subr.mxu0 0.0
    %2671 = vmatpush1.msra.mxu0 0.0
    %2672 = vmatprep.subr.mxu0 0.0
    %2673 = vmatpush1.msra.mxu0 0.0
    %2674 = vmatprep.subr.mxu0 0.0
    %2675 = vmatpush1.msra.mxu0 0.0
    %2676 = vmatprep.subr.mxu0 0.0
    %2677 = vmatpush1.msra.mxu0 0.0
    %2678 = vmatprep.subr.mxu0 0.0
    %2679 = vmatpush1.msra.mxu0 0.0
    %2680 = vmatprep.subr.mxu0 0.0
    %2681 = vmatpush1.msra.mxu0 0.0
    %2682 = vmatprep.subr.mxu0 0.0
    %2683 = vmatpush1.msra.mxu0 0.0
    %2684 = vmatprep.subr.mxu0 0.0
    %2685 = vmatpush1.msra.mxu0 0.0
    %2686 = vmatprep.subr.mxu0 0.0
    %2687 = vmatpush1.msra.mxu0 0.0
    %2688 = vmatprep.subr.mxu0 0.0
    %2689 = vmatpush1.msra.mxu0 0.0
    %2690 = vmatprep.subr.mxu0 0.0
    %2691 = vmatpush1.msra.mxu0 0.0
    %2692 = vmatprep.subr.mxu0 0.0
    %2693 = vmatpush1.msra.mxu0 0.0
    %2694 = vmatprep.subr.mxu0 0.0
    %2695 = vmatpush1.msra.mxu0 0.0
    %2696 = vmatprep.subr.mxu0 0.0
    %2697 = vmatpush1.msra.mxu0 0.0
    %2698 = vmatprep.subr.mxu0 0.0
    %2699 = vmatpush1.msra.mxu0 0.0
    %2700 = vmatprep.mubr.f32.mxu0 0.0
    %2701 = vmatmul.mubr.f32.gmra.mrb[0].mxu0 %v2631
    %v2702 = vpop.f32.mrb[0].mxu0
    %v2703 = vadd.f32 0.0, %v2702
    %v2704 = vpop.f32.mrb[0].mxu0
    %v2705 = vadd.f32 0.0, %v2704
    %2706 = vdwg.mxu0
    %2707 = vmatprep.subr.mxu0 0.0
    %2708 = vmatpush1.msra.mxu0 %v2246
    %2709 = vmatprep.subr.mxu0 0.0
    %2710 = vmatpush1.msra.mxu0 %v2249
    %2711 = vmatprep.subr.mxu0 0.0
    %2712 = vmatpush1.msra.mxu0 %v2252
    %2713 = vmatprep.subr.mxu0 0.0
    %2714 = vmatpush1.msra.mxu0 %v2255
    %2715 = vmatprep.subr.mxu0 0.0
    %2716 = vmatpush1.msra.mxu0 %v2258
    %2717 = vmatprep.subr.mxu0 0.0
    %2718 = vmatpush1.msra.mxu0 %v2261
    %2719 = vmatprep.subr.mxu0 0.0
    %2720 = vmatpush1.msra.mxu0 %v2264
    %2721 = vmatprep.subr.mxu0 0.0
    %2722 = vmatpush1.msra.mxu0 %v2267
    %2723 = vmatprep.subr.mxu0 0.0
    %2724 = vmatpush1.msra.mxu0 %v2270
    %2725 = vmatprep.subr.mxu0 0.0
    %2726 = vmatpush1.msra.mxu0 %v2273
    %2727 = vmatprep.subr.mxu0 0.0
    %2728 = vmatpush1.msra.mxu0 %v2276
    %2729 = vmatprep.subr.mxu0 0.0
    %2730 = vmatpush1.msra.mxu0 %v2279
    %2731 = vmatprep.subr.mxu0 0.0
    %2732 = vmatpush1.msra.mxu0 %v2282
    %2733 = vmatprep.subr.mxu0 0.0
    %2734 = vmatpush1.msra.mxu0 %v2285
    %2735 = vmatprep.subr.mxu0 0.0
    %2736 = vmatpush1.msra.mxu0 %v2288
    %2737 = vmatprep.subr.mxu0 0.0
    %2738 = vmatpush1.msra.mxu0 %v2291
    %2739 = vmatprep.subr.mxu0 0.0
    %2740 = vmatpush1.msra.mxu0 0.0
    %2741 = vmatprep.subr.mxu0 0.0
    %2742 = vmatpush1.msra.mxu0 0.0
    %2743 = vmatprep.subr.mxu0 0.0
    %2744 = vmatpush1.msra.mxu0 0.0
    %2745 = vmatprep.subr.mxu0 0.0
    %2746 = vmatpush1.msra.mxu0 0.0
    %2747 = vmatprep.subr.mxu0 0.0
    %2748 = vmatpush1.msra.mxu0 0.0
    %2749 = vmatprep.subr.mxu0 0.0
    %2750 = vmatpush1.msra.mxu0 0.0
    %2751 = vmatprep.subr.mxu0 0.0
    %2752 = vmatpush1.msra.mxu0 0.0
    %2753 = vmatprep.subr.mxu0 0.0
    %2754 = vmatpush1.msra.mxu0 0.0
    %2755 = vmatprep.subr.mxu0 0.0
    %2756 = vmatpush1.msra.mxu0 0.0
    %2757 = vmatprep.subr.mxu0 0.0
    %2758 = vmatpush1.msra.mxu0 0.0
    %2759 = vmatprep.subr.mxu0 0.0
    %2760 = vmatpush1.msra.mxu0 0.0
    %2761 = vmatprep.subr.mxu0 0.0
    %2762 = vmatpush1.msra.mxu0 0.0
    %2763 = vmatprep.subr.mxu0 0.0
    %2764 = vmatpush1.msra.mxu0 0.0
    %2765 = vmatprep.subr.mxu0 0.0
    %2766 = vmatpush1.msra.mxu0 0.0
    %2767 = vmatprep.subr.mxu0 0.0
    %2768 = vmatpush1.msra.mxu0 0.0
    %2769 = vmatprep.subr.mxu0 0.0
    %2770 = vmatpush1.msra.mxu0 0.0
    %2771 = vmatprep.mubr.f32.mxu0 0.0
    %2772 = vmatmul.mubr.f32.gmra.mrb[0].mxu0 %v2631
    %v2773 = vpop.f32.mrb[0].mxu0
    %v2774 = vadd.f32 0.0, %v2773
    %v2775 = vpop.f32.mrb[0].mxu0
    %2776 = vdwg.mxu0
    %v2777 = vadd.f32 %v2633, %v2703
    %v2778 = vxor.u32 %v2777, 2147483648
    %v2779 = vmul.f32 %v2778, 1.442695
    %v2780 = vpow.pop %v2779
    %v2781 = vadd.f32 %v2780, 1.0
    %v2782 = vrcp.pop %v2781
    %v2783 = vmul.f32 1.0, %v2782
    %v2784 = vadd.f32 %v2634, %v2705
    %v2785 = vxor.u32 %v2784, 2147483648
    %v2786 = vmul.f32 %v2785, 1.442695
    %v2787 = vpow.pop %v2786
    %v2788 = vadd.f32 %v2787, 1.0
    %v2789 = vrcp.pop %v2788
    %v2790 = vmul.f32 1.0, %v2789
    %v2791 = vadd.f32 %v2774, %v2455
    %v2792 = vmul.f32 %v2783, %v2791
    %v2793 = vadd.f32 %v2635, %v2792
    %v2794 = vtanh.pop %v2793
    %v2795 = vsub.f32 1.0, %v2790
    %v2796 = vmul.f32 %v2795, %v2794
    %v2797 = vmul.f32 %v2790, %v2631
    %v2798 = vadd.f32 %v2796, %v2797
    %2799 = vst [vmem:[%s1072] sm:$0xff] %v2798
    %v2800 = vld [vmem:[%s1076] sm:$0xff]
    %v2801 = vld [vmem:[%s1076 + $0x8] sm:$0xff]
    %v2802 = vld [vmem:[%s1076 + $0x10] sm:$0xff]
    %2803 = vmatprep.subr.mxu0 %v2245
    %2804 = vmatpush1.msra.mxu0 %v2244
    %2805 = vmatprep.subr.mxu0 %v2248
    %2806 = vmatpush1.msra.mxu0 %v2247
    %2807 = vmatprep.subr.mxu0 %v2251
    %2808 = vmatpush1.msra.mxu0 %v2250
    %2809 = vmatprep.subr.mxu0 %v2254
    %2810 = vmatpush1.msra.mxu0 %v2253
    %2811 = vmatprep.subr.mxu0 %v2257
    %2812 = vmatpush1.msra.mxu0 %v2256
    %2813 = vmatprep.subr.mxu0 %v2260
    %2814 = vmatpush1.msra.mxu0 %v2259
    %2815 = vmatprep.subr.mxu0 %v2263
    %2816 = vmatpush1.msra.mxu0 %v2262
    %2817 = vmatprep.subr.mxu0 %v2266
    %2818 = vmatpush1.msra.mxu0 %v2265
    %2819 = vmatprep.subr.mxu0 %v2269
    %2820 = vmatpush1.msra.mxu0 %v2268
    %2821 = vmatprep.subr.mxu0 %v2272
    %2822 = vmatpush1.msra.mxu0 %v2271
    %2823 = vmatprep.subr.mxu0 %v2275
    %2824 = vmatpush1.msra.mxu0 %v2274
    %2825 = vmatprep.subr.mxu0 %v2278
    %2826 = vmatpush1.msra.mxu0 %v2277
    %2827 = vmatprep.subr.mxu0 %v2281
    %2828 = vmatpush1.msra.mxu0 %v2280
    %2829 = vmatprep.subr.mxu0 %v2284
    %2830 = vmatpush1.msra.mxu0 %v2283
    %2831 = vmatprep.subr.mxu0 %v2287
    %2832 = vmatpush1.msra.mxu0 %v2286
    %2833 = vmatprep.subr.mxu0 %v2290
    %2834 = vmatpush1.msra.mxu0 %v2289
    %2835 = vmatprep.subr.mxu0 0.0
    %2836 = vmatpush1.msra.mxu0 0.0
    %2837 = vmatprep.subr.mxu0 0.0
    %2838 = vmatpush1.msra.mxu0 0.0
    %2839 = vmatprep.subr.mxu0 0.0
    %2840 = vmatpush1.msra.mxu0 0.0
    %2841 = vmatprep.subr.mxu0 0.0
    %2842 = vmatpush1.msra.mxu0 0.0
    %2843 = vmatprep.subr.mxu0 0.0
    %2844 = vmatpush1.msra.mxu0 0.0
    %2845 = vmatprep.subr.mxu0 0.0
    %2846 = vmatpush1.msra.mxu0 0.0
    %2847 = vmatprep.subr.mxu0 0.0
    %2848 = vmatpush1.msra.mxu0 0.0
    %2849 = vmatprep.subr.mxu0 0.0
    %2850 = vmatpush1.msra.mxu0 0.0
    %2851 = vmatprep.subr.mxu0 0.0
    %2852 = vmatpush1.msra.mxu0 0.0
    %2853 = vmatprep.subr.mxu0 0.0
    %2854 = vmatpush1.msra.mxu0 0.0
    %2855 = vmatprep.subr.mxu0 0.0
    %2856 = vmatpush1.msra.mxu0 0.0
    %2857 = vmatprep.subr.mxu0 0.0
    %2858 = vmatpush1.msra.mxu0 0.0
    %2859 = vmatprep.subr.mxu0 0.0
    %2860 = vmatpush1.msra.mxu0 0.0
    %2861 = vmatprep.subr.mxu0 0.0
    %2862 = vmatpush1.msra.mxu0 0.0
    %2863 = vmatprep.subr.mxu0 0.0
    %2864 = vmatpush1.msra.mxu0 0.0
    %2865 = vmatprep.subr.mxu0 0.0
    %2866 = vmatpush1.msra.mxu0 0.0
    %2867 = vmatprep.mubr.f32.mxu0 0.0
    %2868 = vmatmul.mubr.f32.gmra.mrb[0].mxu0 %v2798
    %v2869 = vpop.f32.mrb[0].mxu0
    %v2870 = vadd.f32 0.0, %v2869
    %v2871 = vpop.f32.mrb[0].mxu0
    %v2872 = vadd.f32 0.0, %v2871
    %2873 = vdwg.mxu0
    %2874 = vmatprep.subr.mxu0 0.0
    %2875 = vmatpush1.msra.mxu0 %v2246
    %2876 = vmatprep.subr.mxu0 0.0
    %2877 = vmatpush1.msra.mxu0 %v2249
    %2878 = vmatprep.subr.mxu0 0.0
    %2879 = vmatpush1.msra.mxu0 %v2252
    %2880 = vmatprep.subr.mxu0 0.0
    %2881 = vmatpush1.msra.mxu0 %v2255
    %2882 = vmatprep.subr.mxu0 0.0
    %2883 = vmatpush1.msra.mxu0 %v2258
    %2884 = vmatprep.subr.mxu0 0.0
    %2885 = vmatpush1.msra.mxu0 %v2261
    %2886 = vmatprep.subr.mxu0 0.0
    %2887 = vmatpush1.msra.mxu0 %v2264
    %2888 = vmatprep.subr.mxu0 0.0
    %2889 = vmatpush1.msra.mxu0 %v2267
    %2890 = vmatprep.subr.mxu0 0.0
    %2891 = vmatpush1.msra.mxu0 %v2270
    %2892 = vmatprep.subr.mxu0 0.0
    %2893 = vmatpush1.msra.mxu0 %v2273
    %2894 = vmatprep.subr.mxu0 0.0
    %2895 = vmatpush1.msra.mxu0 %v2276
    %2896 = vmatprep.subr.mxu0 0.0
    %2897 = vmatpush1.msra.mxu0 %v2279
    %2898 = vmatprep.subr.mxu0 0.0
    %2899 = vmatpush1.msra.mxu0 %v2282
    %2900 = vmatprep.subr.mxu0 0.0
    %2901 = vmatpush1.msra.mxu0 %v2285
    %2902 = vmatprep.subr.mxu0 0.0
    %2903 = vmatpush1.msra.mxu0 %v2288
    %2904 = vmatprep.subr.mxu0 0.0
    %2905 = vmatpush1.msra.mxu0 %v2291
    %2906 = vmatprep.subr.mxu0 0.0
    %2907 = vmatpush1.msra.mxu0 0.0
    %2908 = vmatprep.subr.mxu0 0.0
    %2909 = vmatpush1.msra.mxu0 0.0
    %2910 = vmatprep.subr.mxu0 0.0
    %2911 = vmatpush1.msra.mxu0 0.0
    %2912 = vmatprep.subr.mxu0 0.0
    %2913 = vmatpush1.msra.mxu0 0.0
    %2914 = vmatprep.subr.mxu0 0.0
    %2915 = vmatpush1.msra.mxu0 0.0
    %2916 = vmatprep.subr.mxu0 0.0
    %2917 = vmatpush1.msra.mxu0 0.0
    %2918 = vmatprep.subr.mxu0 0.0
    %2919 = vmatpush1.msra.mxu0 0.0
    %2920 = vmatprep.subr.mxu0 0.0
    %2921 = vmatpush1.msra.mxu0 0.0
    %2922 = vmatprep.subr.mxu0 0.0
    %2923 = vmatpush1.msra.mxu0 0.0
    %2924 = vmatprep.subr.mxu0 0.0
    %2925 = vmatpush1.msra.mxu0 0.0
    %2926 = vmatprep.subr.mxu0 0.0
    %2927 = vmatpush1.msra.mxu0 0.0
    %2928 = vmatprep.subr.mxu0 0.0
    %2929 = vmatpush1.msra.mxu0 0.0
    %2930 = vmatprep.subr.mxu0 0.0
    %2931 = vmatpush1.msra.mxu0 0.0
    %2932 = vmatprep.subr.mxu0 0.0
    %2933 = vmatpush1.msra.mxu0 0.0
    %2934 = vmatprep.subr.mxu0 0.0
    %2935 = vmatpush1.msra.mxu0 0.0
    %2936 = vmatprep.subr.mxu0 0.0
    %2937 = vmatpush1.msra.mxu0 0.0
    %2938 = vmatprep.mubr.f32.mxu0 0.0
    %2939 = vmatmul.mubr.f32.gmra.mrb[0].mxu0 %v2798
    %v2940 = vpop.f32.mrb[0].mxu0
    %v2941 = vadd.f32 0.0, %v2940
    %v2942 = vpop.f32.mrb[0].mxu0
    %2943 = vdwg.mxu0
    %v2944 = vadd.f32 %v2800, %v2870
    %v2945 = vxor.u32 %v2944, 2147483648
    %v2946 = vmul.f32 %v2945, 1.442695
    %v2947 = vpow.pop %v2946
    %v2948 = vadd.f32 %v2947, 1.0
    %v2949 = vrcp.pop %v2948
    %v2950 = vmul.f32 1.0, %v2949
    %v2951 = vadd.f32 %v2801, %v2872
    %v2952 = vxor.u32 %v2951, 2147483648
    %v2953 = vmul.f32 %v2952, 1.442695
    %v2954 = vpow.pop %v2953
    %v2955 = vadd.f32 %v2954, 1.0
    %v2956 = vrcp.pop %v2955
    %v2957 = vmul.f32 1.0, %v2956
    %v2958 = vadd.f32 %v2941, %v2455
    %v2959 = vmul.f32 %v2950, %v2958
    %v2960 = vadd.f32 %v2802, %v2959
    %v2961 = vtanh.pop %v2960
    %v2962 = vsub.f32 1.0, %v2957
    %v2963 = vmul.f32 %v2962, %v2961
    %v2964 = vmul.f32 %v2957, %v2798
    %v2965 = vadd.f32 %v2963, %v2964
    %2966 = vst [vmem:[%s1243] sm:$0xff] %v2965
    %v2967 = vld [vmem:[%s1247] sm:$0xff]
    %v2968 = vld [vmem:[%s1247 + $0x8] sm:$0xff]
    %v2969 = vld [vmem:[%s1247 + $0x10] sm:$0xff]
    %2970 = vmatprep.subr.mxu0 %v2245
    %2971 = vmatpush1.msra.mxu0 %v2244
    %2972 = vmatprep.subr.mxu0 %v2248
    %2973 = vmatpush1.msra.mxu0 %v2247
    %2974 = vmatprep.subr.mxu0 %v2251
    %2975 = vmatpush1.msra.mxu0 %v2250
    %2976 = vmatprep.subr.mxu0 %v2254
    %2977 = vmatpush1.msra.mxu0 %v2253
    %2978 = vmatprep.subr.mxu0 %v2257
    %2979 = vmatpush1.msra.mxu0 %v2256
    %2980 = vmatprep.subr.mxu0 %v2260
    %2981 = vmatpush1.msra.mxu0 %v2259
    %2982 = vmatprep.subr.mxu0 %v2263
    %2983 = vmatpush1.msra.mxu0 %v2262
    %2984 = vmatprep.subr.mxu0 %v2266
    %2985 = vmatpush1.msra.mxu0 %v2265
    %2986 = vmatprep.subr.mxu0 %v2269
    %2987 = vmatpush1.msra.mxu0 %v2268
    %2988 = vmatprep.subr.mxu0 %v2272
    %2989 = vmatpush1.msra.mxu0 %v2271
    %2990 = vmatprep.subr.mxu0 %v2275
    %2991 = vmatpush1.msra.mxu0 %v2274
    %2992 = vmatprep.subr.mxu0 %v2278
    %2993 = vmatpush1.msra.mxu0 %v2277
    %2994 = vmatprep.subr.mxu0 %v2281
    %2995 = vmatpush1.msra.mxu0 %v2280
    %2996 = vmatprep.subr.mxu0 %v2284
    %2997 = vmatpush1.msra.mxu0 %v2283
    %2998 = vmatprep.subr.mxu0 %v2287
    %2999 = vmatpush1.msra.mxu0 %v2286
    %3000 = vmatprep.subr.mxu0 %v2290
    %3001 = vmatpush1.msra.mxu0 %v2289
    %3002 = vmatprep.subr.mxu0 0.0
    %3003 = vmatpush1.msra.mxu0 0.0
    %3004 = vmatprep.subr.mxu0 0.0
    %3005 = vmatpush1.msra.mxu0 0.0
    %3006 = vmatprep.subr.mxu0 0.0
    %3007 = vmatpush1.msra.mxu0 0.0
    %3008 = vmatprep.subr.mxu0 0.0
    %3009 = vmatpush1.msra.mxu0 0.0
    %3010 = vmatprep.subr.mxu0 0.0
    %3011 = vmatpush1.msra.mxu0 0.0
    %3012 = vmatprep.subr.mxu0 0.0
    %3013 = vmatpush1.msra.mxu0 0.0
    %3014 = vmatprep.subr.mxu0 0.0
    %3015 = vmatpush1.msra.mxu0 0.0
    %3016 = vmatprep.subr.mxu0 0.0
    %3017 = vmatpush1.msra.mxu0 0.0
    %3018 = vmatprep.subr.mxu0 0.0
    %3019 = vmatpush1.msra.mxu0 0.0
    %3020 = vmatprep.subr.mxu0 0.0
    %3021 = vmatpush1.msra.mxu0 0.0
    %3022 = vmatprep.subr.mxu0 0.0
    %3023 = vmatpush1.msra.mxu0 0.0
    %3024 = vmatprep.subr.mxu0 0.0
    %3025 = vmatpush1.msra.mxu0 0.0
    %3026 = vmatprep.subr.mxu0 0.0
    %3027 = vmatpush1.msra.mxu0 0.0
    %3028 = vmatprep.subr.mxu0 0.0
    %3029 = vmatpush1.msra.mxu0 0.0
    %3030 = vmatprep.subr.mxu0 0.0
    %3031 = vmatpush1.msra.mxu0 0.0
    %3032 = vmatprep.subr.mxu0 0.0
    %3033 = vmatpush1.msra.mxu0 0.0
    %3034 = vmatprep.mubr.f32.mxu0 0.0
    %3035 = vmatmul.mubr.f32.gmra.mrb[0].mxu0 %v2965
    %v3036 = vpop.f32.mrb[0].mxu0
    %v3037 = vadd.f32 0.0, %v3036
    %v3038 = vpop.f32.mrb[0].mxu0
    %v3039 = vadd.f32 0.0, %v3038
    %3040 = vdwg.mxu0
    %3041 = vmatprep.subr.mxu0 0.0
    %3042 = vmatpush1.msra.mxu0 %v2246
    %3043 = vmatprep.subr.mxu0 0.0
    %3044 = vmatpush1.msra.mxu0 %v2249
    %3045 = vmatprep.subr.mxu0 0.0
    %3046 = vmatpush1.msra.mxu0 %v2252
    %3047 = vmatprep.subr.mxu0 0.0
    %3048 = vmatpush1.msra.mxu0 %v2255
    %3049 = vmatprep.subr.mxu0 0.0
    %3050 = vmatpush1.msra.mxu0 %v2258
    %3051 = vmatprep.subr.mxu0 0.0
    %3052 = vmatpush1.msra.mxu0 %v2261
    %3053 = vmatprep.subr.mxu0 0.0
    %3054 = vmatpush1.msra.mxu0 %v2264
    %3055 = vmatprep.subr.mxu0 0.0
    %3056 = vmatpush1.msra.mxu0 %v2267
    %3057 = vmatprep.subr.mxu0 0.0
    %3058 = vmatpush1.msra.mxu0 %v2270
    %3059 = vmatprep.subr.mxu0 0.0
    %3060 = vmatpush1.msra.mxu0 %v2273
    %3061 = vmatprep.subr.mxu0 0.0
    %3062 = vmatpush1.msra.mxu0 %v2276
    %3063 = vmatprep.subr.mxu0 0.0
    %3064 = vmatpush1.msra.mxu0 %v2279
    %3065 = vmatprep.subr.mxu0 0.0
    %3066 = vmatpush1.msra.mxu0 %v2282
    %3067 = vmatprep.subr.mxu0 0.0
    %3068 = vmatpush1.msra.mxu0 %v2285
    %3069 = vmatprep.subr.mxu0 0.0
    %3070 = vmatpush1.msra.mxu0 %v2288
    %3071 = vmatprep.subr.mxu0 0.0
    %3072 = vmatpush1.msra.mxu0 %v2291
    %3073 = vmatprep.subr.mxu0 0.0
    %3074 = vmatpush1.msra.mxu0 0.0
    %3075 = vmatprep.subr.mxu0 0.0
    %3076 = vmatpush1.msra.mxu0 0.0
    %3077 = vmatprep.subr.mxu0 0.0
    %3078 = vmatpush1.msra.mxu0 0.0
    %3079 = vmatprep.subr.mxu0 0.0
    %3080 = vmatpush1.msra.mxu0 0.0
    %3081 = vmatprep.subr.mxu0 0.0
    %3082 = vmatpush1.msra.mxu0 0.0
    %3083 = vmatprep.subr.mxu0 0.0
    %3084 = vmatpush1.msra.mxu0 0.0
    %3085 = vmatprep.subr.mxu0 0.0
    %3086 = vmatpush1.msra.mxu0 0.0
    %3087 = vmatprep.subr.mxu0 0.0
    %3088 = vmatpush1.msra.mxu0 0.0
    %3089 = vmatprep.subr.mxu0 0.0
    %3090 = vmatpush1.msra.mxu0 0.0
    %3091 = vmatprep.subr.mxu0 0.0
    %3092 = vmatpush1.msra.mxu0 0.0
    %3093 = vmatprep.subr.mxu0 0.0
    %3094 = vmatpush1.msra.mxu0 0.0
    %3095 = vmatprep.subr.mxu0 0.0
    %3096 = vmatpush1.msra.mxu0 0.0
    %3097 = vmatprep.subr.mxu0 0.0
    %3098 = vmatpush1.msra.mxu0 0.0
    %3099 = vmatprep.subr.mxu0 0.0
    %3100 = vmatpush1.msra.mxu0 0.0
    %3101 = vmatprep.subr.mxu0 0.0
    %3102 = vmatpush1.msra.mxu0 0.0
    %3103 = vmatprep.subr.mxu0 0.0
    %3104 = vmatpush1.msra.mxu0 0.0
    %3105 = vmatprep.mubr.f32.mxu0 0.0
    %3106 = vmatmul.mubr.f32.gmra.mrb[0].mxu0 %v2965
    %v3107 = vpop.f32.mrb[0].mxu0
    %v3108 = vadd.f32 0.0, %v3107
    %v3109 = vpop.f32.mrb[0].mxu0
    %3110 = vdwg.mxu0
    %v3111 = vadd.f32 %v2967, %v3037
    %v3112 = vxor.u32 %v3111, 2147483648
    %v3113 = vmul.f32 %v3112, 1.442695
    %v3114 = vpow.pop %v3113
    %v3115 = vadd.f32 %v3114, 1.0
    %v3116 = vrcp.pop %v3115
    %v3117 = vmul.f32 1.0, %v3116
    %v3118 = vadd.f32 %v2968, %v3039
    %v3119 = vxor.u32 %v3118, 2147483648
    %v3120 = vmul.f32 %v3119, 1.442695
    %v3121 = vpow.pop %v3120
    %v3122 = vadd.f32 %v3121, 1.0
    %v3123 = vrcp.pop %v3122
    %v3124 = vmul.f32 1.0, %v3123
    %v3125 = vadd.f32 %v3108, %v2455
    %v3126 = vmul.f32 %v3117, %v3125
    %v3127 = vadd.f32 %v2969, %v3126
    %v3128 = vtanh.pop %v3127
    %v3129 = vsub.f32 1.0, %v3124
    %v3130 = vmul.f32 %v3129, %v3128
    %v3131 = vmul.f32 %v3124, %v2965
    %v3132 = vadd.f32 %v3130, %v3131
    %3133 = vst [vmem:[%s1414] sm:$0xff] %v3132
    %v3134 = vld [vmem:[%s1418] sm:$0xff]
    %v3135 = vld [vmem:[%s1418 + $0x8] sm:$0xff]
    %v3136 = vld [vmem:[%s1418 + $0x10] sm:$0xff]
    %3137 = vmatprep.subr.mxu0 %v2245
    %3138 = vmatpush1.msra.mxu0 %v2244
    %3139 = vmatprep.subr.mxu0 %v2248
    %3140 = vmatpush1.msra.mxu0 %v2247
    %3141 = vmatprep.subr.mxu0 %v2251
    %3142 = vmatpush1.msra.mxu0 %v2250
    %3143 = vmatprep.subr.mxu0 %v2254
    %3144 = vmatpush1.msra.mxu0 %v2253
    %3145 = vmatprep.subr.mxu0 %v2257
    %3146 = vmatpush1.msra.mxu0 %v2256
    %3147 = vmatprep.subr.mxu0 %v2260
    %3148 = vmatpush1.msra.mxu0 %v2259
    %3149 = vmatprep.subr.mxu0 %v2263
    %3150 = vmatpush1.msra.mxu0 %v2262
    %3151 = vmatprep.subr.mxu0 %v2266
    %3152 = vmatpush1.msra.mxu0 %v2265
    %3153 = vmatprep.subr.mxu0 %v2269
    %3154 = vmatpush1.msra.mxu0 %v2268
    %3155 = vmatprep.subr.mxu0 %v2272
    %3156 = vmatpush1.msra.mxu0 %v2271
    %3157 = vmatprep.subr.mxu0 %v2275
    %3158 = vmatpush1.msra.mxu0 %v2274
    %3159 = vmatprep.subr.mxu0 %v2278
    %3160 = vmatpush1.msra.mxu0 %v2277
    %3161 = vmatprep.subr.mxu0 %v2281
    %3162 = vmatpush1.msra.mxu0 %v2280
    %3163 = vmatprep.subr.mxu0 %v2284
    %3164 = vmatpush1.msra.mxu0 %v2283
    %3165 = vmatprep.subr.mxu0 %v2287
    %3166 = vmatpush1.msra.mxu0 %v2286
    %3167 = vmatprep.subr.mxu0 %v2290
    %3168 = vmatpush1.msra.mxu0 %v2289
    %3169 = vmatprep.subr.mxu0 0.0
    %3170 = vmatpush1.msra.mxu0 0.0
    %3171 = vmatprep.subr.mxu0 0.0
    %3172 = vmatpush1.msra.mxu0 0.0
    %3173 = vmatprep.subr.mxu0 0.0
    %3174 = vmatpush1.msra.mxu0 0.0
    %3175 = vmatprep.subr.mxu0 0.0
    %3176 = vmatpush1.msra.mxu0 0.0
    %3177 = vmatprep.subr.mxu0 0.0
    %3178 = vmatpush1.msra.mxu0 0.0
    %3179 = vmatprep.subr.mxu0 0.0
    %3180 = vmatpush1.msra.mxu0 0.0
    %3181 = vmatprep.subr.mxu0 0.0
    %3182 = vmatpush1.msra.mxu0 0.0
    %3183 = vmatprep.subr.mxu0 0.0
    %3184 = vmatpush1.msra.mxu0 0.0
    %3185 = vmatprep.subr.mxu0 0.0
    %3186 = vmatpush1.msra.mxu0 0.0
    %3187 = vmatprep.subr.mxu0 0.0
    %3188 = vmatpush1.msra.mxu0 0.0
    %3189 = vmatprep.subr.mxu0 0.0
    %3190 = vmatpush1.msra.mxu0 0.0
    %3191 = vmatprep.subr.mxu0 0.0
    %3192 = vmatpush1.msra.mxu0 0.0
    %3193 = vmatprep.subr.mxu0 0.0
    %3194 = vmatpush1.msra.mxu0 0.0
    %3195 = vmatprep.subr.mxu0 0.0
    %3196 = vmatpush1.msra.mxu0 0.0
    %3197 = vmatprep.subr.mxu0 0.0
    %3198 = vmatpush1.msra.mxu0 0.0
    %3199 = vmatprep.subr.mxu0 0.0
    %3200 = vmatpush1.msra.mxu0 0.0
    %3201 = vmatprep.mubr.f32.mxu0 0.0
    %3202 = vmatmul.mubr.f32.gmra.mrb[0].mxu0 %v3132
    %v3203 = vpop.f32.mrb[0].mxu0
    %v3204 = vadd.f32 0.0, %v3203
    %v3205 = vpop.f32.mrb[0].mxu0
    %v3206 = vadd.f32 0.0, %v3205
    %3207 = vdwg.mxu0
    %3208 = vmatprep.subr.mxu0 0.0
    %3209 = vmatpush1.msra.mxu0 %v2246
    %3210 = vmatprep.subr.mxu0 0.0
    %3211 = vmatpush1.msra.mxu0 %v2249
    %3212 = vmatprep.subr.mxu0 0.0
    %3213 = vmatpush1.msra.mxu0 %v2252
    %3214 = vmatprep.subr.mxu0 0.0
    %3215 = vmatpush1.msra.mxu0 %v2255
    %3216 = vmatprep.subr.mxu0 0.0
    %3217 = vmatpush1.msra.mxu0 %v2258
    %3218 = vmatprep.subr.mxu0 0.0
    %3219 = vmatpush1.msra.mxu0 %v2261
    %3220 = vmatprep.subr.mxu0 0.0
    %3221 = vmatpush1.msra.mxu0 %v2264
    %3222 = vmatprep.subr.mxu0 0.0
    %3223 = vmatpush1.msra.mxu0 %v2267
    %3224 = vmatprep.subr.mxu0 0.0
    %3225 = vmatpush1.msra.mxu0 %v2270
    %3226 = vmatprep.subr.mxu0 0.0
    %3227 = vmatpush1.msra.mxu0 %v2273
    %3228 = vmatprep.subr.mxu0 0.0
    %3229 = vmatpush1.msra.mxu0 %v2276
    %3230 = vmatprep.subr.mxu0 0.0
    %3231 = vmatpush1.msra.mxu0 %v2279
    %3232 = vmatprep.subr.mxu0 0.0
    %3233 = vmatpush1.msra.mxu0 %v2282
    %3234 = vmatprep.subr.mxu0 0.0
    %3235 = vmatpush1.msra.mxu0 %v2285
    %3236 = vmatprep.subr.mxu0 0.0
    %3237 = vmatpush1.msra.mxu0 %v2288
    %3238 = vmatprep.subr.mxu0 0.0
    %3239 = vmatpush1.msra.mxu0 %v2291
    %3240 = vmatprep.subr.mxu0 0.0
    %3241 = vmatpush1.msra.mxu0 0.0
    %3242 = vmatprep.subr.mxu0 0.0
    %3243 = vmatpush1.msra.mxu0 0.0
    %3244 = vmatprep.subr.mxu0 0.0
    %3245 = vmatpush1.msra.mxu0 0.0
    %3246 = vmatprep.subr.mxu0 0.0
    %3247 = vmatpush1.msra.mxu0 0.0
    %3248 = vmatprep.subr.mxu0 0.0
    %3249 = vmatpush1.msra.mxu0 0.0
    %3250 = vmatprep.subr.mxu0 0.0
    %3251 = vmatpush1.msra.mxu0 0.0
    %3252 = vmatprep.subr.mxu0 0.0
    %3253 = vmatpush1.msra.mxu0 0.0
    %3254 = vmatprep.subr.mxu0 0.0
    %3255 = vmatpush1.msra.mxu0 0.0
    %3256 = vmatprep.subr.mxu0 0.0
    %3257 = vmatpush1.msra.mxu0 0.0
    %3258 = vmatprep.subr.mxu0 0.0
    %3259 = vmatpush1.msra.mxu0 0.0
    %3260 = vmatprep.subr.mxu0 0.0
    %3261 = vmatpush1.msra.mxu0 0.0
    %3262 = vmatprep.subr.mxu0 0.0
    %3263 = vmatpush1.msra.mxu0 0.0
    %3264 = vmatprep.subr.mxu0 0.0
    %3265 = vmatpush1.msra.mxu0 0.0
    %3266 = vmatprep.subr.mxu0 0.0
    %3267 = vmatpush1.msra.mxu0 0.0
    %3268 = vmatprep.subr.mxu0 0.0
    %3269 = vmatpush1.msra.mxu0 0.0
    %3270 = vmatprep.subr.mxu0 0.0
    %3271 = vmatpush1.msra.mxu0 0.0
    %3272 = vmatprep.mubr.f32.mxu0 0.0
    %3273 = vmatmul.mubr.f32.gmra.mrb[0].mxu0 %v3132
    %v3274 = vpop.f32.mrb[0].mxu0
    %v3275 = vadd.f32 0.0, %v3274
    %v3276 = vpop.f32.mrb[0].mxu0
    %3277 = vdwg.mxu0
    %v3278 = vadd.f32 %v3134, %v3204
    %v3279 = vxor.u32 %v3278, 2147483648
    %v3280 = vmul.f32 %v3279, 1.442695
    %v3281 = vpow.pop %v3280
    %v3282 = vadd.f32 %v3281, 1.0
    %v3283 = vrcp.pop %v3282
    %v3284 = vmul.f32 1.0, %v3283
    %v3285 = vadd.f32 %v3135, %v3206
    %v3286 = vxor.u32 %v3285, 2147483648
    %v3287 = vmul.f32 %v3286, 1.442695
    %v3288 = vpow.pop %v3287
    %v3289 = vadd.f32 %v3288, 1.0
    %v3290 = vrcp.pop %v3289
    %v3291 = vmul.f32 1.0, %v3290
    %v3292 = vadd.f32 %v3275, %v2455
    %v3293 = vmul.f32 %v3284, %v3292
    %v3294 = vadd.f32 %v3136, %v3293
    %v3295 = vtanh.pop %v3294
    %v3296 = vsub.f32 1.0, %v3291
    %v3297 = vmul.f32 %v3296, %v3295
    %v3298 = vmul.f32 %v3291, %v3132
    %v3299 = vadd.f32 %v3297, %v3298
    %3300 = vst [vmem:[%s1585] sm:$0xff] %v3299
    %v3301 = vld [vmem:[%s1589] sm:$0xff]
    %v3302 = vld [vmem:[%s1589 + $0x8] sm:$0xff]
    %v3303 = vld [vmem:[%s1589 + $0x10] sm:$0xff]
    %3304 = vmatprep.subr.mxu0 %v2245
    %3305 = vmatpush1.msra.mxu0 %v2244
    %3306 = vmatprep.subr.mxu0 %v2248
    %3307 = vmatpush1.msra.mxu0 %v2247
    %3308 = vmatprep.subr.mxu0 %v2251
    %3309 = vmatpush1.msra.mxu0 %v2250
    %3310 = vmatprep.subr.mxu0 %v2254
    %3311 = vmatpush1.msra.mxu0 %v2253
    %3312 = vmatprep.subr.mxu0 %v2257
    %3313 = vmatpush1.msra.mxu0 %v2256
    %3314 = vmatprep.subr.mxu0 %v2260
    %3315 = vmatpush1.msra.mxu0 %v2259
    %3316 = vmatprep.subr.mxu0 %v2263
    %3317 = vmatpush1.msra.mxu0 %v2262
    %3318 = vmatprep.subr.mxu0 %v2266
    %3319 = vmatpush1.msra.mxu0 %v2265
    %3320 = vmatprep.subr.mxu0 %v2269
    %3321 = vmatpush1.msra.mxu0 %v2268
    %3322 = vmatprep.subr.mxu0 %v2272
    %3323 = vmatpush1.msra.mxu0 %v2271
    %3324 = vmatprep.subr.mxu0 %v2275
    %3325 = vmatpush1.msra.mxu0 %v2274
    %3326 = vmatprep.subr.mxu0 %v2278
    %3327 = vmatpush1.msra.mxu0 %v2277
    %3328 = vmatprep.subr.mxu0 %v2281
    %3329 = vmatpush1.msra.mxu0 %v2280
    %3330 = vmatprep.subr.mxu0 %v2284
    %3331 = vmatpush1.msra.mxu0 %v2283
    %3332 = vmatprep.subr.mxu0 %v2287
    %3333 = vmatpush1.msra.mxu0 %v2286
    %3334 = vmatprep.subr.mxu0 %v2290
    %3335 = vmatpush1.msra.mxu0 %v2289
    %3336 = vmatprep.subr.mxu0 0.0
    %3337 = vmatpush1.msra.mxu0 0.0
    %3338 = vmatprep.subr.mxu0 0.0
    %3339 = vmatpush1.msra.mxu0 0.0
    %3340 = vmatprep.subr.mxu0 0.0
    %3341 = vmatpush1.msra.mxu0 0.0
    %3342 = vmatprep.subr.mxu0 0.0
    %3343 = vmatpush1.msra.mxu0 0.0
    %3344 = vmatprep.subr.mxu0 0.0
    %3345 = vmatpush1.msra.mxu0 0.0
    %3346 = vmatprep.subr.mxu0 0.0
    %3347 = vmatpush1.msra.mxu0 0.0
    %3348 = vmatprep.subr.mxu0 0.0
    %3349 = vmatpush1.msra.mxu0 0.0
    %3350 = vmatprep.subr.mxu0 0.0
    %3351 = vmatpush1.msra.mxu0 0.0
    %3352 = vmatprep.subr.mxu0 0.0
    %3353 = vmatpush1.msra.mxu0 0.0
    %3354 = vmatprep.subr.mxu0 0.0
    %3355 = vmatpush1.msra.mxu0 0.0
    %3356 = vmatprep.subr.mxu0 0.0
    %3357 = vmatpush1.msra.mxu0 0.0
    %3358 = vmatprep.subr.mxu0 0.0
    %3359 = vmatpush1.msra.mxu0 0.0
    %3360 = vmatprep.subr.mxu0 0.0
    %3361 = vmatpush1.msra.mxu0 0.0
    %3362 = vmatprep.subr.mxu0 0.0
    %3363 = vmatpush1.msra.mxu0 0.0
    %3364 = vmatprep.subr.mxu0 0.0
    %3365 = vmatpush1.msra.mxu0 0.0
    %3366 = vmatprep.subr.mxu0 0.0
    %3367 = vmatpush1.msra.mxu0 0.0
    %3368 = vmatprep.mubr.f32.mxu0 0.0
    %3369 = vmatmul.mubr.f32.gmra.mrb[0].mxu0 %v3299
    %v3370 = vpop.f32.mrb[0].mxu0
    %v3371 = vadd.f32 0.0, %v3370
    %v3372 = vpop.f32.mrb[0].mxu0
    %v3373 = vadd.f32 0.0, %v3372
    %3374 = vdwg.mxu0
    %3375 = vmatprep.subr.mxu0 0.0
    %3376 = vmatpush1.msra.mxu0 %v2246
    %3377 = vmatprep.subr.mxu0 0.0
    %3378 = vmatpush1.msra.mxu0 %v2249
    %3379 = vmatprep.subr.mxu0 0.0
    %3380 = vmatpush1.msra.mxu0 %v2252
    %3381 = vmatprep.subr.mxu0 0.0
    %3382 = vmatpush1.msra.mxu0 %v2255
    %3383 = vmatprep.subr.mxu0 0.0
    %3384 = vmatpush1.msra.mxu0 %v2258
    %3385 = vmatprep.subr.mxu0 0.0
    %3386 = vmatpush1.msra.mxu0 %v2261
    %3387 = vmatprep.subr.mxu0 0.0
    %3388 = vmatpush1.msra.mxu0 %v2264
    %3389 = vmatprep.subr.mxu0 0.0
    %3390 = vmatpush1.msra.mxu0 %v2267
    %3391 = vmatprep.subr.mxu0 0.0
    %3392 = vmatpush1.msra.mxu0 %v2270
    %3393 = vmatprep.subr.mxu0 0.0
    %3394 = vmatpush1.msra.mxu0 %v2273
    %3395 = vmatprep.subr.mxu0 0.0
    %3396 = vmatpush1.msra.mxu0 %v2276
    %3397 = vmatprep.subr.mxu0 0.0
    %3398 = vmatpush1.msra.mxu0 %v2279
    %3399 = vmatprep.subr.mxu0 0.0
    %3400 = vmatpush1.msra.mxu0 %v2282
    %3401 = vmatprep.subr.mxu0 0.0
    %3402 = vmatpush1.msra.mxu0 %v2285
    %3403 = vmatprep.subr.mxu0 0.0
    %3404 = vmatpush1.msra.mxu0 %v2288
    %3405 = vmatprep.subr.mxu0 0.0
    %3406 = vmatpush1.msra.mxu0 %v2291
    %3407 = vmatprep.subr.mxu0 0.0
    %3408 = vmatpush1.msra.mxu0 0.0
    %3409 = vmatprep.subr.mxu0 0.0
    %3410 = vmatpush1.msra.mxu0 0.0
    %3411 = vmatprep.subr.mxu0 0.0
    %3412 = vmatpush1.msra.mxu0 0.0
    %3413 = vmatprep.subr.mxu0 0.0
    %3414 = vmatpush1.msra.mxu0 0.0
    %3415 = vmatprep.subr.mxu0 0.0
    %3416 = vmatpush1.msra.mxu0 0.0
    %3417 = vmatprep.subr.mxu0 0.0
    %3418 = vmatpush1.msra.mxu0 0.0
    %3419 = vmatprep.subr.mxu0 0.0
    %3420 = vmatpush1.msra.mxu0 0.0
    %3421 = vmatprep.subr.mxu0 0.0
    %3422 = vmatpush1.msra.mxu0 0.0
    %3423 = vmatprep.subr.mxu0 0.0
    %3424 = vmatpush1.msra.mxu0 0.0
    %3425 = vmatprep.subr.mxu0 0.0
    %3426 = vmatpush1.msra.mxu0 0.0
    %3427 = vmatprep.subr.mxu0 0.0
    %3428 = vmatpush1.msra.mxu0 0.0
    %3429 = vmatprep.subr.mxu0 0.0
    %3430 = vmatpush1.msra.mxu0 0.0
    %3431 = vmatprep.subr.mxu0 0.0
    %3432 = vmatpush1.msra.mxu0 0.0
    %3433 = vmatprep.subr.mxu0 0.0
    %3434 = vmatpush1.msra.mxu0 0.0
    %3435 = vmatprep.subr.mxu0 0.0
    %3436 = vmatpush1.msra.mxu0 0.0
    %3437 = vmatprep.subr.mxu0 0.0
    %3438 = vmatpush1.msra.mxu0 0.0
    %3439 = vmatprep.mubr.f32.mxu0 0.0
    %3440 = vmatmul.mubr.f32.gmra.mrb[0].mxu0 %v3299
    %v3441 = vpop.f32.mrb[0].mxu0
    %v3442 = vadd.f32 0.0, %v3441
    %v3443 = vpop.f32.mrb[0].mxu0
    %3444 = vdwg.mxu0
    %v3445 = vadd.f32 %v3301, %v3371
    %v3446 = vxor.u32 %v3445, 2147483648
    %v3447 = vmul.f32 %v3446, 1.442695
    %v3448 = vpow.pop %v3447
    %v3449 = vadd.f32 %v3448, 1.0
    %v3450 = vrcp.pop %v3449
    %v3451 = vmul.f32 1.0, %v3450
    %v3452 = vadd.f32 %v3302, %v3373
    %v3453 = vxor.u32 %v3452, 2147483648
    %v3454 = vmul.f32 %v3453, 1.442695
    %v3455 = vpow.pop %v3454
    %v3456 = vadd.f32 %v3455, 1.0
    %v3457 = vrcp.pop %v3456
    %v3458 = vmul.f32 1.0, %v3457
    %v3459 = vadd.f32 %v3442, %v2455
    %v3460 = vmul.f32 %v3451, %v3459
    %v3461 = vadd.f32 %v3303, %v3460
    %v3462 = vtanh.pop %v3461
    %v3463 = vsub.f32 1.0, %v3458
    %v3464 = vmul.f32 %v3463, %v3462
    %v3465 = vmul.f32 %v3458, %v3299
    %v3466 = vadd.f32 %v3464, %v3465
    %3467 = vst [vmem:[%s1756] sm:$0xff] %v3466
    %v3468 = vld [vmem:[%s1760] sm:$0xff]
    %v3469 = vld [vmem:[%s1760 + $0x8] sm:$0xff]
    %v3470 = vld [vmem:[%s1760 + $0x10] sm:$0xff]
    %3471 = vmatprep.subr.mxu0 %v2245
    %3472 = vmatpush1.msra.mxu0 %v2244
    %3473 = vmatprep.subr.mxu0 %v2248
    %3474 = vmatpush1.msra.mxu0 %v2247
    %3475 = vmatprep.subr.mxu0 %v2251
    %3476 = vmatpush1.msra.mxu0 %v2250
    %3477 = vmatprep.subr.mxu0 %v2254
    %3478 = vmatpush1.msra.mxu0 %v2253
    %3479 = vmatprep.subr.mxu0 %v2257
    %3480 = vmatpush1.msra.mxu0 %v2256
    %3481 = vmatprep.subr.mxu0 %v2260
    %3482 = vmatpush1.msra.mxu0 %v2259
    %3483 = vmatprep.subr.mxu0 %v2263
    %3484 = vmatpush1.msra.mxu0 %v2262
    %3485 = vmatprep.subr.mxu0 %v2266
    %3486 = vmatpush1.msra.mxu0 %v2265
    %3487 = vmatprep.subr.mxu0 %v2269
    %3488 = vmatpush1.msra.mxu0 %v2268
    %3489 = vmatprep.subr.mxu0 %v2272
    %3490 = vmatpush1.msra.mxu0 %v2271
    %3491 = vmatprep.subr.mxu0 %v2275
    %3492 = vmatpush1.msra.mxu0 %v2274
    %3493 = vmatprep.subr.mxu0 %v2278
    %3494 = vmatpush1.msra.mxu0 %v2277
    %3495 = vmatprep.subr.mxu0 %v2281
    %3496 = vmatpush1.msra.mxu0 %v2280
    %3497 = vmatprep.subr.mxu0 %v2284
    %3498 = vmatpush1.msra.mxu0 %v2283
    %3499 = vmatprep.subr.mxu0 %v2287
    %3500 = vmatpush1.msra.mxu0 %v2286
    %3501 = vmatprep.subr.mxu0 %v2290
    %3502 = vmatpush1.msra.mxu0 %v2289
    %3503 = vmatprep.subr.mxu0 0.0
    %3504 = vmatpush1.msra.mxu0 0.0
    %3505 = vmatprep.subr.mxu0 0.0
    %3506 = vmatpush1.msra.mxu0 0.0
    %3507 = vmatprep.subr.mxu0 0.0
    %3508 = vmatpush1.msra.mxu0 0.0
    %3509 = vmatprep.subr.mxu0 0.0
    %3510 = vmatpush1.msra.mxu0 0.0
    %3511 = vmatprep.subr.mxu0 0.0
    %3512 = vmatpush1.msra.mxu0 0.0
    %3513 = vmatprep.subr.mxu0 0.0
    %3514 = vmatpush1.msra.mxu0 0.0
    %3515 = vmatprep.subr.mxu0 0.0
    %3516 = vmatpush1.msra.mxu0 0.0
    %3517 = vmatprep.subr.mxu0 0.0
    %3518 = vmatpush1.msra.mxu0 0.0
    %3519 = vmatprep.subr.mxu0 0.0
    %3520 = vmatpush1.msra.mxu0 0.0
    %3521 = vmatprep.subr.mxu0 0.0
    %3522 = vmatpush1.msra.mxu0 0.0
    %3523 = vmatprep.subr.mxu0 0.0
    %3524 = vmatpush1.msra.mxu0 0.0
    %3525 = vmatprep.subr.mxu0 0.0
    %3526 = vmatpush1.msra.mxu0 0.0
    %3527 = vmatprep.subr.mxu0 0.0
    %3528 = vmatpush1.msra.mxu0 0.0
    %3529 = vmatprep.subr.mxu0 0.0
    %3530 = vmatpush1.msra.mxu0 0.0
    %3531 = vmatprep.subr.mxu0 0.0
    %3532 = vmatpush1.msra.mxu0 0.0
    %3533 = vmatprep.subr.mxu0 0.0
    %3534 = vmatpush1.msra.mxu0 0.0
    %3535 = vmatprep.mubr.f32.mxu0 0.0
    %3536 = vmatmul.mubr.f32.gmra.mrb[0].mxu0 %v3466
    %v3537 = vpop.f32.mrb[0].mxu0
    %v3538 = vadd.f32 0.0, %v3537
    %v3539 = vpop.f32.mrb[0].mxu0
    %v3540 = vadd.f32 0.0, %v3539
    %3541 = vdwg.mxu0
    %3542 = vmatprep.subr.mxu0 0.0
    %3543 = vmatpush1.msra.mxu0 %v2246
    %3544 = vmatprep.subr.mxu0 0.0
    %3545 = vmatpush1.msra.mxu0 %v2249
    %3546 = vmatprep.subr.mxu0 0.0
    %3547 = vmatpush1.msra.mxu0 %v2252
    %3548 = vmatprep.subr.mxu0 0.0
    %3549 = vmatpush1.msra.mxu0 %v2255
    %3550 = vmatprep.subr.mxu0 0.0
    %3551 = vmatpush1.msra.mxu0 %v2258
    %3552 = vmatprep.subr.mxu0 0.0
    %3553 = vmatpush1.msra.mxu0 %v2261
    %3554 = vmatprep.subr.mxu0 0.0
    %3555 = vmatpush1.msra.mxu0 %v2264
    %3556 = vmatprep.subr.mxu0 0.0
    %3557 = vmatpush1.msra.mxu0 %v2267
    %3558 = vmatprep.subr.mxu0 0.0
    %3559 = vmatpush1.msra.mxu0 %v2270
    %3560 = vmatprep.subr.mxu0 0.0
    %3561 = vmatpush1.msra.mxu0 %v2273
    %3562 = vmatprep.subr.mxu0 0.0
    %3563 = vmatpush1.msra.mxu0 %v2276
    %3564 = vmatprep.subr.mxu0 0.0
    %3565 = vmatpush1.msra.mxu0 %v2279
    %3566 = vmatprep.subr.mxu0 0.0
    %3567 = vmatpush1.msra.mxu0 %v2282
    %3568 = vmatprep.subr.mxu0 0.0
    %3569 = vmatpush1.msra.mxu0 %v2285
    %3570 = vmatprep.subr.mxu0 0.0
    %3571 = vmatpush1.msra.mxu0 %v2288
    %3572 = vmatprep.subr.mxu0 0.0
    %3573 = vmatpush1.msra.mxu0 %v2291
    %3574 = vmatprep.subr.mxu0 0.0
    %3575 = vmatpush1.msra.mxu0 0.0
    %3576 = vmatprep.subr.mxu0 0.0
    %3577 = vmatpush1.msra.mxu0 0.0
    %3578 = vmatprep.subr.mxu0 0.0
    %3579 = vmatpush1.msra.mxu0 0.0
    %3580 = vmatprep.subr.mxu0 0.0
    %3581 = vmatpush1.msra.mxu0 0.0
    %3582 = vmatprep.subr.mxu0 0.0
    %3583 = vmatpush1.msra.mxu0 0.0
    %3584 = vmatprep.subr.mxu0 0.0
    %3585 = vmatpush1.msra.mxu0 0.0
    %3586 = vmatprep.subr.mxu0 0.0
    %3587 = vmatpush1.msra.mxu0 0.0
    %3588 = vmatprep.subr.mxu0 0.0
    %3589 = vmatpush1.msra.mxu0 0.0
    %3590 = vmatprep.subr.mxu0 0.0
    %3591 = vmatpush1.msra.mxu0 0.0
    %3592 = vmatprep.subr.mxu0 0.0
    %3593 = vmatpush1.msra.mxu0 0.0
    %3594 = vmatprep.subr.mxu0 0.0
    %3595 = vmatpush1.msra.mxu0 0.0
    %3596 = vmatprep.subr.mxu0 0.0
    %3597 = vmatpush1.msra.mxu0 0.0
    %3598 = vmatprep.subr.mxu0 0.0
    %3599 = vmatpush1.msra.mxu0 0.0
    %3600 = vmatprep.subr.mxu0 0.0
    %3601 = vmatpush1.msra.mxu0 0.0
    %3602 = vmatprep.subr.mxu0 0.0
    %3603 = vmatpush1.msra.mxu0 0.0
    %3604 = vmatprep.subr.mxu0 0.0
    %3605 = vmatpush1.msra.mxu0 0.0
    %3606 = vmatprep.mubr.f32.mxu0 0.0
    %3607 = vmatmul.mubr.f32.gmra.mrb[0].mxu0 %v3466
    %v3608 = vpop.f32.mrb[0].mxu0
    %v3609 = vadd.f32 0.0, %v3608
    %v3610 = vpop.f32.mrb[0].mxu0
    %3611 = vdwg.mxu0
    %v3612 = vadd.f32 %v3468, %v3538
    %v3613 = vxor.u32 %v3612, 2147483648
    %v3614 = vmul.f32 %v3613, 1.442695
    %v3615 = vpow.pop %v3614
    %v3616 = vadd.f32 %v3615, 1.0
    %v3617 = vrcp.pop %v3616
    %v3618 = vmul.f32 1.0, %v3617
    %v3619 = vadd.f32 %v3469, %v3540
    %v3620 = vxor.u32 %v3619, 2147483648
    %v3621 = vmul.f32 %v3620, 1.442695
    %v3622 = vpow.pop %v3621
    %v3623 = vadd.f32 %v3622, 1.0
    %v3624 = vrcp.pop %v3623
    %v3625 = vmul.f32 1.0, %v3624
    %v3626 = vadd.f32 %v3609, %v2455
    %v3627 = vmul.f32 %v3618, %v3626
    %v3628 = vadd.f32 %v3470, %v3627
    %v3629 = vtanh.pop %v3628
    %v3630 = vsub.f32 1.0, %v3625
    %v3631 = vmul.f32 %v3630, %v3629
    %v3632 = vmul.f32 %v3625, %v3466
    %v3633 = vadd.f32 %v3631, %v3632
    %3634 = vst [vmem:[%s1927] sm:$0xff] %v3633
    %v3635 = vld [vmem:[#allocation3] sm:$0xff]
    %v3636 = vld [vmem:[#allocation3 + $0x8] sm:$0xff]
    %v3637 = vld [vmem:[#allocation3 + $0x10] sm:$0xff]
    %v3638 = vld [vmem:[#allocation3 + $0x18] sm:$0xff]
    %v3639 = vld [vmem:[#allocation3 + $0x20] sm:$0xff]
    %v3640 = vld [vmem:[#allocation3 + $0x28] sm:$0xff]
    %v3641 = vld [vmem:[#allocation3 + $0x30] sm:$0xff]
    %v3642 = vld [vmem:[#allocation3 + $0x38] sm:$0xff]
    %v3643 = vld [vmem:[%s9] sm:$0xff]
    %v3644 = vld [vmem:[%s9 + $0x8] sm:$0xff]
    %v3645 = vld [vmem:[%s9 + $0x10] sm:$0xff]
    %v3646 = vld [vmem:[%s9 + $0x18] sm:$0xff]
    %v3647 = vld [vmem:[%s9 + $0x20] sm:$0xff]
    %v3648 = vld [vmem:[%s9 + $0x28] sm:$0xff]
    %v3649 = vld [vmem:[%s9 + $0x30] sm:$0xff]
    %v3650 = vld [vmem:[%s9 + $0x38] sm:$0xff]
    %v3651 = vld [vmem:[%s9 + $0x40] sm:$0xff]
    %v3652 = vld [vmem:[%s9 + $0x48] sm:$0xff]
    %v3653 = vld [vmem:[%s9 + $0x50] sm:$0xff]
    %v3654 = vld [vmem:[%s9 + $0x58] sm:$0xff]
    %v3655 = vld [vmem:[%s9 + $0x60] sm:$0xff]
    %v3656 = vld [vmem:[%s9 + $0x68] sm:$0xff]
    %v3657 = vld [vmem:[%s9 + $0x70] sm:$0xff]
    %v3658 = vld [vmem:[%s9 + $0x78] sm:$0xff]
    %v3659 = vld [vmem:[%s10] sm:$0x1]
    %v3661 = vlaneseq
    %v3662 = vshrl.u32 %v3661, 7
    %v3663 = vsub.s32 0, %v3662
    %v3664 = vrot.slane %v3659, %v3663
    %3666 = vmatprep.subr.mxu0 0.0
    %3667 = vmatpush1.msra.mxu0 %v3643
    %3668 = vmatprep.subr.mxu0 0.0
    %3669 = vmatpush1.msra.mxu0 %v3644
    %3670 = vmatprep.subr.mxu0 0.0
    %3671 = vmatpush1.msra.mxu0 %v3645
    %3672 = vmatprep.subr.mxu0 0.0
    %3673 = vmatpush1.msra.mxu0 %v3646
    %3674 = vmatprep.subr.mxu0 0.0
    %3675 = vmatpush1.msra.mxu0 %v3647
    %3676 = vmatprep.subr.mxu0 0.0
    %3677 = vmatpush1.msra.mxu0 %v3648
    %3678 = vmatprep.subr.mxu0 0.0
    %3679 = vmatpush1.msra.mxu0 %v3649
    %3680 = vmatprep.subr.mxu0 0.0
    %3681 = vmatpush1.msra.mxu0 %v3650
    %3682 = vmatprep.subr.mxu0 0.0
    %3683 = vmatpush1.msra.mxu0 %v3651
    %3684 = vmatprep.subr.mxu0 0.0
    %3685 = vmatpush1.msra.mxu0 %v3652
    %3686 = vmatprep.subr.mxu0 0.0
    %3687 = vmatpush1.msra.mxu0 %v3653
    %3688 = vmatprep.subr.mxu0 0.0
    %3689 = vmatpush1.msra.mxu0 %v3654
    %3690 = vmatprep.subr.mxu0 0.0
    %3691 = vmatpush1.msra.mxu0 %v3655
    %3692 = vmatprep.subr.mxu0 0.0
    %3693 = vmatpush1.msra.mxu0 %v3656
    %3694 = vmatprep.subr.mxu0 0.0
    %3695 = vmatpush1.msra.mxu0 %v3657
    %3696 = vmatprep.subr.mxu0 0.0
    %3697 = vmatpush1.msra.mxu0 %v3658
    %3698 = vmatprep.subr.mxu0 0.0
    %3699 = vmatpush1.msra.mxu0 0.0
    %3700 = vmatprep.subr.mxu0 0.0
    %3701 = vmatpush1.msra.mxu0 0.0
    %3702 = vmatprep.subr.mxu0 0.0
    %3703 = vmatpush1.msra.mxu0 0.0
    %3704 = vmatprep.subr.mxu0 0.0
    %3705 = vmatpush1.msra.mxu0 0.0
    %3706 = vmatprep.subr.mxu0 0.0
    %3707 = vmatpush1.msra.mxu0 0.0
    %3708 = vmatprep.subr.mxu0 0.0
    %3709 = vmatpush1.msra.mxu0 0.0
    %3710 = vmatprep.subr.mxu0 0.0
    %3711 = vmatpush1.msra.mxu0 0.0
    %3712 = vmatprep.subr.mxu0 0.0
    %3713 = vmatpush1.msra.mxu0 0.0
    %3714 = vmatprep.subr.mxu0 0.0
    %3715 = vmatpush1.msra.mxu0 0.0
    %3716 = vmatprep.subr.mxu0 0.0
    %3717 = vmatpush1.msra.mxu0 0.0
    %3718 = vmatprep.subr.mxu0 0.0
    %3719 = vmatpush1.msra.mxu0 0.0
    %3720 = vmatprep.subr.mxu0 0.0
    %3721 = vmatpush1.msra.mxu0 0.0
    %3722 = vmatprep.subr.mxu0 0.0
    %3723 = vmatpush1.msra.mxu0 0.0
    %3724 = vmatprep.subr.mxu0 0.0
    %3725 = vmatpush1.msra.mxu0 0.0
    %3726 = vmatprep.subr.mxu0 0.0
    %3727 = vmatpush1.msra.mxu0 0.0
    %3728 = vmatprep.subr.mxu0 0.0
    %3729 = vmatpush1.msra.mxu0 0.0
    %3730 = vmatprep.mubr.f32.mxu0 0.0
    %3731 = vmatmul.mubr.f32.gmra.mrb[0].mxu0 %v3635
    %v3732 = vpop.f32.mrb[0].mxu0
    %v3733 = vadd.f32 %v3664, %v3732
    %v3734 = vpop.f32.mrb[0].mxu0
    %3735 = vmatprep.mubr.f32.mxu0 0.0
    %3736 = vmatmul.mubr.f32.gmra.mrb[0].mxu0 %v3636
    %v3737 = vpop.f32.mrb[0].mxu0
    %v3738 = vadd.f32 %v3664, %v3737
    %v3739 = vpop.f32.mrb[0].mxu0
    %3740 = vmatprep.mubr.f32.mxu0 0.0
    %3741 = vmatmul.mubr.f32.gmra.mrb[0].mxu0 %v3637
    %v3742 = vpop.f32.mrb[0].mxu0
    %v3743 = vadd.f32 %v3664, %v3742
    %v3744 = vpop.f32.mrb[0].mxu0
    %3745 = vmatprep.mubr.f32.mxu0 0.0
    %3746 = vmatmul.mubr.f32.gmra.mrb[0].mxu0 %v3638
    %v3747 = vpop.f32.mrb[0].mxu0
    %v3748 = vadd.f32 %v3664, %v3747
    %v3749 = vpop.f32.mrb[0].mxu0
    %3750 = vmatprep.mubr.f32.mxu0 0.0
    %3751 = vmatmul.mubr.f32.gmra.mrb[0].mxu0 %v3639
    %v3752 = vpop.f32.mrb[0].mxu0
    %v3753 = vadd.f32 %v3664, %v3752
    %v3754 = vpop.f32.mrb[0].mxu0
    %3755 = vmatprep.mubr.f32.mxu0 0.0
    %3756 = vmatmul.mubr.f32.gmra.mrb[0].mxu0 %v3640
    %v3757 = vpop.f32.mrb[0].mxu0
    %v3758 = vadd.f32 %v3664, %v3757
    %v3759 = vpop.f32.mrb[0].mxu0
    %3760 = vmatprep.mubr.f32.mxu0 0.0
    %3761 = vmatmul.mubr.f32.gmra.mrb[0].mxu0 %v3641
    %v3762 = vpop.f32.mrb[0].mxu0
    %v3763 = vadd.f32 %v3664, %v3762
    %v3764 = vpop.f32.mrb[0].mxu0
    %3765 = vmatprep.mubr.f32.mxu0 0.0
    %3766 = vmatmul.mubr.f32.gmra.mrb[0].mxu0 %v3642
    %v3767 = vpop.f32.mrb[0].mxu0
    %v3768 = vadd.f32 %v3664, %v3767
    %v3769 = vpop.f32.mrb[0].mxu0
    %3770 = vdwg.mxu0
    %v3771 = vmax.f32 %v3733, 0.0
    %v3772 = vmax.f32 %v3738, 0.0
    %v3773 = vmax.f32 %v3743, 0.0
    %v3774 = vmax.f32 %v3748, 0.0
    %v3775 = vmax.f32 %v3753, 0.0
    %v3776 = vmax.f32 %v3758, 0.0
    %v3777 = vmax.f32 %v3763, 0.0
    %v3778 = vmax.f32 %v3768, 0.0
    %v3779 = vld [vmem:[#allocation13] sm:$0xff]
    %v3780 = vld [vmem:[#allocation13 + $0x8] sm:$0xff]
    %v3781 = vld [vmem:[#allocation13 + $0x10] sm:$0xff]
    %v3782 = vld [vmem:[#allocation13 + $0x18] sm:$0xff]
    %v3783 = vld [vmem:[#allocation13 + $0x20] sm:$0xff]
    %v3784 = vld [vmem:[#allocation13 + $0x28] sm:$0xff]
    %v3785 = vld [vmem:[#allocation13 + $0x30] sm:$0xff]
    %v3786 = vld [vmem:[#allocation13 + $0x38] sm:$0xff]
    %v3787 = vld [vmem:[#allocation13 + $0x40] sm:$0xff]
    %v3788 = vld [vmem:[#allocation13 + $0x48] sm:$0xff]
    %v3789 = vld [vmem:[#allocation13 + $0x50] sm:$0xff]
    %v3790 = vld [vmem:[#allocation13 + $0x58] sm:$0xff]
    %v3791 = vld [vmem:[#allocation13 + $0x60] sm:$0xff]
    %v3792 = vld [vmem:[#allocation13 + $0x68] sm:$0xff]
    %v3793 = vld [vmem:[#allocation13 + $0x70] sm:$0xff]
    %v3794 = vld [vmem:[#allocation13 + $0x78] sm:$0xff]
    %v3795 = vld [vmem:[%s12] sm:$0x1]
    %v3797 = vlaneseq
    %v3798 = vshrl.u32 %v3797, 7
    %v3799 = vsub.s32 0, %v3798
    %v3800 = vrot.slane %v3795, %v3799
    %3802 = vmatprep.subr.mxu0 0.0
    %3803 = vmatpush1.msra.mxu0 %v3779
    %3804 = vmatprep.subr.mxu0 0.0
    %3805 = vmatpush1.msra.mxu0 %v3780
    %3806 = vmatprep.subr.mxu0 0.0
    %3807 = vmatpush1.msra.mxu0 %v3781
    %3808 = vmatprep.subr.mxu0 0.0
    %3809 = vmatpush1.msra.mxu0 %v3782
    %3810 = vmatprep.subr.mxu0 0.0
    %3811 = vmatpush1.msra.mxu0 %v3783
    %3812 = vmatprep.subr.mxu0 0.0
    %3813 = vmatpush1.msra.mxu0 %v3784
    %3814 = vmatprep.subr.mxu0 0.0
    %3815 = vmatpush1.msra.mxu0 %v3785
    %3816 = vmatprep.subr.mxu0 0.0
    %3817 = vmatpush1.msra.mxu0 %v3786
    %3818 = vmatprep.subr.mxu0 0.0
    %3819 = vmatpush1.msra.mxu0 %v3787
    %3820 = vmatprep.subr.mxu0 0.0
    %3821 = vmatpush1.msra.mxu0 %v3788
    %3822 = vmatprep.subr.mxu0 0.0
    %3823 = vmatpush1.msra.mxu0 %v3789
    %3824 = vmatprep.subr.mxu0 0.0
    %3825 = vmatpush1.msra.mxu0 %v3790
    %3826 = vmatprep.subr.mxu0 0.0
    %3827 = vmatpush1.msra.mxu0 %v3791
    %3828 = vmatprep.subr.mxu0 0.0
    %3829 = vmatpush1.msra.mxu0 %v3792
    %3830 = vmatprep.subr.mxu0 0.0
    %3831 = vmatpush1.msra.mxu0 %v3793
    %3832 = vmatprep.subr.mxu0 0.0
    %3833 = vmatpush1.msra.mxu0 %v3794
    %3834 = vmatprep.subr.mxu0 0.0
    %3835 = vmatpush1.msra.mxu0 0.0
    %3836 = vmatprep.subr.mxu0 0.0
    %3837 = vmatpush1.msra.mxu0 0.0
    %3838 = vmatprep.subr.mxu0 0.0
    %3839 = vmatpush1.msra.mxu0 0.0
    %3840 = vmatprep.subr.mxu0 0.0
    %3841 = vmatpush1.msra.mxu0 0.0
    %3842 = vmatprep.subr.mxu0 0.0
    %3843 = vmatpush1.msra.mxu0 0.0
    %3844 = vmatprep.subr.mxu0 0.0
    %3845 = vmatpush1.msra.mxu0 0.0
    %3846 = vmatprep.subr.mxu0 0.0
    %3847 = vmatpush1.msra.mxu0 0.0
    %3848 = vmatprep.subr.mxu0 0.0
    %3849 = vmatpush1.msra.mxu0 0.0
    %3850 = vmatprep.subr.mxu0 0.0
    %3851 = vmatpush1.msra.mxu0 0.0
    %3852 = vmatprep.subr.mxu0 0.0
    %3853 = vmatpush1.msra.mxu0 0.0
    %3854 = vmatprep.subr.mxu0 0.0
    %3855 = vmatpush1.msra.mxu0 0.0
    %3856 = vmatprep.subr.mxu0 0.0
    %3857 = vmatpush1.msra.mxu0 0.0
    %3858 = vmatprep.subr.mxu0 0.0
    %3859 = vmatpush1.msra.mxu0 0.0
    %3860 = vmatprep.subr.mxu0 0.0
    %3861 = vmatpush1.msra.mxu0 0.0
    %3862 = vmatprep.subr.mxu0 0.0
    %3863 = vmatpush1.msra.mxu0 0.0
    %3864 = vmatprep.subr.mxu0 0.0
    %3865 = vmatpush1.msra.mxu0 0.0
    %3866 = vmatprep.mubr.f32.mxu0 0.0
    %3867 = vmatmul.mubr.f32.gmra.mrb[0].mxu0 %v3771
    %v3868 = vpop.f32.mrb[0].mxu0
    %v3869 = vadd.f32 %v3800, %v3868
    %v3870 = vpop.f32.mrb[0].mxu0
    %3871 = vmatprep.mubr.f32.mxu0 0.0
    %3872 = vmatmul.mubr.f32.gmra.mrb[0].mxu0 %v3772
    %v3873 = vpop.f32.mrb[0].mxu0
    %v3874 = vadd.f32 %v3800, %v3873
    %v3875 = vpop.f32.mrb[0].mxu0
    %3876 = vmatprep.mubr.f32.mxu0 0.0
    %3877 = vmatmul.mubr.f32.gmra.mrb[0].mxu0 %v3773
    %v3878 = vpop.f32.mrb[0].mxu0
    %v3879 = vadd.f32 %v3800, %v3878
    %v3880 = vpop.f32.mrb[0].mxu0
    %3881 = vmatprep.mubr.f32.mxu0 0.0
    %3882 = vmatmul.mubr.f32.gmra.mrb[0].mxu0 %v3774
    %v3883 = vpop.f32.mrb[0].mxu0
    %v3884 = vadd.f32 %v3800, %v3883
    %v3885 = vpop.f32.mrb[0].mxu0
    %3886 = vmatprep.mubr.f32.mxu0 0.0
    %3887 = vmatmul.mubr.f32.gmra.mrb[0].mxu0 %v3775
    %v3888 = vpop.f32.mrb[0].mxu0
    %v3889 = vadd.f32 %v3800, %v3888
    %v3890 = vpop.f32.mrb[0].mxu0
    %3891 = vmatprep.mubr.f32.mxu0 0.0
    %3892 = vmatmul.mubr.f32.gmra.mrb[0].mxu0 %v3776
    %v3893 = vpop.f32.mrb[0].mxu0
    %v3894 = vadd.f32 %v3800, %v3893
    %v3895 = vpop.f32.mrb[0].mxu0
    %3896 = vmatprep.mubr.f32.mxu0 0.0
    %3897 = vmatmul.mubr.f32.gmra.mrb[0].mxu0 %v3777
    %v3898 = vpop.f32.mrb[0].mxu0
    %v3899 = vadd.f32 %v3800, %v3898
    %v3900 = vpop.f32.mrb[0].mxu0
    %3901 = vmatprep.mubr.f32.mxu0 0.0
    %3902 = vmatmul.mubr.f32.gmra.mrb[0].mxu0 %v3778
    %v3903 = vpop.f32.mrb[0].mxu0
    %v3904 = vadd.f32 %v3800, %v3903
    %v3905 = vpop.f32.mrb[0].mxu0
    %3906 = vdwg.mxu0
    %v3907 = vmax.f32 %v3869, 0.0
    %v3908 = vmax.f32 %v3874, 0.0
    %v3909 = vmax.f32 %v3879, 0.0
    %v3910 = vmax.f32 %v3884, 0.0
    %v3911 = vmax.f32 %v3889, 0.0
    %v3912 = vmax.f32 %v3894, 0.0
    %v3913 = vmax.f32 %v3899, 0.0
    %v3914 = vmax.f32 %v3904, 0.0
    %v3915 = vld [vmem:[#allocation15] sm:$0xff]
    %v3916 = vld [vmem:[#allocation15 + $0x8] sm:$0xff]
    %v3917 = vld [vmem:[#allocation15 + $0x10] sm:$0xff]
    %v3918 = vld [vmem:[#allocation15 + $0x18] sm:$0xff]
    %v3919 = vld [vmem:[#allocation15 + $0x20] sm:$0xff]
    %v3920 = vld [vmem:[#allocation15 + $0x28] sm:$0xff]
    %v3921 = vld [vmem:[#allocation15 + $0x30] sm:$0xff]
    %v3922 = vld [vmem:[#allocation15 + $0x38] sm:$0xff]
    %v3923 = vld [vmem:[#allocation15 + $0x40] sm:$0xff]
    %v3924 = vld [vmem:[#allocation15 + $0x48] sm:$0xff]
    %v3925 = vld [vmem:[#allocation15 + $0x50] sm:$0xff]
    %v3926 = vld [vmem:[#allocation15 + $0x58] sm:$0xff]
    %v3927 = vld [vmem:[#allocation15 + $0x60] sm:$0xff]
    %v3928 = vld [vmem:[#allocation15 + $0x68] sm:$0xff]
    %v3929 = vld [vmem:[#allocation15 + $0x70] sm:$0xff]
    %v3930 = vld [vmem:[#allocation15 + $0x78] sm:$0xff]
    %v3931 = vld [vmem:[%s14] sm:$0x1]
    %v3933 = vlaneseq
    %v3934 = vshrl.u32 %v3933, 7
    %v3935 = vsub.s32 0, %v3934
    %v3936 = vrot.slane %v3931, %v3935
    %3938 = vmatprep.subr.mxu0 0.0
    %3939 = vmatpush1.msra.mxu0 %v3915
    %3940 = vmatprep.subr.mxu0 0.0
    %3941 = vmatpush1.msra.mxu0 %v3916
    %3942 = vmatprep.subr.mxu0 0.0
    %3943 = vmatpush1.msra.mxu0 %v3917
    %3944 = vmatprep.subr.mxu0 0.0
    %3945 = vmatpush1.msra.mxu0 %v3918
    %3946 = vmatprep.subr.mxu0 0.0
    %3947 = vmatpush1.msra.mxu0 %v3919
    %3948 = vmatprep.subr.mxu0 0.0
    %3949 = vmatpush1.msra.mxu0 %v3920
    %3950 = vmatprep.subr.mxu0 0.0
    %3951 = vmatpush1.msra.mxu0 %v3921
    %3952 = vmatprep.subr.mxu0 0.0
    %3953 = vmatpush1.msra.mxu0 %v3922
    %3954 = vmatprep.subr.mxu0 0.0
    %3955 = vmatpush1.msra.mxu0 %v3923
    %3956 = vmatprep.subr.mxu0 0.0
    %3957 = vmatpush1.msra.mxu0 %v3924
    %3958 = vmatprep.subr.mxu0 0.0
    %3959 = vmatpush1.msra.mxu0 %v3925
    %3960 = vmatprep.subr.mxu0 0.0
    %3961 = vmatpush1.msra.mxu0 %v3926
    %3962 = vmatprep.subr.mxu0 0.0
    %3963 = vmatpush1.msra.mxu0 %v3927
    %3964 = vmatprep.subr.mxu0 0.0
    %3965 = vmatpush1.msra.mxu0 %v3928
    %3966 = vmatprep.subr.mxu0 0.0
    %3967 = vmatpush1.msra.mxu0 %v3929
    %3968 = vmatprep.subr.mxu0 0.0
    %3969 = vmatpush1.msra.mxu0 %v3930
    %3970 = vmatprep.subr.mxu0 0.0
    %3971 = vmatpush1.msra.mxu0 0.0
    %3972 = vmatprep.subr.mxu0 0.0
    %3973 = vmatpush1.msra.mxu0 0.0
    %3974 = vmatprep.subr.mxu0 0.0
    %3975 = vmatpush1.msra.mxu0 0.0
    %3976 = vmatprep.subr.mxu0 0.0
    %3977 = vmatpush1.msra.mxu0 0.0
    %3978 = vmatprep.subr.mxu0 0.0
    %3979 = vmatpush1.msra.mxu0 0.0
    %3980 = vmatprep.subr.mxu0 0.0
    %3981 = vmatpush1.msra.mxu0 0.0
    %3982 = vmatprep.subr.mxu0 0.0
    %3983 = vmatpush1.msra.mxu0 0.0
    %3984 = vmatprep.subr.mxu0 0.0
    %3985 = vmatpush1.msra.mxu0 0.0
    %3986 = vmatprep.subr.mxu0 0.0
    %3987 = vmatpush1.msra.mxu0 0.0
    %3988 = vmatprep.subr.mxu0 0.0
    %3989 = vmatpush1.msra.mxu0 0.0
    %3990 = vmatprep.subr.mxu0 0.0
    %3991 = vmatpush1.msra.mxu0 0.0
    %3992 = vmatprep.subr.mxu0 0.0
    %3993 = vmatpush1.msra.mxu0 0.0
    %3994 = vmatprep.subr.mxu0 0.0
    %3995 = vmatpush1.msra.mxu0 0.0
    %3996 = vmatprep.subr.mxu0 0.0
    %3997 = vmatpush1.msra.mxu0 0.0
    %3998 = vmatprep.subr.mxu0 0.0
    %3999 = vmatpush1.msra.mxu0 0.0
    %4000 = vmatprep.subr.mxu0 0.0
    %4001 = vmatpush1.msra.mxu0 0.0
    %4002 = vmatprep.mubr.f32.mxu0 0.0
    %4003 = vmatmul.mubr.f32.gmra.mrb[0].mxu0 %v3907
    %v4004 = vpop.f32.mrb[0].mxu0
    %v4005 = vadd.f32 %v3936, %v4004
    %v4006 = vpop.f32.mrb[0].mxu0
    %4007 = vmatprep.mubr.f32.mxu0 0.0
    %4008 = vmatmul.mubr.f32.gmra.mrb[0].mxu0 %v3908
    %v4009 = vpop.f32.mrb[0].mxu0
    %v4010 = vadd.f32 %v3936, %v4009
    %v4011 = vpop.f32.mrb[0].mxu0
    %4012 = vmatprep.mubr.f32.mxu0 0.0
    %4013 = vmatmul.mubr.f32.gmra.mrb[0].mxu0 %v3909
    %v4014 = vpop.f32.mrb[0].mxu0
    %v4015 = vadd.f32 %v3936, %v4014
    %v4016 = vpop.f32.mrb[0].mxu0
    %4017 = vmatprep.mubr.f32.mxu0 0.0
    %4018 = vmatmul.mubr.f32.gmra.mrb[0].mxu0 %v3910
    %v4019 = vpop.f32.mrb[0].mxu0
    %v4020 = vadd.f32 %v3936, %v4019
    %v4021 = vpop.f32.mrb[0].mxu0
    %4022 = vmatprep.mubr.f32.mxu0 0.0
    %4023 = vmatmul.mubr.f32.gmra.mrb[0].mxu0 %v3911
    %v4024 = vpop.f32.mrb[0].mxu0
    %v4025 = vadd.f32 %v3936, %v4024
    %v4026 = vpop.f32.mrb[0].mxu0
    %4027 = vmatprep.mubr.f32.mxu0 0.0
    %4028 = vmatmul.mubr.f32.gmra.mrb[0].mxu0 %v3912
    %v4029 = vpop.f32.mrb[0].mxu0
    %v4030 = vadd.f32 %v3936, %v4029
    %v4031 = vpop.f32.mrb[0].mxu0
    %4032 = vmatprep.mubr.f32.mxu0 0.0
    %4033 = vmatmul.mubr.f32.gmra.mrb[0].mxu0 %v3913
    %v4034 = vpop.f32.mrb[0].mxu0
    %v4035 = vadd.f32 %v3936, %v4034
    %v4036 = vpop.f32.mrb[0].mxu0
    %4037 = vmatprep.mubr.f32.mxu0 0.0
    %4038 = vmatmul.mubr.f32.gmra.mrb[0].mxu0 %v3914
    %v4039 = vpop.f32.mrb[0].mxu0
    %v4040 = vadd.f32 %v3936, %v4039
    %v4041 = vpop.f32.mrb[0].mxu0
    %4042 = vdwg.mxu0
    %v4043 = vmax.f32 %v4005, 0.0
    %v4044 = vmax.f32 %v4010, 0.0
    %v4045 = vmax.f32 %v4015, 0.0
    %v4046 = vmax.f32 %v4020, 0.0
    %v4047 = vmax.f32 %v4025, 0.0
    %v4048 = vmax.f32 %v4030, 0.0
    %v4049 = vmax.f32 %v4035, 0.0
    %v4050 = vmax.f32 %v4040, 0.0
    %v4051 = vld [vmem:[#allocation16] sm:$0xff]
    %v4052 = vld [vmem:[#allocation16 + $0x8] sm:$0xff]
    %v4053 = vld [vmem:[#allocation16 + $0x10] sm:$0xff]
    %v4054 = vld [vmem:[#allocation16 + $0x18] sm:$0xff]
    %v4055 = vld [vmem:[#allocation16 + $0x20] sm:$0xff]
    %v4056 = vld [vmem:[#allocation16 + $0x28] sm:$0xff]
    %v4057 = vld [vmem:[#allocation16 + $0x30] sm:$0xff]
    %v4058 = vld [vmem:[#allocation16 + $0x38] sm:$0xff]
    %v4059 = vld [vmem:[#allocation16 + $0x40] sm:$0xff]
    %v4060 = vld [vmem:[#allocation16 + $0x48] sm:$0xff]
    %v4061 = vld [vmem:[#allocation16 + $0x50] sm:$0xff]
    %v4062 = vld [vmem:[#allocation16 + $0x58] sm:$0xff]
    %v4063 = vld [vmem:[#allocation16 + $0x60] sm:$0xff]
    %v4064 = vld [vmem:[#allocation16 + $0x68] sm:$0xff]
    %v4065 = vld [vmem:[#allocation16 + $0x70] sm:$0xff]
    %v4066 = vld [vmem:[#allocation16 + $0x78] sm:$0xff]
    %v4067 = vld [vmem:[%s16] sm:$0x1]
    %v4069 = vlaneseq
    %v4070 = vshrl.u32 %v4069, 7
    %v4071 = vsub.s32 0, %v4070
    %v4072 = vrot.slane %v4067, %v4071
    %4074 = vmatprep.subr.mxu0 0.0
    %4075 = vmatpush1.msra.mxu0 %v4051
    %4076 = vmatprep.subr.mxu0 0.0
    %4077 = vmatpush1.msra.mxu0 %v4052
    %4078 = vmatprep.subr.mxu0 0.0
    %4079 = vmatpush1.msra.mxu0 %v4053
    %4080 = vmatprep.subr.mxu0 0.0
    %4081 = vmatpush1.msra.mxu0 %v4054
    %4082 = vmatprep.subr.mxu0 0.0
    %4083 = vmatpush1.msra.mxu0 %v4055
    %4084 = vmatprep.subr.mxu0 0.0
    %4085 = vmatpush1.msra.mxu0 %v4056
    %4086 = vmatprep.subr.mxu0 0.0
    %4087 = vmatpush1.msra.mxu0 %v4057
    %4088 = vmatprep.subr.mxu0 0.0
    %4089 = vmatpush1.msra.mxu0 %v4058
    %4090 = vmatprep.subr.mxu0 0.0
    %4091 = vmatpush1.msra.mxu0 %v4059
    %4092 = vmatprep.subr.mxu0 0.0
    %4093 = vmatpush1.msra.mxu0 %v4060
    %4094 = vmatprep.subr.mxu0 0.0
    %4095 = vmatpush1.msra.mxu0 %v4061
    %4096 = vmatprep.subr.mxu0 0.0
    %4097 = vmatpush1.msra.mxu0 %v4062
    %4098 = vmatprep.subr.mxu0 0.0
    %4099 = vmatpush1.msra.mxu0 %v4063
    %4100 = vmatprep.subr.mxu0 0.0
    %4101 = vmatpush1.msra.mxu0 %v4064
    %4102 = vmatprep.subr.mxu0 0.0
    %4103 = vmatpush1.msra.mxu0 %v4065
    %4104 = vmatprep.subr.mxu0 0.0
    %4105 = vmatpush1.msra.mxu0 %v4066
    %4106 = vmatprep.subr.mxu0 0.0
    %4107 = vmatpush1.msra.mxu0 0.0
    %4108 = vmatprep.subr.mxu0 0.0
    %4109 = vmatpush1.msra.mxu0 0.0
    %4110 = vmatprep.subr.mxu0 0.0
    %4111 = vmatpush1.msra.mxu0 0.0
    %4112 = vmatprep.subr.mxu0 0.0
    %4113 = vmatpush1.msra.mxu0 0.0
    %4114 = vmatprep.subr.mxu0 0.0
    %4115 = vmatpush1.msra.mxu0 0.0
    %4116 = vmatprep.subr.mxu0 0.0
    %4117 = vmatpush1.msra.mxu0 0.0
    %4118 = vmatprep.subr.mxu0 0.0
    %4119 = vmatpush1.msra.mxu0 0.0
    %4120 = vmatprep.subr.mxu0 0.0
    %4121 = vmatpush1.msra.mxu0 0.0
    %4122 = vmatprep.subr.mxu0 0.0
    %4123 = vmatpush1.msra.mxu0 0.0
    %4124 = vmatprep.subr.mxu0 0.0
    %4125 = vmatpush1.msra.mxu0 0.0
    %4126 = vmatprep.subr.mxu0 0.0
    %4127 = vmatpush1.msra.mxu0 0.0
    %4128 = vmatprep.subr.mxu0 0.0
    %4129 = vmatpush1.msra.mxu0 0.0
    %4130 = vmatprep.subr.mxu0 0.0
    %4131 = vmatpush1.msra.mxu0 0.0
    %4132 = vmatprep.subr.mxu0 0.0
    %4133 = vmatpush1.msra.mxu0 0.0
    %4134 = vmatprep.subr.mxu0 0.0
    %4135 = vmatpush1.msra.mxu0 0.0
    %4136 = vmatprep.subr.mxu0 0.0
    %4137 = vmatpush1.msra.mxu0 0.0
    %4138 = vmatprep.mubr.f32.mxu0 0.0
    %4139 = vmatmul.mubr.f32.gmra.mrb[0].mxu0 %v4043
    %v4140 = vpop.f32.mrb[0].mxu0
    %v4141 = vadd.f32 %v4072, %v4140
    %v4142 = vpop.f32.mrb[0].mxu0
    %4143 = vmatprep.mubr.f32.mxu0 0.0
    %4144 = vmatmul.mubr.f32.gmra.mrb[0].mxu0 %v4044
    %v4145 = vpop.f32.mrb[0].mxu0
    %v4146 = vadd.f32 %v4072, %v4145
    %v4147 = vpop.f32.mrb[0].mxu0
    %4148 = vmatprep.mubr.f32.mxu0 0.0
    %4149 = vmatmul.mubr.f32.gmra.mrb[0].mxu0 %v4045
    %v4150 = vpop.f32.mrb[0].mxu0
    %v4151 = vadd.f32 %v4072, %v4150
    %v4152 = vpop.f32.mrb[0].mxu0
    %4153 = vmatprep.mubr.f32.mxu0 0.0
    %4154 = vmatmul.mubr.f32.gmra.mrb[0].mxu0 %v4046
    %v4155 = vpop.f32.mrb[0].mxu0
    %v4156 = vadd.f32 %v4072, %v4155
    %v4157 = vpop.f32.mrb[0].mxu0
    %4158 = vmatprep.mubr.f32.mxu0 0.0
    %4159 = vmatmul.mubr.f32.gmra.mrb[0].mxu0 %v4047
    %v4160 = vpop.f32.mrb[0].mxu0
    %v4161 = vadd.f32 %v4072, %v4160
    %v4162 = vpop.f32.mrb[0].mxu0
    %4163 = vmatprep.mubr.f32.mxu0 0.0
    %4164 = vmatmul.mubr.f32.gmra.mrb[0].mxu0 %v4048
    %v4165 = vpop.f32.mrb[0].mxu0
    %v4166 = vadd.f32 %v4072, %v4165
    %v4167 = vpop.f32.mrb[0].mxu0
    %4168 = vmatprep.mubr.f32.mxu0 0.0
    %4169 = vmatmul.mubr.f32.gmra.mrb[0].mxu0 %v4049
    %v4170 = vpop.f32.mrb[0].mxu0
    %v4171 = vadd.f32 %v4072, %v4170
    %v4172 = vpop.f32.mrb[0].mxu0
    %4173 = vmatprep.mubr.f32.mxu0 0.0
    %4174 = vmatmul.mubr.f32.gmra.mrb[0].mxu0 %v4050
    %v4175 = vpop.f32.mrb[0].mxu0
    %v4176 = vadd.f32 %v4072, %v4175
    %v4177 = vpop.f32.mrb[0].mxu0
    %4178 = vdwg.mxu0
    %v4179 = vmax.f32 %v4141, 0.0
    %v4180 = vmax.f32 %v4146, 0.0
    %v4181 = vmax.f32 %v4151, 0.0
    %v4182 = vmax.f32 %v4156, 0.0
    %v4183 = vmax.f32 %v4161, 0.0
    %v4184 = vmax.f32 %v4166, 0.0
    %v4185 = vmax.f32 %v4171, 0.0
    %v4186 = vmax.f32 %v4176, 0.0
    %v4187 = vld [vmem:[#allocation18] sm:$0xff]
    %v4188 = vld [vmem:[#allocation18 + $0x8] sm:$0xff]
    %v4189 = vld [vmem:[#allocation18 + $0x10] sm:$0xff]
    %v4190 = vld [vmem:[#allocation18 + $0x18] sm:$0xff]
    %v4191 = vld [vmem:[#allocation18 + $0x20] sm:$0xff]
    %v4192 = vld [vmem:[#allocation18 + $0x28] sm:$0xff]
    %v4193 = vld [vmem:[#allocation18 + $0x30] sm:$0xff]
    %v4194 = vld [vmem:[#allocation18 + $0x38] sm:$0xff]
    %v4195 = vld [vmem:[#allocation18 + $0x40] sm:$0xff]
    %v4196 = vld [vmem:[#allocation18 + $0x48] sm:$0xff]
    %v4197 = vld [vmem:[#allocation18 + $0x50] sm:$0xff]
    %v4198 = vld [vmem:[#allocation18 + $0x58] sm:$0xff]
    %v4199 = vld [vmem:[#allocation18 + $0x60] sm:$0xff]
    %v4200 = vld [vmem:[#allocation18 + $0x68] sm:$0xff]
    %v4201 = vld [vmem:[#allocation18 + $0x70] sm:$0xff]
    %v4202 = vld [vmem:[#allocation18 + $0x78] sm:$0xff]
    %v4203 = vld [vmem:[%s18] sm:$0x1]
    %v4205 = vlaneseq
    %v4206 = vshrl.u32 %v4205, 7
    %v4207 = vsub.s32 0, %v4206
    %v4208 = vrot.slane %v4203, %v4207
    %4210 = vmatprep.subr.mxu0 0.0
    %4211 = vmatpush1.msra.mxu0 %v4187
    %4212 = vmatprep.subr.mxu0 0.0
    %4213 = vmatpush1.msra.mxu0 %v4188
    %4214 = vmatprep.subr.mxu0 0.0
    %4215 = vmatpush1.msra.mxu0 %v4189
    %4216 = vmatprep.subr.mxu0 0.0
    %4217 = vmatpush1.msra.mxu0 %v4190
    %4218 = vmatprep.subr.mxu0 0.0
    %4219 = vmatpush1.msra.mxu0 %v4191
    %4220 = vmatprep.subr.mxu0 0.0
    %4221 = vmatpush1.msra.mxu0 %v4192
    %4222 = vmatprep.subr.mxu0 0.0
    %4223 = vmatpush1.msra.mxu0 %v4193
    %4224 = vmatprep.subr.mxu0 0.0
    %4225 = vmatpush1.msra.mxu0 %v4194
    %4226 = vmatprep.subr.mxu0 0.0
    %4227 = vmatpush1.msra.mxu0 %v4195
    %4228 = vmatprep.subr.mxu0 0.0
    %4229 = vmatpush1.msra.mxu0 %v4196
    %4230 = vmatprep.subr.mxu0 0.0
    %4231 = vmatpush1.msra.mxu0 %v4197
    %4232 = vmatprep.subr.mxu0 0.0
    %4233 = vmatpush1.msra.mxu0 %v4198
    %4234 = vmatprep.subr.mxu0 0.0
    %4235 = vmatpush1.msra.mxu0 %v4199
    %4236 = vmatprep.subr.mxu0 0.0
    %4237 = vmatpush1.msra.mxu0 %v4200
    %4238 = vmatprep.subr.mxu0 0.0
    %4239 = vmatpush1.msra.mxu0 %v4201
    %4240 = vmatprep.subr.mxu0 0.0
    %4241 = vmatpush1.msra.mxu0 %v4202
    %4242 = vmatprep.subr.mxu0 0.0
    %4243 = vmatpush1.msra.mxu0 0.0
    %4244 = vmatprep.subr.mxu0 0.0
    %4245 = vmatpush1.msra.mxu0 0.0
    %4246 = vmatprep.subr.mxu0 0.0
    %4247 = vmatpush1.msra.mxu0 0.0
    %4248 = vmatprep.subr.mxu0 0.0
    %4249 = vmatpush1.msra.mxu0 0.0
    %4250 = vmatprep.subr.mxu0 0.0
    %4251 = vmatpush1.msra.mxu0 0.0
    %4252 = vmatprep.subr.mxu0 0.0
    %4253 = vmatpush1.msra.mxu0 0.0
    %4254 = vmatprep.subr.mxu0 0.0
    %4255 = vmatpush1.msra.mxu0 0.0
    %4256 = vmatprep.subr.mxu0 0.0
    %4257 = vmatpush1.msra.mxu0 0.0
    %4258 = vmatprep.subr.mxu0 0.0
    %4259 = vmatpush1.msra.mxu0 0.0
    %4260 = vmatprep.subr.mxu0 0.0
    %4261 = vmatpush1.msra.mxu0 0.0
    %4262 = vmatprep.subr.mxu0 0.0
    %4263 = vmatpush1.msra.mxu0 0.0
    %4264 = vmatprep.subr.mxu0 0.0
    %4265 = vmatpush1.msra.mxu0 0.0
    %4266 = vmatprep.subr.mxu0 0.0
    %4267 = vmatpush1.msra.mxu0 0.0
    %4268 = vmatprep.subr.mxu0 0.0
    %4269 = vmatpush1.msra.mxu0 0.0
    %4270 = vmatprep.subr.mxu0 0.0
    %4271 = vmatpush1.msra.mxu0 0.0
    %4272 = vmatprep.subr.mxu0 0.0
    %4273 = vmatpush1.msra.mxu0 0.0
    %4274 = vmatprep.mubr.f32.mxu0 0.0
    %4275 = vmatmul.mubr.f32.gmra.mrb[0].mxu0 %v4179
    %v4276 = vpop.f32.mrb[0].mxu0
    %v4277 = vadd.f32 %v4208, %v4276
    %v4278 = vpop.f32.mrb[0].mxu0
    %4279 = vmatprep.mubr.f32.mxu0 0.0
    %4280 = vmatmul.mubr.f32.gmra.mrb[0].mxu0 %v4180
    %v4281 = vpop.f32.mrb[0].mxu0
    %v4282 = vadd.f32 %v4208, %v4281
    %v4283 = vpop.f32.mrb[0].mxu0
    %4284 = vmatprep.mubr.f32.mxu0 0.0
    %4285 = vmatmul.mubr.f32.gmra.mrb[0].mxu0 %v4181
    %v4286 = vpop.f32.mrb[0].mxu0
    %v4287 = vadd.f32 %v4208, %v4286
    %v4288 = vpop.f32.mrb[0].mxu0
    %4289 = vmatprep.mubr.f32.mxu0 0.0
    %4290 = vmatmul.mubr.f32.gmra.mrb[0].mxu0 %v4182
    %v4291 = vpop.f32.mrb[0].mxu0
    %v4292 = vadd.f32 %v4208, %v4291
    %v4293 = vpop.f32.mrb[0].mxu0
    %4294 = vmatprep.mubr.f32.mxu0 0.0
    %4295 = vmatmul.mubr.f32.gmra.mrb[0].mxu0 %v4183
    %v4296 = vpop.f32.mrb[0].mxu0
    %v4297 = vadd.f32 %v4208, %v4296
    %v4298 = vpop.f32.mrb[0].mxu0
    %4299 = vmatprep.mubr.f32.mxu0 0.0
    %4300 = vmatmul.mubr.f32.gmra.mrb[0].mxu0 %v4184
    %v4301 = vpop.f32.mrb[0].mxu0
    %v4302 = vadd.f32 %v4208, %v4301
    %v4303 = vpop.f32.mrb[0].mxu0
    %4304 = vmatprep.mubr.f32.mxu0 0.0
    %4305 = vmatmul.mubr.f32.gmra.mrb[0].mxu0 %v4185
    %v4306 = vpop.f32.mrb[0].mxu0
    %v4307 = vadd.f32 %v4208, %v4306
    %v4308 = vpop.f32.mrb[0].mxu0
    %4309 = vmatprep.mubr.f32.mxu0 0.0
    %4310 = vmatmul.mubr.f32.gmra.mrb[0].mxu0 %v4186
    %v4311 = vpop.f32.mrb[0].mxu0
    %v4312 = vadd.f32 %v4208, %v4311
    %v4313 = vpop.f32.mrb[0].mxu0
    %4314 = vdwg.mxu0
    %v4315 = vmax.f32 %v4277, 0.0
    %v4316 = vmax.f32 %v4282, 0.0
    %v4317 = vmax.f32 %v4287, 0.0
    %v4318 = vmax.f32 %v4292, 0.0
    %v4319 = vmax.f32 %v4297, 0.0
    %v4320 = vmax.f32 %v4302, 0.0
    %v4321 = vmax.f32 %v4307, 0.0
    %v4322 = vmax.f32 %v4312, 0.0
    %v4323 = vld [vmem:[%s19] sm:$0xff]
    %v4324 = vld [vmem:[%s19 + $0x8] sm:$0xff]
    %v4325 = vld [vmem:[%s19 + $0x10] sm:$0xff]
    %v4326 = vld [vmem:[%s19 + $0x18] sm:$0xff]
    %v4327 = vld [vmem:[%s19 + $0x20] sm:$0xff]
    %v4328 = vld [vmem:[%s19 + $0x28] sm:$0xff]
    %v4329 = vld [vmem:[%s19 + $0x30] sm:$0xff]
    %v4330 = vld [vmem:[%s19 + $0x38] sm:$0xff]
    %v4331 = vld [vmem:[%s19 + $0x40] sm:$0xff]
    %v4332 = vld [vmem:[%s19 + $0x48] sm:$0xff]
    %v4333 = vld [vmem:[%s19 + $0x50] sm:$0xff]
    %v4334 = vld [vmem:[%s19 + $0x58] sm:$0xff]
    %v4335 = vld [vmem:[%s19 + $0x60] sm:$0xff]
    %v4336 = vld [vmem:[%s19 + $0x68] sm:$0xff]
    %v4337 = vld [vmem:[%s19 + $0x70] sm:$0xff]
    %v4338 = vld [vmem:[%s19 + $0x78] sm:$0xff]
    %v4339 = vld [vmem:[#allocation4] sm:$0x1]
    %v4341 = vlaneseq
    %v4342 = vshrl.u32 %v4341, 7
    %v4343 = vsub.s32 0, %v4342
    %v4344 = vrot.slane %v4339, %v4343
    %4346 = vmatprep.subr.mxu0 0.0
    %4347 = vmatpush1.msra.mxu0 %v4323
    %4348 = vmatprep.subr.mxu0 0.0
    %4349 = vmatpush1.msra.mxu0 %v4324
    %4350 = vmatprep.subr.mxu0 0.0
    %4351 = vmatpush1.msra.mxu0 %v4325
    %4352 = vmatprep.subr.mxu0 0.0
    %4353 = vmatpush1.msra.mxu0 %v4326
    %4354 = vmatprep.subr.mxu0 0.0
    %4355 = vmatpush1.msra.mxu0 %v4327
    %4356 = vmatprep.subr.mxu0 0.0
    %4357 = vmatpush1.msra.mxu0 %v4328
    %4358 = vmatprep.subr.mxu0 0.0
    %4359 = vmatpush1.msra.mxu0 %v4329
    %4360 = vmatprep.subr.mxu0 0.0
    %4361 = vmatpush1.msra.mxu0 %v4330
    %4362 = vmatprep.subr.mxu0 0.0
    %4363 = vmatpush1.msra.mxu0 %v4331
    %4364 = vmatprep.subr.mxu0 0.0
    %4365 = vmatpush1.msra.mxu0 %v4332
    %4366 = vmatprep.subr.mxu0 0.0
    %4367 = vmatpush1.msra.mxu0 %v4333
    %4368 = vmatprep.subr.mxu0 0.0
    %4369 = vmatpush1.msra.mxu0 %v4334
    %4370 = vmatprep.subr.mxu0 0.0
    %4371 = vmatpush1.msra.mxu0 %v4335
    %4372 = vmatprep.subr.mxu0 0.0
    %4373 = vmatpush1.msra.mxu0 %v4336
    %4374 = vmatprep.subr.mxu0 0.0
    %4375 = vmatpush1.msra.mxu0 %v4337
    %4376 = vmatprep.subr.mxu0 0.0
    %4377 = vmatpush1.msra.mxu0 %v4338
    %4378 = vmatprep.subr.mxu0 0.0
    %4379 = vmatpush1.msra.mxu0 0.0
    %4380 = vmatprep.subr.mxu0 0.0
    %4381 = vmatpush1.msra.mxu0 0.0
    %4382 = vmatprep.subr.mxu0 0.0
    %4383 = vmatpush1.msra.mxu0 0.0
    %4384 = vmatprep.subr.mxu0 0.0
    %4385 = vmatpush1.msra.mxu0 0.0
    %4386 = vmatprep.subr.mxu0 0.0
    %4387 = vmatpush1.msra.mxu0 0.0
    %4388 = vmatprep.subr.mxu0 0.0
    %4389 = vmatpush1.msra.mxu0 0.0
    %4390 = vmatprep.subr.mxu0 0.0
    %4391 = vmatpush1.msra.mxu0 0.0
    %4392 = vmatprep.subr.mxu0 0.0
    %4393 = vmatpush1.msra.mxu0 0.0
    %4394 = vmatprep.subr.mxu0 0.0
    %4395 = vmatpush1.msra.mxu0 0.0
    %4396 = vmatprep.subr.mxu0 0.0
    %4397 = vmatpush1.msra.mxu0 0.0
    %4398 = vmatprep.subr.mxu0 0.0
    %4399 = vmatpush1.msra.mxu0 0.0
    %4400 = vmatprep.subr.mxu0 0.0
    %4401 = vmatpush1.msra.mxu0 0.0
    %4402 = vmatprep.subr.mxu0 0.0
    %4403 = vmatpush1.msra.mxu0 0.0
    %4404 = vmatprep.subr.mxu0 0.0
    %4405 = vmatpush1.msra.mxu0 0.0
    %4406 = vmatprep.subr.mxu0 0.0
    %4407 = vmatpush1.msra.mxu0 0.0
    %4408 = vmatprep.subr.mxu0 0.0
    %4409 = vmatpush1.msra.mxu0 0.0
    %4410 = vmatprep.mubr.f32.mxu0 0.0
    %4411 = vmatmul.mubr.f32.gmra.mrb[0].mxu0 %v4315
    %v4412 = vpop.f32.mrb[0].mxu0
    %v4413 = vadd.f32 %v4344, %v4412
    %v4414 = vpop.f32.mrb[0].mxu0
    %4415 = vmatprep.mubr.f32.mxu0 0.0
    %4416 = vmatmul.mubr.f32.gmra.mrb[0].mxu0 %v4316
    %v4417 = vpop.f32.mrb[0].mxu0
    %v4418 = vadd.f32 %v4344, %v4417
    %v4419 = vpop.f32.mrb[0].mxu0
    %4420 = vmatprep.mubr.f32.mxu0 0.0
    %4421 = vmatmul.mubr.f32.gmra.mrb[0].mxu0 %v4317
    %v4422 = vpop.f32.mrb[0].mxu0
    %v4423 = vadd.f32 %v4344, %v4422
    %v4424 = vpop.f32.mrb[0].mxu0
    %4425 = vmatprep.mubr.f32.mxu0 0.0
    %4426 = vmatmul.mubr.f32.gmra.mrb[0].mxu0 %v4318
    %v4427 = vpop.f32.mrb[0].mxu0
    %v4428 = vadd.f32 %v4344, %v4427
    %v4429 = vpop.f32.mrb[0].mxu0
    %4430 = vmatprep.mubr.f32.mxu0 0.0
    %4431 = vmatmul.mubr.f32.gmra.mrb[0].mxu0 %v4319
    %v4432 = vpop.f32.mrb[0].mxu0
    %v4433 = vadd.f32 %v4344, %v4432
    %v4434 = vpop.f32.mrb[0].mxu0
    %4435 = vmatprep.mubr.f32.mxu0 0.0
    %4436 = vmatmul.mubr.f32.gmra.mrb[0].mxu0 %v4320
    %v4437 = vpop.f32.mrb[0].mxu0
    %v4438 = vadd.f32 %v4344, %v4437
    %v4439 = vpop.f32.mrb[0].mxu0
    %4440 = vmatprep.mubr.f32.mxu0 0.0
    %4441 = vmatmul.mubr.f32.gmra.mrb[0].mxu0 %v4321
    %v4442 = vpop.f32.mrb[0].mxu0
    %v4443 = vadd.f32 %v4344, %v4442
    %v4444 = vpop.f32.mrb[0].mxu0
    %4445 = vmatprep.mubr.f32.mxu0 0.0
    %4446 = vmatmul.mubr.f32.gmra.mrb[0].mxu0 %v4322
    %v4447 = vpop.f32.mrb[0].mxu0
    %v4448 = vadd.f32 %v4344, %v4447
    %v4449 = vpop.f32.mrb[0].mxu0
    %4450 = vdwg.mxu0
    %v4451 = vxor.u32 %v4413, 2147483648
    %v4452 = vxor.u32 %v4418, 2147483648
    %v4453 = vxor.u32 %v4423, 2147483648
    %v4454 = vxor.u32 %v4428, 2147483648
    %v4455 = vxor.u32 %v4433, 2147483648
    %v4456 = vxor.u32 %v4438, 2147483648
    %v4457 = vxor.u32 %v4443, 2147483648
    %v4458 = vxor.u32 %v4448, 2147483648
    %v4459 = vmul.f32 %v4451, 1.442695
    %v4460 = vpow.pop %v4459
    %v4461 = vmul.f32 %v4452, 1.442695
    %v4462 = vpow.pop %v4461
    %v4463 = vmul.f32 %v4453, 1.442695
    %v4464 = vpow.pop %v4463
    %v4465 = vmul.f32 %v4454, 1.442695
    %v4466 = vpow.pop %v4465
    %v4467 = vmul.f32 %v4455, 1.442695
    %v4468 = vpow.pop %v4467
    %v4469 = vmul.f32 %v4456, 1.442695
    %v4470 = vpow.pop %v4469
    %v4471 = vmul.f32 %v4457, 1.442695
    %v4472 = vpow.pop %v4471
    %v4473 = vmul.f32 %v4458, 1.442695
    %v4474 = vpow.pop %v4473
    %v4475 = vadd.f32 %v4460, 1.0
    %v4476 = vadd.f32 %v4462, 1.0
    %v4477 = vadd.f32 %v4464, 1.0
    %v4478 = vadd.f32 %v4466, 1.0
    %v4479 = vadd.f32 %v4468, 1.0
    %v4480 = vadd.f32 %v4470, 1.0
    %v4481 = vadd.f32 %v4472, 1.0
    %v4482 = vadd.f32 %v4474, 1.0
    %v4483 = vrcp.pop %v4475
    %v4484 = vmul.f32 1.0, %v4483
    %v4485 = vrcp.pop %v4476
    %v4486 = vmul.f32 1.0, %v4485
    %v4487 = vrcp.pop %v4477
    %v4488 = vmul.f32 1.0, %v4487
    %v4489 = vrcp.pop %v4478
    %v4490 = vmul.f32 1.0, %v4489
    %v4491 = vrcp.pop %v4479
    %v4492 = vmul.f32 1.0, %v4491
    %v4493 = vrcp.pop %v4480
    %v4494 = vmul.f32 1.0, %v4493
    %v4495 = vrcp.pop %v4481
    %v4496 = vmul.f32 1.0, %v4495
    %v4497 = vrcp.pop %v4482
    %v4498 = vmul.f32 1.0, %v4497
    %vm4499 = vcmask 7168
    %4500 = vst.msk [vmem:[%s21] sm:$0xff] %vm4499, %v4484
    %4501 = vst.msk [vmem:[%s21 + $0x8] sm:$0xff] %vm4499, %v4486
    %4502 = vst.msk [vmem:[%s21 + $0x10] sm:$0xff] %vm4499, %v4488
    %4503 = vst.msk [vmem:[%s21 + $0x18] sm:$0xff] %vm4499, %v4490
    %4504 = vst.msk [vmem:[%s21 + $0x20] sm:$0xff] %vm4499, %v4492
    %4505 = vst.msk [vmem:[%s21 + $0x28] sm:$0xff] %vm4499, %v4494
    %4506 = vst.msk [vmem:[%s21 + $0x30] sm:$0xff] %vm4499, %v4496
    %4507 = vst.msk [vmem:[%s21 + $0x38] sm:$0xff] %vm4499, %v4498
    // Predicated region
    $region122: #{tpu_custom_call.1} parent=1 // pred_check
      _
    $region123: #{tpu_custom_call.1} parent=1 // pred_check_branch
      %4509 = sbr.rel (0) target = $region125
    $region124: #{tpu_custom_call.1} parent=1 // pred_region
      _
    $region125: #{tpu_custom_call.1} parent=1 // pred_fallthru
      _
    // Predicated region
    $region126: #{tpu_custom_call.1} parent=1 // pred_check
      _
    $region127: #{tpu_custom_call.1} parent=1 // pred_check_branch
      %4511 = sbr.rel (0) target = $region129
    $region128: #{tpu_custom_call.1} parent=1 // pred_region
      _
    $region129: #{tpu_custom_call.1} parent=1 // pred_fallthru
      _
    %4512 = vsyncpa [#allocation6], 1
    %4513 = vsyncpa [#allocation8], 1
    %4514 = vsyncpa [#allocation11], 1
    %4515 = vsyncpa [#allocation14], 1
    %4516 = vsyncpa [#allocation17], 1

</llo_original>
